<compile_context>
chip_gen: v5e
topology: v5e:2x2
jax: 0.10.0
libtpu: 0.0.40
codegen_flags: <defaults>
</compile_context>

<pallas_src>
import functools

import jax
import jax.numpy as jnp
import numpy as np
from jax import lax
from jax.experimental import pallas as pl
from jax.experimental.pallas import tpu as pltpu


# ----------------------------- Pallas kernel ------------------------------ #
def _disc_block_kernel(x_ref, w1_ref, b1_ref, w2_ref, b2_ref, wsc_ref, bsc_ref,
                       out_ref, xr_ref, hp_ref, *, H, W, Cin, Chid, Cout,
                       transpose_out):
    """One batch element per grid step.

    x_ref   : (1, H+2, W+2, Cin)  bf16  zero-padded NHWC input
    w*_ref  : bf16 per-tap matmul weights, resident across grid steps
    b*_ref  : (1, C) f32 biases
    out_ref : (1, Cout, Ho*Wo) f32 if transpose_out else (1, Ho*Wo, Cout)
    xr_ref  : (H+2, W+2, Cin)  f32 scratch — relu(x), zero-padded
    hp_ref  : (H+2, W+2, Chid) f32 scratch — relu(conv1), zero-padded
    """
    Ho, Wo = H // 2, W // 2
    M = H * W
    taps = [(dy, dx) for dy in range(3) for dx in range(3)]

    # Raw padded input: one aligned full-tile load, upcast for f32 VPU math.
    xp = x_ref[0].astype(jnp.float32)                       # (H+2, W+2, Cin)

    # relu(x) once into a padded VMEM scratch; the 9 conv1 taps below are pure
    # ref-slice address arithmetic (relu(0) == 0, so padding is preserved).
    xr_ref[...] = jnp.maximum(xp, 0.0)

    # conv2's zero padding border lives in the scratch; re-zero each step
    # (scratch is uninitialized and, under a "parallel" grid axis, a core may
    # never execute step 0, so do not gate this on program_id).
    hp_ref[...] = jnp.zeros_like(hp_ref)

    # ---- conv1: 9 accumulating MXU dots (bf16 operands, f32 accumulate) ----
    acc1 = jnp.zeros((M, Chid), jnp.float32)
    for t, (dy, dx) in enumerate(taps):
        tap = xr_ref[pl.ds(dy, H), pl.ds(dx, W), :].reshape(M, Cin)
        acc1 = acc1 + jnp.dot(tap.astype(jnp.bfloat16), w1_ref[t],
                              preferred_element_type=jnp.float32)
    h1 = jnp.maximum(acc1 + b1_ref[...], 0.0)               # (M, Chid) f32

    # relu(conv1) into the padded scratch (interior-only masked f32 store).
    hp_ref[pl.ds(1, H), pl.ds(1, W), :] = h1.reshape(H, W, Chid)

    # ---- conv2: 9 accumulating MXU dots from the padded scratch ------------
    acc2 = jnp.zeros((M, Cout), jnp.float32)
    for t, (dy, dx) in enumerate(taps):
        tap = hp_ref[pl.ds(dy, H), pl.ds(dx, W), :].reshape(M, Chid)
        acc2 = acc2 + jnp.dot(tap.astype(jnp.bfloat16), w2_ref[t],
                              preferred_element_type=jnp.float32)
    y2 = acc2 + b2_ref[...]                                  # (M, Cout) f32

    # ---- shortcut: 1x1 conv on the RAW (non-activated) input ---------------
    xc = xp[1:H + 1, 1:W + 1, :].reshape(M, Cin)             # raw x = pad center
    sc = jnp.dot(xc.astype(jnp.bfloat16), wsc_ref[...],
                 preferred_element_type=jnp.float32) + bsc_ref[...]

    s = y2 + sc                                              # (M, Cout) f32

    # ---- 2x2 average pool:  pool(h) + pool(sc) == pool(h + sc) -------------
    s3 = s.reshape(Ho, 2, W, Cout)           # split 3rd-minor dim: no relayout
    sh = s3[:, 0, :, :] + s3[:, 1, :, :]     # H-pair sums      (Ho, W, Cout)
    sw = sh.reshape(Ho, Wo, 2, Cout)
    pooled = 0.25 * (sw[:, :, 0, :] + sw[:, :, 1, :])        # (Ho, Wo, Cout)
    pooled = pooled.reshape(Ho * Wo, Cout)

    if transpose_out:
        out_ref[0] = pooled.T      # (Cout, Ho*Wo): lane-denser for Cout < 128
    else:
        out_ref[0] = pooled        # (Ho*Wo, Cout): already dense for Cout>=128


def disc_block_pallas(x_nchw, w1_oihw, b1, w2_oihw, b2, wsc_oihw, bsc):
    N, Cin, H, W = x_nchw.shape
    Chid = w1_oihw.shape[0]
    Cout = w2_oihw.shape[0]
    Ho, Wo = H // 2, W // 2
    assert H % 2 == 0 and W % 2 == 0

    # Layout plumbing only (no 9x im2col materialization): NCHW -> padded NHWC.
    # bf16 cast: every in-kernel use of x is a bf16 MXU operand anyway, so this
    # is numerically identical to casting in-kernel and halves the HBM read.
    x_nhwc = jnp.transpose(x_nchw, (0, 2, 3, 1))
    x_pad = jnp.pad(x_nhwc, ((0, 0), (1, 1), (1, 1), (0, 0))).astype(jnp.bfloat16)

    # Weights: OIHW -> per-tap (Cin_tap, Cout_tap) matmul layout, bf16.
    w1r = jnp.transpose(w1_oihw, (2, 3, 1, 0)).reshape(9, Cin, Chid).astype(jnp.bfloat16)
    w2r = jnp.transpose(w2_oihw, (2, 3, 1, 0)).reshape(9, Chid, Cout).astype(jnp.bfloat16)
    wscr = jnp.transpose(wsc_oihw[:, :, 0, 0], (1, 0)).astype(jnp.bfloat16)
    b1r = b1.reshape(1, Chid).astype(jnp.float32)
    b2r = b2.reshape(1, Cout).astype(jnp.float32)
    bscr = bsc.reshape(1, Cout).astype(jnp.float32)

    # Lane-dense output trick only for Cout < 128 (toy shapes); realistic
    # Cout >= 128 stores the natural (rows, Cout) layout directly.
    transpose_out = Cout < 128
    if transpose_out:
        out_shape = jax.ShapeDtypeStruct((N, Cout, Ho * Wo), jnp.float32)
        out_spec = pl.BlockSpec((1, Cout, Ho * Wo), lambda n: (n, 0, 0))
    else:
        out_shape = jax.ShapeDtypeStruct((N, Ho * Wo, Cout), jnp.float32)
        out_spec = pl.BlockSpec((1, Ho * Wo, Cout), lambda n: (n, 0, 0))

    kernel = functools.partial(_disc_block_kernel, H=H, W=W, Cin=Cin,
                               Chid=Chid, Cout=Cout, transpose_out=transpose_out)

    flops = 2 * N * H * W * (9 * Cin * Chid + 9 * Chid * Cout + Cin * Cout)
    bytes_accessed = (x_pad.size * 2
                      + (w1r.size + w2r.size + wscr.size) * 2
                      + (b1r.size + b2r.size + bscr.size) * 4
                      + int(np.prod(out_shape.shape)) * 4)

    out = pl.pallas_call(
        kernel,
        out_shape=out_shape,
        grid_spec=pltpu.PrefetchScalarGridSpec(
            num_scalar_prefetch=0,
            grid=(N,),
            in_specs=[
                pl.BlockSpec((1, H + 2, W + 2, Cin), lambda n: (n, 0, 0, 0)),
                # Weights / biases: constant index_map -> VMEM resident, no re-DMA.
                pl.BlockSpec((9, Cin, Chid), lambda n: (0, 0, 0)),
                pl.BlockSpec((1, Chid), lambda n: (0, 0)),
                pl.BlockSpec((9, Chid, Cout), lambda n: (0, 0, 0)),
                pl.BlockSpec((1, Cout), lambda n: (0, 0)),
                pl.BlockSpec((Cin, Cout), lambda n: (0, 0)),
                pl.BlockSpec((1, Cout), lambda n: (0, 0)),
            ],
            out_specs=out_spec,
            scratch_shapes=[
                pltpu.VMEM((H + 2, W + 2, Cin), jnp.float32),   # relu(x), padded
                pltpu.VMEM((H + 2, W + 2, Chid), jnp.float32),  # relu(conv1), padded
            ]),
        compiler_params=pltpu.CompilerParams(
            dimension_semantics=("parallel",)),
        cost_estimate=pl.CostEstimate(flops=flops, transcendentals=0,
                                      bytes_accessed=bytes_accessed),
    )(x_pad, w1r, b1r, w2r, b2r, wscr, bscr)

    if transpose_out:
        return out.reshape(N, Cout, Ho, Wo)                   # already NCHW
    return jnp.transpose(out.reshape(N, Ho, Wo, Cout), (0, 3, 1, 2))


# ------------------------- parameter construction -------------------------- #
def xavier_uniform(key, shape_oihw, gain):
    o, i, kh, kw = shape_oihw
    fan_in, fan_out = i * kh * kw, o * kh * kw
    bound = gain * np.sqrt(6.0 / (fan_in + fan_out))
    return jax.random.uniform(key, shape_oihw, jnp.float32, -bound, bound)


def spectral_normalize(w_oihw, key, iters=50):
    # Converged spectral norm of the (O, I*kh*kw) matrix (see TODO above).
    o = w_oihw.shape[0]
    wm = w_oihw.reshape(o, -1)
    u = jax.random.normal(key, (o,), jnp.float32)
    u = u / (jnp.linalg.norm(u) + 1e-12)
    v = None
    for _ in range(iters):
        v = wm.T @ u
        v = v / (jnp.linalg.norm(v) + 1e-12)
        u = wm @ v
        u = u / (jnp.linalg.norm(u) + 1e-12)
    sigma = u @ (wm @ v)
    return w_oihw / sigma


# ------------------------------ JAX reference ------------------------------ #
def ref_forward(x_nchw, w1, b1, w2, b2, wsc, bsc):
    def conv(x, w, b, pad):
        y = lax.conv_general_dilated(
            x, w, window_strides=(1, 1),
            padding=((pad, pad), (pad, pad)),
            dimension_numbers=("NCHW", "OIHW", "NCHW"))
        return y + b[None, :, None, None]

    def avg_pool2(x):
        n, c, h, w = x.shape
        return x.reshape(n, c, h // 2, 2, w // 2, 2).mean(axis=(3, 5))

    h = jnp.maximum(x_nchw, 0.0)
    h = conv(h, w1, b1, 1)
    h = jnp.maximum(h, 0.0)
    h = conv(h, w2, b2, 1)
    h = avg_pool2(h)
    sc = conv(x_nchw, wsc, bsc, 0)
    sc = avg_pool2(sc)
    return h + sc


# ----------------------------------- main ----------------------------------- #
if __name__ == "__main__":
    N, Cin, Cout, H, W = 2, 4, 8, 16, 16
    Chid = Cin  # hidden_channels defaults to in_channels
    K = 3

    key = jax.random.PRNGKey(0)
    k_x, k_w1, k_w2, k_wsc, k_u1, k_u2, k_usc = jax.random.split(key, 7)

    # Input (PyTorch convention NCHW).
    x_nchw = jax.random.normal(k_x, (N, Cin, H, W), jnp.float32)

    # Parameters, PyTorch OIHW layout, DiscBlock.__init__ initialization.
    gain = np.sqrt(2.0)
    w1_oihw = xavier_uniform(k_w1, (Chid, Cin, K, K), gain)
    w2_oihw = xavier_uniform(k_w2, (Cout, Chid, K, K), gain)
    wsc_oihw = xavier_uniform(k_wsc, (Cout, Cin, 1, 1), 1.0)
    b1 = jnp.zeros((Chid,), jnp.float32)
    b2 = jnp.zeros((Cout,), jnp.float32)
    bsc = jnp.zeros((Cout,), jnp.float32)

    # Spectral normalization of the conv weights (sn=True).
    w1_oihw = spectral_normalize(w1_oihw, k_u1)
    w2_oihw = spectral_normalize(w2_oihw, k_u2)
    wsc_oihw = spectral_normalize(wsc_oihw, k_usc)

    out_nchw = disc_block_pallas(x_nchw, w1_oihw, b1, w2_oihw, b2,
                                 wsc_oihw, bsc)
    out_nchw = jax.block_until_ready(out_nchw)

    # Correctness check against the pure-f32 NCHW reference.  Tolerance is set
    # for bf16 MXU operands (f32 accumulation); observed diffs are ~1e-2.
    ref = ref_forward(x_nchw, w1_oihw, b1, w2_oihw, b2, wsc_oihw, bsc)
    assert out_nchw.shape == (N, Cout, H // 2, W // 2)
    assert jnp.allclose(out_nchw, ref, atol=5e-2, rtol=5e-2), (
        float(jnp.max(jnp.abs(out_nchw - ref))))

    print("KERNEL_OK")
</pallas_src>

<mosaic_0001>
module attributes {stable_mosaic.version = 11 : i64} {
  func.func @_disc_block_kernel(%arg0: i32, %arg1: memref<1x18x18x4xbf16, #tpu.memory_space<vmem>>, %arg2: memref<9x4x4xbf16, #tpu.memory_space<vmem>>, %arg3: memref<1x4xf32, #tpu.memory_space<vmem>>, %arg4: memref<9x4x8xbf16, #tpu.memory_space<vmem>>, %arg5: memref<1x8xf32, #tpu.memory_space<vmem>>, %arg6: memref<4x8xbf16, #tpu.memory_space<vmem>>, %arg7: memref<1x8xf32, #tpu.memory_space<vmem>>, %arg8: memref<1x8x64xf32, #tpu.memory_space<vmem>>, %arg9: memref<18x18x4xf32, #tpu.memory_space<vmem>>, %arg10: memref<18x18x4xf32, #tpu.memory_space<vmem>>) attributes {dimension_semantics = [#tpu.dimension_semantics<parallel>], iteration_bounds = array<i64: 2>, scalar_prefetch = 0 : i64, scratch_operands = 2 : i64, tpu.core_type = #tpu.core_type<tc>, window_params = [{transform_indices = @transform_0, window_bounds = array<i64: 1, 18, 18, 4>}, {pipeline_mode = #tpu.pipeline_mode<synchronous>, transform_indices = @transform_1, window_bounds = array<i64: 9, 4, 4>}, {pipeline_mode = #tpu.pipeline_mode<synchronous>, transform_indices = @transform_2, window_bounds = array<i64: 1, 4>}, {pipeline_mode = #tpu.pipeline_mode<synchronous>, transform_indices = @transform_3, window_bounds = array<i64: 9, 4, 8>}, {pipeline_mode = #tpu.pipeline_mode<synchronous>, transform_indices = @transform_4, window_bounds = array<i64: 1, 8>}, {pipeline_mode = #tpu.pipeline_mode<synchronous>, transform_indices = @transform_5, window_bounds = array<i64: 4, 8>}, {pipeline_mode = #tpu.pipeline_mode<synchronous>, transform_indices = @transform_6, window_bounds = array<i64: 1, 8>}, {transform_indices = @transform_7, window_bounds = array<i64: 1, 8, 64>}]} {
    %c0 = arith.constant 0 : index
    %c0_0 = arith.constant 0 : index
    %c0_1 = arith.constant 0 : index
    %c0_2 = arith.constant 0 : index
    %0 = vector.load %arg1[%c0, %c0_0, %c0_1, %c0_2] : memref<1x18x18x4xbf16, #tpu.memory_space<vmem>>, vector<1x18x18x4xbf16>
    %1 = vector.shape_cast %0 : vector<1x18x18x4xbf16> to vector<18x18x4xbf16>
    %2 = arith.extf %1 : vector<18x18x4xbf16> to vector<18x18x4xf32>
    %cst = arith.constant 0.000000e+00 : f32
    %3 = vector.broadcast %cst : f32 to vector<18x18x4xf32>
    %4 = arith.maximumf %2, %3 : vector<18x18x4xf32>
    %c0_3 = arith.constant 0 : index
    %c0_4 = arith.constant 0 : index
    %c0_5 = arith.constant 0 : index
    %5 = vector.load %arg9[%c0_3, %c0_4, %c0_5] : memref<18x18x4xf32, #tpu.memory_space<vmem>>, vector<18x18x4xf32>
    tpu.vector_store %arg9[%c0_3, %c0_4, %c0_5], %4 {strides = array<i32>} : memref<18x18x4xf32, #tpu.memory_space<vmem>>, vector<18x18x4xf32>,
    %cst_6 = arith.constant 0.000000e+00 : f32
    %6 = vector.broadcast %cst_6 : f32 to vector<18x18x4xf32>
    %c0_7 = arith.constant 0 : index
    %c0_8 = arith.constant 0 : index
    %c0_9 = arith.constant 0 : index
    %7 = vector.load %arg10[%c0_7, %c0_8, %c0_9] : memref<18x18x4xf32, #tpu.memory_space<vmem>>, vector<18x18x4xf32>
    tpu.vector_store %arg10[%c0_7, %c0_8, %c0_9], %6 {strides = array<i32>} : memref<18x18x4xf32, #tpu.memory_space<vmem>>, vector<18x18x4xf32>,
    %cst_10 = arith.constant 0.000000e+00 : f32
    %8 = vector.broadcast %cst_10 : f32 to vector<256x4xf32>
    %c0_11 = arith.constant 0 : index
    %c0_12 = arith.constant 0 : index
    %c0_13 = arith.constant 0 : index
    %9 = vector.load %arg9[%c0_11, %c0_12, %c0_13] : memref<18x18x4xf32, #tpu.memory_space<vmem>>, vector<16x16x4xf32>
    %10 = vector.shape_cast %9 : vector<16x16x4xf32> to vector<256x4xf32>
    %11 = arith.truncf %10 : vector<256x4xf32> to vector<256x4xbf16>
    %c0_14 = arith.constant 0 : index
    %c0_15 = arith.constant 0 : index
    %c0_16 = arith.constant 0 : index
    %12 = vector.load %arg2[%c0_14, %c0_15, %c0_16] : memref<9x4x4xbf16, #tpu.memory_space<vmem>>, vector<1x4x4xbf16>
    %13 = vector.shape_cast %12 : vector<1x4x4xbf16> to vector<4x4xbf16>
    %cst_17 = arith.constant dense<0.000000e+00> : vector<256x4xf32>
    %14 = tpu.matmul %11, %13, %cst_17 {dimension_numbers = #tpu.dot_dimension_numbers<[1], [0], [0], [1], [0, 0, 1, 1], [], []>} : vector<256x4xbf16>, vector<4x4xbf16>, vector<256x4xf32> -> vector<256x4xf32>
    %15 = arith.addf %8, %14 : vector<256x4xf32>
    %c0_18 = arith.constant 0 : index
    %c1 = arith.constant 1 : index
    %c0_19 = arith.constant 0 : index
    %16 = vector.load %arg9[%c0_18, %c1, %c0_19] : memref<18x18x4xf32, #tpu.memory_space<vmem>>, vector<16x16x4xf32>
    %17 = vector.shape_cast %16 : vector<16x16x4xf32> to vector<256x4xf32>
    %18 = arith.truncf %17 : vector<256x4xf32> to vector<256x4xbf16>
    %c1_20 = arith.constant 1 : index
    %c0_21 = arith.constant 0 : index
    %c0_22 = arith.constant 0 : index
    %19 = vector.load %arg2[%c1_20, %c0_21, %c0_22] : memref<9x4x4xbf16, #tpu.memory_space<vmem>>, vector<1x4x4xbf16>
    %20 = vector.shape_cast %19 : vector<1x4x4xbf16> to vector<4x4xbf16>
    %cst_23 = arith.constant dense<0.000000e+00> : vector<256x4xf32>
    %21 = tpu.matmul %18, %20, %cst_23 {dimension_numbers = #tpu.dot_dimension_numbers<[1], [0], [0], [1], [0, 0, 1, 1], [], []>} : vector<256x4xbf16>, vector<4x4xbf16>, vector<256x4xf32> -> vector<256x4xf32>
    %22 = arith.addf %15, %21 : vector<256x4xf32>
    %c0_24 = arith.constant 0 : index
    %c2 = arith.constant 2 : index
    %c0_25 = arith.constant 0 : index
    %23 = vector.load %arg9[%c0_24, %c2, %c0_25] : memref<18x18x4xf32, #tpu.memory_space<vmem>>, vector<16x16x4xf32>
    %24 = vector.shape_cast %23 : vector<16x16x4xf32> to vector<256x4xf32>
    %25 = arith.truncf %24 : vector<256x4xf32> to vector<256x4xbf16>
    %c2_26 = arith.constant 2 : index
    %c0_27 = arith.constant 0 : index
    %c0_28 = arith.constant 0 : index
    %26 = vector.load %arg2[%c2_26, %c0_27, %c0_28] : memref<9x4x4xbf16, #tpu.memory_space<vmem>>, vector<1x4x4xbf16>
    %27 = vector.shape_cast %26 : vector<1x4x4xbf16> to vector<4x4xbf16>
    %cst_29 = arith.constant dense<0.000000e+00> : vector<256x4xf32>
    %28 = tpu.matmul %25, %27, %cst_29 {dimension_numbers = #tpu.dot_dimension_numbers<[1], [0], [0], [1], [0, 0, 1, 1], [], []>} : vector<256x4xbf16>, vector<4x4xbf16>, vector<256x4xf32> -> vector<256x4xf32>
    %29 = arith.addf %22, %28 : vector<256x4xf32>
    %c1_30 = arith.constant 1 : index
    %c0_31 = arith.constant 0 : index
    %c0_32 = arith.constant 0 : index
    %30 = vector.load %arg9[%c1_30, %c0_31, %c0_32] : memref<18x18x4xf32, #tpu.memory_space<vmem>>, vector<16x16x4xf32>
    %31 = vector.shape_cast %30 : vector<16x16x4xf32> to vector<256x4xf32>
    %32 = arith.truncf %31 : vector<256x4xf32> to vector<256x4xbf16>
    %c3 = arith.constant 3 : index
    %c0_33 = arith.constant 0 : index
    %c0_34 = arith.constant 0 : index
    %33 = vector.load %arg2[%c3, %c0_33, %c0_34] : memref<9x4x4xbf16, #tpu.memory_space<vmem>>, vector<1x4x4xbf16>
    %34 = vector.shape_cast %33 : vector<1x4x4xbf16> to vector<4x4xbf16>
    %cst_35 = arith.constant dense<0.000000e+00> : vector<256x4xf32>
    %35 = tpu.matmul %32, %34, %cst_35 {dimension_numbers = #tpu.dot_dimension_numbers<[1], [0], [0], [1], [0, 0, 1, 1], [], []>} : vector<256x4xbf16>, vector<4x4xbf16>, vector<256x4xf32> -> vector<256x4xf32>
    %36 = arith.addf %29, %35 : vector<256x4xf32>
    %c1_36 = arith.constant 1 : index
    %c1_37 = arith.constant 1 : index
    %c0_38 = arith.constant 0 : index
    %37 = vector.load %arg9[%c1_36, %c1_37, %c0_38] : memref<18x18x4xf32, #tpu.memory_space<vmem>>, vector<16x16x4xf32>
    %38 = vector.shape_cast %37 : vector<16x16x4xf32> to vector<256x4xf32>
    %39 = arith.truncf %38 : vector<256x4xf32> to vector<256x4xbf16>
    %c4 = arith.constant 4 : index
    %c0_39 = arith.constant 0 : index
    %c0_40 = arith.constant 0 : index
    %40 = vector.load %arg2[%c4, %c0_39, %c0_40] : memref<9x4x4xbf16, #tpu.memory_space<vmem>>, vector<1x4x4xbf16>
    %41 = vector.shape_cast %40 : vector<1x4x4xbf16> to vector<4x4xbf16>
    %cst_41 = arith.constant dense<0.000000e+00> : vector<256x4xf32>
    %42 = tpu.matmul %39, %41, %cst_41 {dimension_numbers = #tpu.dot_dimension_numbers<[1], [0], [0], [1], [0, 0, 1, 1], [], []>} : vector<256x4xbf16>, vector<4x4xbf16>, vector<256x4xf32> -> vector<256x4xf32>
    %43 = arith.addf %36, %42 : vector<256x4xf32>
    %c1_42 = arith.constant 1 : index
    %c2_43 = arith.constant 2 : index
    %c0_44 = arith.constant 0 : index
    %44 = vector.load %arg9[%c1_42, %c2_43, %c0_44] : memref<18x18x4xf32, #tpu.memory_space<vmem>>, vector<16x16x4xf32>
    %45 = vector.shape_cast %44 : vector<16x16x4xf32> to vector<256x4xf32>
    %46 = arith.truncf %45 : vector<256x4xf32> to vector<256x4xbf16>
    %c5 = arith.constant 5 : index
    %c0_45 = arith.constant 0 : index
    %c0_46 = arith.constant 0 : index
    %47 = vector.load %arg2[%c5, %c0_45, %c0_46] : memref<9x4x4xbf16, #tpu.memory_space<vmem>>, vector<1x4x4xbf16>
    %48 = vector.shape_cast %47 : vector<1x4x4xbf16> to vector<4x4xbf16>
    %cst_47 = arith.constant dense<0.000000e+00> : vector<256x4xf32>
    %49 = tpu.matmul %46, %48, %cst_47 {dimension_numbers = #tpu.dot_dimension_numbers<[1], [0], [0], [1], [0, 0, 1, 1], [], []>} : vector<256x4xbf16>, vector<4x4xbf16>, vector<256x4xf32> -> vector<256x4xf32>
    %50 = arith.addf %43, %49 : vector<256x4xf32>
    %c2_48 = arith.constant 2 : index
    %c0_49 = arith.constant 0 : index
    %c0_50 = arith.constant 0 : index
    %51 = vector.load %arg9[%c2_48, %c0_49, %c0_50] : memref<18x18x4xf32, #tpu.memory_space<vmem>>, vector<16x16x4xf32>
    %52 = vector.shape_cast %51 : vector<16x16x4xf32> to vector<256x4xf32>
    %53 = arith.truncf %52 : vector<256x4xf32> to vector<256x4xbf16>
    %c6 = arith.constant 6 : index
    %c0_51 = arith.constant 0 : index
    %c0_52 = arith.constant 0 : index
    %54 = vector.load %arg2[%c6, %c0_51, %c0_52] : memref<9x4x4xbf16, #tpu.memory_space<vmem>>, vector<1x4x4xbf16>
    %55 = vector.shape_cast %54 : vector<1x4x4xbf16> to vector<4x4xbf16>
    %cst_53 = arith.constant dense<0.000000e+00> : vector<256x4xf32>
    %56 = tpu.matmul %53, %55, %cst_53 {dimension_numbers = #tpu.dot_dimension_numbers<[1], [0], [0], [1], [0, 0, 1, 1], [], []>} : vector<256x4xbf16>, vector<4x4xbf16>, vector<256x4xf32> -> vector<256x4xf32>
    %57 = arith.addf %50, %56 : vector<256x4xf32>
    %c2_54 = arith.constant 2 : index
    %c1_55 = arith.constant 1 : index
    %c0_56 = arith.constant 0 : index
    %58 = vector.load %arg9[%c2_54, %c1_55, %c0_56] : memref<18x18x4xf32, #tpu.memory_space<vmem>>, vector<16x16x4xf32>
    %59 = vector.shape_cast %58 : vector<16x16x4xf32> to vector<256x4xf32>
    %60 = arith.truncf %59 : vector<256x4xf32> to vector<256x4xbf16>
    %c7 = arith.constant 7 : index
    %c0_57 = arith.constant 0 : index
    %c0_58 = arith.constant 0 : index
    %61 = vector.load %arg2[%c7, %c0_57, %c0_58] : memref<9x4x4xbf16, #tpu.memory_space<vmem>>, vector<1x4x4xbf16>
    %62 = vector.shape_cast %61 : vector<1x4x4xbf16> to vector<4x4xbf16>
    %cst_59 = arith.constant dense<0.000000e+00> : vector<256x4xf32>
    %63 = tpu.matmul %60, %62, %cst_59 {dimension_numbers = #tpu.dot_dimension_numbers<[1], [0], [0], [1], [0, 0, 1, 1], [], []>} : vector<256x4xbf16>, vector<4x4xbf16>, vector<256x4xf32> -> vector<256x4xf32>
    %64 = arith.addf %57, %63 : vector<256x4xf32>
    %c2_60 = arith.constant 2 : index
    %c2_61 = arith.constant 2 : index
    %c0_62 = arith.constant 0 : index
    %65 = vector.load %arg9[%c2_60, %c2_61, %c0_62] : memref<18x18x4xf32, #tpu.memory_space<vmem>>, vector<16x16x4xf32>
    %66 = vector.shape_cast %65 : vector<16x16x4xf32> to vector<256x4xf32>
    %67 = arith.truncf %66 : vector<256x4xf32> to vector<256x4xbf16>
    %c8 = arith.constant 8 : index
    %c0_63 = arith.constant 0 : index
    %c0_64 = arith.constant 0 : index
    %68 = vector.load %arg2[%c8, %c0_63, %c0_64] : memref<9x4x4xbf16, #tpu.memory_space<vmem>>, vector<1x4x4xbf16>
    %69 = vector.shape_cast %68 : vector<1x4x4xbf16> to vector<4x4xbf16>
    %cst_65 = arith.constant dense<0.000000e+00> : vector<256x4xf32>
    %70 = tpu.matmul %67, %69, %cst_65 {dimension_numbers = #tpu.dot_dimension_numbers<[1], [0], [0], [1], [0, 0, 1, 1], [], []>} : vector<256x4xbf16>, vector<4x4xbf16>, vector<256x4xf32> -> vector<256x4xf32>
    %71 = arith.addf %64, %70 : vector<256x4xf32>
    %c0_66 = arith.constant 0 : index
    %c0_67 = arith.constant 0 : index
    %72 = vector.load %arg3[%c0_66, %c0_67] : memref<1x4xf32, #tpu.memory_space<vmem>>, vector<1x4xf32>
    %73 = vector.broadcast %72 : vector<1x4xf32> to vector<256x4xf32>
    %74 = arith.addf %71, %73 : vector<256x4xf32>
    %cst_68 = arith.constant 0.000000e+00 : f32
    %75 = vector.broadcast %cst_68 : f32 to vector<256x4xf32>
    %76 = arith.maximumf %74, %75 : vector<256x4xf32>
    %77 = vector.shape_cast %76 : vector<256x4xf32> to vector<16x16x4xf32>
    %c1_69 = arith.constant 1 : index
    %c1_70 = arith.constant 1 : index
    %c0_71 = arith.constant 0 : index
    %78 = vector.load %arg10[%c1_69, %c1_70, %c0_71] : memref<18x18x4xf32, #tpu.memory_space<vmem>>, vector<16x16x4xf32>
    tpu.vector_store %arg10[%c1_69, %c1_70, %c0_71], %77 {strides = array<i32>} : memref<18x18x4xf32, #tpu.memory_space<vmem>>, vector<16x16x4xf32>,
    %cst_72 = arith.constant 0.000000e+00 : f32
    %79 = vector.broadcast %cst_72 : f32 to vector<256x8xf32>
    %c0_73 = arith.constant 0 : index
    %c0_74 = arith.constant 0 : index
    %c0_75 = arith.constant 0 : index
    %80 = vector.load %arg10[%c0_73, %c0_74, %c0_75] : memref<18x18x4xf32, #tpu.memory_space<vmem>>, vector<16x16x4xf32>
    %81 = vector.shape_cast %80 : vector<16x16x4xf32> to vector<256x4xf32>
    %82 = arith.truncf %81 : vector<256x4xf32> to vector<256x4xbf16>
    %c0_76 = arith.constant 0 : index
    %c0_77 = arith.constant 0 : index
    %c0_78 = arith.constant 0 : index
    %83 = vector.load %arg4[%c0_76, %c0_77, %c0_78] : memref<9x4x8xbf16, #tpu.memory_space<vmem>>, vector<1x4x8xbf16>
    %84 = vector.shape_cast %83 : vector<1x4x8xbf16> to vector<4x8xbf16>
    %cst_79 = arith.constant dense<0.000000e+00> : vector<256x8xf32>
    %85 = tpu.matmul %82, %84, %cst_79 {dimension_numbers = #tpu.dot_dimension_numbers<[1], [0], [0], [1], [0, 0, 1, 1], [], []>} : vector<256x4xbf16>, vector<4x8xbf16>, vector<256x8xf32> -> vector<256x8xf32>
    %86 = arith.addf %79, %85 : vector<256x8xf32>
    %c0_80 = arith.constant 0 : index
    %c1_81 = arith.constant 1 : index
    %c0_82 = arith.constant 0 : index
    %87 = vector.load %arg10[%c0_80, %c1_81, %c0_82] : memref<18x18x4xf32, #tpu.memory_space<vmem>>, vector<16x16x4xf32>
    %88 = vector.shape_cast %87 : vector<16x16x4xf32> to vector<256x4xf32>
    %89 = arith.truncf %88 : vector<256x4xf32> to vector<256x4xbf16>
    %c1_83 = arith.constant 1 : index
    %c0_84 = arith.constant 0 : index
    %c0_85 = arith.constant 0 : index
    %90 = vector.load %arg4[%c1_83, %c0_84, %c0_85] : memref<9x4x8xbf16, #tpu.memory_space<vmem>>, vector<1x4x8xbf16>
    %91 = vector.shape_cast %90 : vector<1x4x8xbf16> to vector<4x8xbf16>
    %cst_86 = arith.constant dense<0.000000e+00> : vector<256x8xf32>
    %92 = tpu.matmul %89, %91, %cst_86 {dimension_numbers = #tpu.dot_dimension_numbers<[1], [0], [0], [1], [0, 0, 1, 1], [], []>} : vector<256x4xbf16>, vector<4x8xbf16>, vector<256x8xf32> -> vector<256x8xf32>
    %93 = arith.addf %86, %92 : vector<256x8xf32>
    %c0_87 = arith.constant 0 : index
    %c2_88 = arith.constant 2 : index
    %c0_89 = arith.constant 0 : index
    %94 = vector.load %arg10[%c0_87, %c2_88, %c0_89] : memref<18x18x4xf32, #tpu.memory_space<vmem>>, vector<16x16x4xf32>
    %95 = vector.shape_cast %94 : vector<16x16x4xf32> to vector<256x4xf32>
    %96 = arith.truncf %95 : vector<256x4xf32> to vector<256x4xbf16>
    %c2_90 = arith.constant 2 : index
    %c0_91 = arith.constant 0 : index
    %c0_92 = arith.constant 0 : index
    %97 = vector.load %arg4[%c2_90, %c0_91, %c0_92] : memref<9x4x8xbf16, #tpu.memory_space<vmem>>, vector<1x4x8xbf16>
    %98 = vector.shape_cast %97 : vector<1x4x8xbf16> to vector<4x8xbf16>
    %cst_93 = arith.constant dense<0.000000e+00> : vector<256x8xf32>
    %99 = tpu.matmul %96, %98, %cst_93 {dimension_numbers = #tpu.dot_dimension_numbers<[1], [0], [0], [1], [0, 0, 1, 1], [], []>} : vector<256x4xbf16>, vector<4x8xbf16>, vector<256x8xf32> -> vector<256x8xf32>
    %100 = arith.addf %93, %99 : vector<256x8xf32>
    %c1_94 = arith.constant 1 : index
    %c0_95 = arith.constant 0 : index
    %c0_96 = arith.constant 0 : index
    %101 = vector.load %arg10[%c1_94, %c0_95, %c0_96] : memref<18x18x4xf32, #tpu.memory_space<vmem>>, vector<16x16x4xf32>
    %102 = vector.shape_cast %101 : vector<16x16x4xf32> to vector<256x4xf32>
    %103 = arith.truncf %102 : vector<256x4xf32> to vector<256x4xbf16>
    %c3_97 = arith.constant 3 : index
    %c0_98 = arith.constant 0 : index
    %c0_99 = arith.constant 0 : index
    %104 = vector.load %arg4[%c3_97, %c0_98, %c0_99] : memref<9x4x8xbf16, #tpu.memory_space<vmem>>, vector<1x4x8xbf16>
    %105 = vector.shape_cast %104 : vector<1x4x8xbf16> to vector<4x8xbf16>
    %cst_100 = arith.constant dense<0.000000e+00> : vector<256x8xf32>
    %106 = tpu.matmul %103, %105, %cst_100 {dimension_numbers = #tpu.dot_dimension_numbers<[1], [0], [0], [1], [0, 0, 1, 1], [], []>} : vector<256x4xbf16>, vector<4x8xbf16>, vector<256x8xf32> -> vector<256x8xf32>
    %107 = arith.addf %100, %106 : vector<256x8xf32>
    %c1_101 = arith.constant 1 : index
    %c1_102 = arith.constant 1 : index
    %c0_103 = arith.constant 0 : index
    %108 = vector.load %arg10[%c1_101, %c1_102, %c0_103] : memref<18x18x4xf32, #tpu.memory_space<vmem>>, vector<16x16x4xf32>
    %109 = vector.shape_cast %108 : vector<16x16x4xf32> to vector<256x4xf32>
    %110 = arith.truncf %109 : vector<256x4xf32> to vector<256x4xbf16>
    %c4_104 = arith.constant 4 : index
    %c0_105 = arith.constant 0 : index
    %c0_106 = arith.constant 0 : index
    %111 = vector.load %arg4[%c4_104, %c0_105, %c0_106] : memref<9x4x8xbf16, #tpu.memory_space<vmem>>, vector<1x4x8xbf16>
    %112 = vector.shape_cast %111 : vector<1x4x8xbf16> to vector<4x8xbf16>
    %cst_107 = arith.constant dense<0.000000e+00> : vector<256x8xf32>
    %113 = tpu.matmul %110, %112, %cst_107 {dimension_numbers = #tpu.dot_dimension_numbers<[1], [0], [0], [1], [0, 0, 1, 1], [], []>} : vector<256x4xbf16>, vector<4x8xbf16>, vector<256x8xf32> -> vector<256x8xf32>
    %114 = arith.addf %107, %113 : vector<256x8xf32>
    %c1_108 = arith.constant 1 : index
    %c2_109 = arith.constant 2 : index
    %c0_110 = arith.constant 0 : index
    %115 = vector.load %arg10[%c1_108, %c2_109, %c0_110] : memref<18x18x4xf32, #tpu.memory_space<vmem>>, vector<16x16x4xf32>
    %116 = vector.shape_cast %115 : vector<16x16x4xf32> to vector<256x4xf32>
    %117 = arith.truncf %116 : vector<256x4xf32> to vector<256x4xbf16>
    %c5_111 = arith.constant 5 : index
    %c0_112 = arith.constant 0 : index
    %c0_113 = arith.constant 0 : index
    %118 = vector.load %arg4[%c5_111, %c0_112, %c0_113] : memref<9x4x8xbf16, #tpu.memory_space<vmem>>, vector<1x4x8xbf16>
    %119 = vector.shape_cast %118 : vector<1x4x8xbf16> to vector<4x8xbf16>
    %cst_114 = arith.constant dense<0.000000e+00> : vector<256x8xf32>
    %120 = tpu.matmul %117, %119, %cst_114 {dimension_numbers = #tpu.dot_dimension_numbers<[1], [0], [0], [1], [0, 0, 1, 1], [], []>} : vector<256x4xbf16>, vector<4x8xbf16>, vector<256x8xf32> -> vector<256x8xf32>
    %121 = arith.addf %114, %120 : vector<256x8xf32>
    %c2_115 = arith.constant 2 : index
    %c0_116 = arith.constant 0 : index
    %c0_117 = arith.constant 0 : index
    %122 = vector.load %arg10[%c2_115, %c0_116, %c0_117] : memref<18x18x4xf32, #tpu.memory_space<vmem>>, vector<16x16x4xf32>
    %123 = vector.shape_cast %122 : vector<16x16x4xf32> to vector<256x4xf32>
    %124 = arith.truncf %123 : vector<256x4xf32> to vector<256x4xbf16>
    %c6_118 = arith.constant 6 : index
    %c0_119 = arith.constant 0 : index
    %c0_120 = arith.constant 0 : index
    %125 = vector.load %arg4[%c6_118, %c0_119, %c0_120] : memref<9x4x8xbf16, #tpu.memory_space<vmem>>, vector<1x4x8xbf16>
    %126 = vector.shape_cast %125 : vector<1x4x8xbf16> to vector<4x8xbf16>
    %cst_121 = arith.constant dense<0.000000e+00> : vector<256x8xf32>
    %127 = tpu.matmul %124, %126, %cst_121 {dimension_numbers = #tpu.dot_dimension_numbers<[1], [0], [0], [1], [0, 0, 1, 1], [], []>} : vector<256x4xbf16>, vector<4x8xbf16>, vector<256x8xf32> -> vector<256x8xf32>
    %128 = arith.addf %121, %127 : vector<256x8xf32>
    %c2_122 = arith.constant 2 : index
    %c1_123 = arith.constant 1 : index
    %c0_124 = arith.constant 0 : index
    %129 = vector.load %arg10[%c2_122, %c1_123, %c0_124] : memref<18x18x4xf32, #tpu.memory_space<vmem>>, vector<16x16x4xf32>
    %130 = vector.shape_cast %129 : vector<16x16x4xf32> to vector<256x4xf32>
    %131 = arith.truncf %130 : vector<256x4xf32> to vector<256x4xbf16>
    %c7_125 = arith.constant 7 : index
    %c0_126 = arith.constant 0 : index
    %c0_127 = arith.constant 0 : index
    %132 = vector.load %arg4[%c7_125, %c0_126, %c0_127] : memref<9x4x8xbf16, #tpu.memory_space<vmem>>, vector<1x4x8xbf16>
    %133 = vector.shape_cast %132 : vector<1x4x8xbf16> to vector<4x8xbf16>
    %cst_128 = arith.constant dense<0.000000e+00> : vector<256x8xf32>
    %134 = tpu.matmul %131, %133, %cst_128 {dimension_numbers = #tpu.dot_dimension_numbers<[1], [0], [0], [1], [0, 0, 1, 1], [], []>} : vector<256x4xbf16>, vector<4x8xbf16>, vector<256x8xf32> -> vector<256x8xf32>
    %135 = arith.addf %128, %134 : vector<256x8xf32>
    %c2_129 = arith.constant 2 : index
    %c2_130 = arith.constant 2 : index
    %c0_131 = arith.constant 0 : index
    %136 = vector.load %arg10[%c2_129, %c2_130, %c0_131] : memref<18x18x4xf32, #tpu.memory_space<vmem>>, vector<16x16x4xf32>
    %137 = vector.shape_cast %136 : vector<16x16x4xf32> to vector<256x4xf32>
    %138 = arith.truncf %137 : vector<256x4xf32> to vector<256x4xbf16>
    %c8_132 = arith.constant 8 : index
    %c0_133 = arith.constant 0 : index
    %c0_134 = arith.constant 0 : index
    %139 = vector.load %arg4[%c8_132, %c0_133, %c0_134] : memref<9x4x8xbf16, #tpu.memory_space<vmem>>, vector<1x4x8xbf16>
    %140 = vector.shape_cast %139 : vector<1x4x8xbf16> to vector<4x8xbf16>
    %cst_135 = arith.constant dense<0.000000e+00> : vector<256x8xf32>
    %141 = tpu.matmul %138, %140, %cst_135 {dimension_numbers = #tpu.dot_dimension_numbers<[1], [0], [0], [1], [0, 0, 1, 1], [], []>} : vector<256x4xbf16>, vector<4x8xbf16>, vector<256x8xf32> -> vector<256x8xf32>
    %142 = arith.addf %135, %141 : vector<256x8xf32>
    %c0_136 = arith.constant 0 : index
    %c0_137 = arith.constant 0 : index
    %143 = vector.load %arg5[%c0_136, %c0_137] : memref<1x8xf32, #tpu.memory_space<vmem>>, vector<1x8xf32>
    %144 = vector.broadcast %143 : vector<1x8xf32> to vector<256x8xf32>
    %145 = arith.addf %142, %144 : vector<256x8xf32>
    %146 = vector.extract_strided_slice %2 {offsets = [1, 1, 0], sizes = [16, 16, 4], strides = [1, 1, 1]} : vector<18x18x4xf32> to vector<16x16x4xf32>
    %147 = vector.shape_cast %146 : vector<16x16x4xf32> to vector<256x4xf32>
    %148 = arith.truncf %147 : vector<256x4xf32> to vector<256x4xbf16>
    %c0_138 = arith.constant 0 : index
    %c0_139 = arith.constant 0 : index
    %149 = vector.load %arg6[%c0_138, %c0_139] : memref<4x8xbf16, #tpu.memory_space<vmem>>, vector<4x8xbf16>
    %cst_140 = arith.constant dense<0.000000e+00> : vector<256x8xf32>
    %150 = tpu.matmul %148, %149, %cst_140 {dimension_numbers = #tpu.dot_dimension_numbers<[1], [0], [0], [1], [0, 0, 1, 1], [], []>} : vector<256x4xbf16>, vector<4x8xbf16>, vector<256x8xf32> -> vector<256x8xf32>
    %c0_141 = arith.constant 0 : index
    %c0_142 = arith.constant 0 : index
    %151 = vector.load %arg7[%c0_141, %c0_142] : memref<1x8xf32, #tpu.memory_space<vmem>>, vector<1x8xf32>
    %152 = vector.broadcast %151 : vector<1x8xf32> to vector<256x8xf32>
    %153 = arith.addf %150, %152 : vector<256x8xf32>
    %154 = arith.addf %145, %153 : vector<256x8xf32>
    %155 = vector.shape_cast %154 : vector<256x8xf32> to vector<8x2x16x8xf32>
    %156 = vector.extract_strided_slice %155 {offsets = [0, 0, 0, 0], sizes = [8, 1, 16, 8], strides = [1, 1, 1, 1]} : vector<8x2x16x8xf32> to vector<8x1x16x8xf32>
    %157 = vector.shape_cast %156 : vector<8x1x16x8xf32> to vector<8x16x8xf32>
    %158 = vector.extract_strided_slice %155 {offsets = [0, 1, 0, 0], sizes = [8, 1, 16, 8], strides = [1, 1, 1, 1]} : vector<8x2x16x8xf32> to vector<8x1x16x8xf32>
    %159 = vector.shape_cast %158 : vector<8x1x16x8xf32> to vector<8x16x8xf32>
    %160 = arith.addf %157, %159 : vector<8x16x8xf32>
    %161 = vector.shape_cast %160 : vector<8x16x8xf32> to vector<8x8x2x8xf32>
    %162 = vector.extract_strided_slice %161 {offsets = [0, 0, 0, 0], sizes = [8, 8, 1, 8], strides = [1, 1, 1, 1]} : vector<8x8x2x8xf32> to vector<8x8x1x8xf32>
    %163 = vector.shape_cast %162 : vector<8x8x1x8xf32> to vector<8x8x8xf32>
    %164 = vector.extract_strided_slice %161 {offsets = [0, 0, 1, 0], sizes = [8, 8, 1, 8], strides = [1, 1, 1, 1]} : vector<8x8x2x8xf32> to vector<8x8x1x8xf32>
    %165 = vector.shape_cast %164 : vector<8x8x1x8xf32> to vector<8x8x8xf32>
    %166 = arith.addf %163, %165 : vector<8x8x8xf32>
    %cst_143 = arith.constant 2.500000e-01 : f32
    %167 = vector.broadcast %cst_143 : f32 to vector<8x8x8xf32>
    %168 = arith.mulf %167, %166 : vector<8x8x8xf32>
    %169 = vector.shape_cast %168 : vector<8x8x8xf32> to vector<64x8xf32>
    %170 = tpu.transpose %169, [1, 0] : vector<64x8xf32> -> vector<8x64xf32>
    %c0_144 = arith.constant 0 : index
    %c0_145 = arith.constant 0 : index
    %c0_146 = arith.constant 0 : index
    %171 = vector.load %arg8[%c0_144, %c0_145, %c0_146] : memref<1x8x64xf32, #tpu.memory_space<vmem>>, vector<1x8x64xf32>
    %172 = vector.shape_cast %171 : vector<1x8x64xf32> to vector<8x64xf32>
    %173 = vector.shape_cast %170 : vector<8x64xf32> to vector<1x8x64xf32>
    tpu.vector_store %arg8[%c0_144, %c0_145, %c0_146], %173 {strides = array<i32>} : memref<1x8x64xf32, #tpu.memory_space<vmem>>, vector<1x8x64xf32>,
    return
  }
  func.func @transform_0(%arg0: i32) -> (i32, i32, i32, i32) {
    %c0_i32 = arith.constant 0 : i32
    %c0_i32_0 = arith.constant 0 : i32
    %c0_i32_1 = arith.constant 0 : i32
    %c0_i32_2 = arith.constant 0 : i32
    return %arg0, %c0_i32, %c0_i32_0, %c0_i32_1 : i32, i32, i32, i32
  }
  func.func @transform_1(%arg0: i32) -> (i32, i32, i32) {
    %c0_i32 = arith.constant 0 : i32
    %c0_i32_0 = arith.constant 0 : i32
    %c0_i32_1 = arith.constant 0 : i32
    %c0_i32_2 = arith.constant 0 : i32
    return %c0_i32, %c0_i32_0, %c0_i32_1 : i32, i32, i32
  }
  func.func @transform_2(%arg0: i32) -> (i32, i32) {
    %c0_i32 = arith.constant 0 : i32
    %c0_i32_0 = arith.constant 0 : i32
    %c0_i32_1 = arith.constant 0 : i32
    return %c0_i32, %c0_i32_0 : i32, i32
  }
  func.func @transform_3(%arg0: i32) -> (i32, i32, i32) {
    %c0_i32 = arith.constant 0 : i32
    %c0_i32_0 = arith.constant 0 : i32
    %c0_i32_1 = arith.constant 0 : i32
    %c0_i32_2 = arith.constant 0 : i32
    return %c0_i32, %c0_i32_0, %c0_i32_1 : i32, i32, i32
  }
  func.func @transform_4(%arg0: i32) -> (i32, i32) {
    %c0_i32 = arith.constant 0 : i32
    %c0_i32_0 = arith.constant 0 : i32
    %c0_i32_1 = arith.constant 0 : i32
    return %c0_i32, %c0_i32_0 : i32, i32
  }
  func.func @transform_5(%arg0: i32) -> (i32, i32) {
    %c0_i32 = arith.constant 0 : i32
    %c0_i32_0 = arith.constant 0 : i32
    %c0_i32_1 = arith.constant 0 : i32
    return %c0_i32, %c0_i32_0 : i32, i32
  }
  func.func @transform_6(%arg0: i32) -> (i32, i32) {
    %c0_i32 = arith.constant 0 : i32
    %c0_i32_0 = arith.constant 0 : i32
    %c0_i32_1 = arith.constant 0 : i32
    return %c0_i32, %c0_i32_0 : i32, i32
  }
  func.func @transform_7(%arg0: i32) -> (i32, i32, i32) {
    %c0_i32 = arith.constant 0 : i32
    %c0_i32_0 = arith.constant 0 : i32
    %c0_i32_1 = arith.constant 0 : i32
    return %arg0, %c0_i32, %c0_i32_0 : i32, i32, i32
  }
}

</mosaic_0001>

<llo_original>
// kernel: tpu_custom_call.1
$region0: #{tpu_custom_call.1}
  #allocation0 [shape = 'u32[]', space=smem, size = 0x4, offset = 0x4, fixed_abs, tag = 'smem constant byte address 0x4 - core index']
  #allocation1 [shape = 'u32[72,128]{1,0:T(1,128)}', space=vmem, size = 0x9000, scoped, tag = 'internal scratch']
  #allocation2 [shape = 'f32[18,18,4]{2,1,0:T(8,128)}', space=vmem, size = 0x36000, scoped, tag = 'scratch operand']
  #allocation3 [shape = 'f32[18,18,4]{2,1,0:T(8,128)}', space=vmem, size = 0x36000, scoped, tag = 'scratch operand']
  %s0 = inlined_call_operand.vmem [shape: bf16[2,18,18,4], index: 0, kind: input, shape index: {}]
  %s1 = inlined_call_operand.vmem [shape: bf16[9,4,4], index: 1, kind: input, shape index: {}]
  %s2 = inlined_call_operand.vmem [shape: f32[1,4], index: 2, kind: input, shape index: {}]
  %s3 = inlined_call_operand.vmem [shape: bf16[9,4,8], index: 3, kind: input, shape index: {}]
  %s4 = inlined_call_operand.vmem [shape: f32[1,8], index: 4, kind: input, shape index: {}]
  %s5 = inlined_call_operand.vmem [shape: bf16[4,8], index: 5, kind: input, shape index: {}]
  %s6 = inlined_call_operand.vmem [shape: f32[1,8], index: 6, kind: input, shape index: {}]
  %s7 = inlined_call_operand.hbm [shape: f32[2,8,64], index: 7, kind: output, shape index: {}]
  %s8 = sld [smem:[#allocation0]]
  $region61: #{tpu_custom_call.1} parent=0
    _
  %s10 = ssub.s32 1, %s8
  %s11 = scalar_select 0, %s10, %s8
  $region1: #{tpu_custom_call.1} parent=0
    #allocation4 [shape = 'u8[8192]{0}', space=vmem, size = 0x2000, scoped, tag = 'output window, operand 0']
    #allocation5 [shape = 's32[2]{0}', space=sflag, size = 0x8, scoped, tag = 'scoped memory for tpu_custom_call.1']
    %12 = vsyncpa [#allocation5], 0
    %s13 = scalar_lea.sflag [#allocation5], 1
    %14 = vsyncpa %s13, 0
    loop: start=0, step=1, limit=4
    $region2: #{tpu_custom_call.1} parent=1 // loop_pre_header
      _
    $region3: #{tpu_custom_call.1} parent=1 // loop_header
      %s16 = sphi 0, %s20
      %p17 = scmp.ge.s32.totalorder %s16, 4
      %s26 = sphi 0, %s28
      %s29 = sphi 0, %s26
      %s30 = sphi 0, %s29
      %s46 = sphi 0, %s30
      %s50 = sphi 0, %s50
      %s52 = sphi 0, %s50
      %s53 = sphi 0, %s52
      %s67 = sphi 0, %s53
      %s71 = sphi 0, %s71
      %s73 = sphi 0, %s71
      %s74 = sphi 0, %s73
      %s88 = sphi 0, %s74
      %s92 = sphi 0, %s92
      %s94 = sphi 0, %s92
      %s95 = sphi 0, %s94
      %s109 = sphi 0, %s95
      %s113 = sphi 0, %s113
      %s115 = sphi 0, %s113
      %s116 = sphi 0, %s115
      %s130 = sphi 0, %s116
      %s134 = sphi 0, %s134
      %s136 = sphi 0, %s134
      %s137 = sphi 0, %s136
      %s151 = sphi 0, %s137
      %s155 = sphi 0, %s155
      %s157 = sphi 0, %s155
      %s158 = sphi 0, %s157
      %s172 = sphi 0, %s158
      %s178 = sphi 0, %s180
      %s181 = sphi 0, %s178
      %s182 = sphi 0, %s181
      %s198 = sphi 0, %s182
    $region4: #{tpu_custom_call.1} parent=1 // loop_header_branch
      %19 = sbr.rel (%p17) target = $region8
    $region5: #{tpu_custom_call.1} parent=1 // loop_body
      %s21 = ssub.s32 %s16, 1
      %s22 = ssub.s32 %s16, 2
      %s23 = sadd.s32 %s16, 1
      %s24 = ssub.s32 %s16, %s23
      %p25 = scmp.eq.s32.totalorder %s24, 0
      %s27 = sadd.s32 %s26, 1
      %s28 = scalar_select %p25, %s26, %s27
      %p31 = pneg %p25
      %p32 = scmp.eq.s32.totalorder %s16, 1
      %p33 = por %p31, %p32
      %p34 = scmp.ne.s32.totalorder %s26, %s29
      %p35 = scmp.eq.s32.totalorder %s16, 0
      %p36 = por %p34, %p35
      %p37 = scmp.ne.s32.totalorder %s26, %s29
      %p38 = scmp.eq.s32.totalorder %s21, 1
      %p39 = por %p37, %p38
      %p40 = scmp.ne.s32.totalorder %s29, %s30
      %p41 = scmp.eq.s32.totalorder %s21, 0
      %p42 = por %p40, %p41
      %p43 = scmp.ne.s32.totalorder %s29, %s30
      %p44 = scmp.eq.s32.totalorder %s22, 1
      %p45 = por %p43, %p44
      %p47 = scmp.ne.s32.totalorder %s30, %s46
      %p48 = scmp.eq.s32.totalorder %s22, 0
      %p49 = por %p47, %p48
      %s51 = sadd.s32 %s50, 1
      %p54 = scmp.eq.s32.totalorder %s16, 1
      %p55 = scmp.ne.s32.totalorder %s50, %s52
      %p56 = scmp.eq.s32.totalorder %s16, 0
      %p57 = por %p55, %p56
      %p58 = scmp.ne.s32.totalorder %s50, %s52
      %p59 = scmp.eq.s32.totalorder %s21, 1
      %p60 = por %p58, %p59
      %p61 = scmp.ne.s32.totalorder %s52, %s53
      %p62 = scmp.eq.s32.totalorder %s21, 0
      %p63 = por %p61, %p62
      %p64 = scmp.ne.s32.totalorder %s52, %s53
      %p65 = scmp.eq.s32.totalorder %s22, 1
      %p66 = por %p64, %p65
      %p68 = scmp.ne.s32.totalorder %s53, %s67
      %p69 = scmp.eq.s32.totalorder %s22, 0
      %p70 = por %p68, %p69
      %s72 = sadd.s32 %s71, 1
      %p75 = scmp.eq.s32.totalorder %s16, 1
      %p76 = scmp.ne.s32.totalorder %s71, %s73
      %p77 = scmp.eq.s32.totalorder %s16, 0
      %p78 = por %p76, %p77
      %p79 = scmp.ne.s32.totalorder %s71, %s73
      %p80 = scmp.eq.s32.totalorder %s21, 1
      %p81 = por %p79, %p80
      %p82 = scmp.ne.s32.totalorder %s73, %s74
      %p83 = scmp.eq.s32.totalorder %s21, 0
      %p84 = por %p82, %p83
      %p85 = scmp.ne.s32.totalorder %s73, %s74
      %p86 = scmp.eq.s32.totalorder %s22, 1
      %p87 = por %p85, %p86
      %p89 = scmp.ne.s32.totalorder %s74, %s88
      %p90 = scmp.eq.s32.totalorder %s22, 0
      %p91 = por %p89, %p90
      %s93 = sadd.s32 %s92, 1
      %p96 = scmp.eq.s32.totalorder %s16, 1
      %p97 = scmp.ne.s32.totalorder %s92, %s94
      %p98 = scmp.eq.s32.totalorder %s16, 0
      %p99 = por %p97, %p98
      %p100 = scmp.ne.s32.totalorder %s92, %s94
      %p101 = scmp.eq.s32.totalorder %s21, 1
      %p102 = por %p100, %p101
      %p103 = scmp.ne.s32.totalorder %s94, %s95
      %p104 = scmp.eq.s32.totalorder %s21, 0
      %p105 = por %p103, %p104
      %p106 = scmp.ne.s32.totalorder %s94, %s95
      %p107 = scmp.eq.s32.totalorder %s22, 1
      %p108 = por %p106, %p107
      %p110 = scmp.ne.s32.totalorder %s95, %s109
      %p111 = scmp.eq.s32.totalorder %s22, 0
      %p112 = por %p110, %p111
      %s114 = sadd.s32 %s113, 1
      %p117 = scmp.eq.s32.totalorder %s16, 1
      %p118 = scmp.ne.s32.totalorder %s113, %s115
      %p119 = scmp.eq.s32.totalorder %s16, 0
      %p120 = por %p118, %p119
      %p121 = scmp.ne.s32.totalorder %s113, %s115
      %p122 = scmp.eq.s32.totalorder %s21, 1
      %p123 = por %p121, %p122
      %p124 = scmp.ne.s32.totalorder %s115, %s116
      %p125 = scmp.eq.s32.totalorder %s21, 0
      %p126 = por %p124, %p125
      %p127 = scmp.ne.s32.totalorder %s115, %s116
      %p128 = scmp.eq.s32.totalorder %s22, 1
      %p129 = por %p127, %p128
      %p131 = scmp.ne.s32.totalorder %s116, %s130
      %p132 = scmp.eq.s32.totalorder %s22, 0
      %p133 = por %p131, %p132
      %s135 = sadd.s32 %s134, 1
      %p138 = scmp.eq.s32.totalorder %s16, 1
      %p139 = scmp.ne.s32.totalorder %s134, %s136
      %p140 = scmp.eq.s32.totalorder %s16, 0
      %p141 = por %p139, %p140
      %p142 = scmp.ne.s32.totalorder %s134, %s136
      %p143 = scmp.eq.s32.totalorder %s21, 1
      %p144 = por %p142, %p143
      %p145 = scmp.ne.s32.totalorder %s136, %s137
      %p146 = scmp.eq.s32.totalorder %s21, 0
      %p147 = por %p145, %p146
      %p148 = scmp.ne.s32.totalorder %s136, %s137
      %p149 = scmp.eq.s32.totalorder %s22, 1
      %p150 = por %p148, %p149
      %p152 = scmp.ne.s32.totalorder %s137, %s151
      %p153 = scmp.eq.s32.totalorder %s22, 0
      %p154 = por %p152, %p153
      %s156 = sadd.s32 %s155, 1
      %p159 = scmp.eq.s32.totalorder %s16, 1
      %p160 = scmp.ne.s32.totalorder %s155, %s157
      %p161 = scmp.eq.s32.totalorder %s16, 0
      %p162 = por %p160, %p161
      %p163 = scmp.ne.s32.totalorder %s155, %s157
      %p164 = scmp.eq.s32.totalorder %s21, 1
      %p165 = por %p163, %p164
      %p166 = scmp.ne.s32.totalorder %s157, %s158
      %p167 = scmp.eq.s32.totalorder %s21, 0
      %p168 = por %p166, %p167
      %p169 = scmp.ne.s32.totalorder %s157, %s158
      %p170 = scmp.eq.s32.totalorder %s22, 1
      %p171 = por %p169, %p170
      %p173 = scmp.ne.s32.totalorder %s158, %s172
      %p174 = scmp.eq.s32.totalorder %s22, 0
      %p175 = por %p173, %p174
      %s176 = ssub.s32 %s16, %s23
      %p177 = scmp.eq.s32.totalorder %s176, 0
      %s179 = sadd.s32 %s178, 1
      %s180 = scalar_select %p177, %s178, %s179
      %p183 = pneg %p177
      %p184 = scmp.eq.s32.totalorder %s16, 1
      %p185 = por %p183, %p184
      %p186 = scmp.ne.s32.totalorder %s178, %s181
      %p187 = scmp.eq.s32.totalorder %s16, 0
      %p188 = por %p186, %p187
      %p189 = scmp.ne.s32.totalorder %s178, %s181
      %p190 = scmp.eq.s32.totalorder %s21, 1
      %p191 = por %p189, %p190
      %p192 = scmp.ne.s32.totalorder %s181, %s182
      %p193 = scmp.eq.s32.totalorder %s21, 0
      %p194 = por %p192, %p193
      %p195 = scmp.ne.s32.totalorder %s181, %s182
      %p196 = scmp.eq.s32.totalorder %s22, 1
      %p197 = por %p195, %p196
      %p199 = scmp.ne.s32.totalorder %s182, %s198
      %p200 = scmp.eq.s32.totalorder %s22, 0
      %p201 = por %p199, %p200
      %p202 = scmp.le.s32.totalorder 1, %s16
      %p203 = scmp.lt.s32.totalorder %s16, 3
      %p204 = pnand %p202, %p203
      %p205 = pneg %p204
      // Predicated region
      $region9: #{tpu_custom_call.1} parent=5 // pred_check
        _
      $region10: #{tpu_custom_call.1} parent=5 // pred_check_branch
        %207 = sbr.rel (%p204) target = $region12
      $region11: #{tpu_custom_call.1} parent=5 // pred_region
        %s208 = ssub.s32 %s16, 1
        // Predicated region
        $region13: #{tpu_custom_call.1} parent=11 // pred_check
          %p209 = pneg %p63
        $region14: #{tpu_custom_call.1} parent=11 // pred_check_branch
          %211 = sbr.rel (%p209) target = $region16
        $region15: #{tpu_custom_call.1} parent=11 // pred_region
          _
        $region16: #{tpu_custom_call.1} parent=11 // pred_fallthru
          _
        // Predicated region
        $region17: #{tpu_custom_call.1} parent=11 // pred_check
          %p212 = pneg %p84
        $region18: #{tpu_custom_call.1} parent=11 // pred_check_branch
          %214 = sbr.rel (%p212) target = $region20
        $region19: #{tpu_custom_call.1} parent=11 // pred_region
          _
        $region20: #{tpu_custom_call.1} parent=11 // pred_fallthru
          _
        // Predicated region
        $region21: #{tpu_custom_call.1} parent=11 // pred_check
          %p215 = pneg %p105
        $region22: #{tpu_custom_call.1} parent=11 // pred_check_branch
          %217 = sbr.rel (%p215) target = $region24
        $region23: #{tpu_custom_call.1} parent=11 // pred_region
          _
        $region24: #{tpu_custom_call.1} parent=11 // pred_fallthru
          _
        // Predicated region
        $region25: #{tpu_custom_call.1} parent=11 // pred_check
          %p218 = pneg %p126
        $region26: #{tpu_custom_call.1} parent=11 // pred_check_branch
          %220 = sbr.rel (%p218) target = $region28
        $region27: #{tpu_custom_call.1} parent=11 // pred_region
          _
        $region28: #{tpu_custom_call.1} parent=11 // pred_fallthru
          _
        // Predicated region
        $region29: #{tpu_custom_call.1} parent=11 // pred_check
          %p221 = pneg %p147
        $region30: #{tpu_custom_call.1} parent=11 // pred_check_branch
          %223 = sbr.rel (%p221) target = $region32
        $region31: #{tpu_custom_call.1} parent=11 // pred_region
          _
        $region32: #{tpu_custom_call.1} parent=11 // pred_fallthru
          _
        // Predicated region
        $region33: #{tpu_custom_call.1} parent=11 // pred_check
          %p224 = pneg %p168
        $region34: #{tpu_custom_call.1} parent=11 // pred_check_branch
          %226 = sbr.rel (%p224) target = $region36
        $region35: #{tpu_custom_call.1} parent=11 // pred_region
          _
        $region36: #{tpu_custom_call.1} parent=11 // pred_fallthru
          _
      $region12: #{tpu_custom_call.1} parent=5 // pred_fallthru
        _
      %p227 = scmp.lt.s32.totalorder %s16, 2
      // Predicated region
      $region37: #{tpu_custom_call.1} parent=5 // pred_check
        %p228 = pneg %p227
      $region38: #{tpu_custom_call.1} parent=5 // pred_check_branch
        %230 = sbr.rel (%p228) target = $region40
      $region39: #{tpu_custom_call.1} parent=5 // pred_region
        // Predicated region
        $region41: #{tpu_custom_call.1} parent=39 // pred_check
          %p231 = pneg %p36
        $region42: #{tpu_custom_call.1} parent=39 // pred_check_branch
          %233 = sbr.rel (%p231) target = $region44
        $region43: #{tpu_custom_call.1} parent=39 // pred_region
          %p234 = scmp.lt.s32.totalorder %s16, 1
          %s235 = scalar_select %p234, %s16, 1
          %s236 = smul.addr %s235, 54
          %s237 = smul.addr %s236, 4
          %s238 = scalar_lea.vmem %s0, %s237
        $region44: #{tpu_custom_call.1} parent=39 // pred_fallthru
          _
      $region40: #{tpu_custom_call.1} parent=5 // pred_fallthru
        _
      %p239 = scmp.le.s32.totalorder 1, %s16
      %p240 = scmp.lt.s32.totalorder %s16, 3
      %p241 = pnand %p239, %p240
      %p242 = pneg %p241
      // Predicated region
      $region45: #{tpu_custom_call.1} parent=5 // pred_check
        _
      $region46: #{tpu_custom_call.1} parent=5 // pred_check_branch
        %244 = sbr.rel (%p241) target = $region48
      $region47: #{tpu_custom_call.1} parent=5 // pred_region
        %s245 = ssub.s32 %s16, 1
        %p246 = scmp.lt.s32.totalorder %s21, 1
        %s247 = scalar_select %p246, %s21, 1
        %s248 = smul.addr %s247, 54
        %s249 = smul.addr %s248, 4
        %s250 = scalar_lea.vmem %s0, %s249
        %p251 = pneg %p42
        %p252 = pneg %p39
        %p253 = pneg %p63
        %p254 = pneg %p60
        %p255 = pneg %p84
        %p256 = pneg %p81
        %p257 = pneg %p105
        %p258 = pneg %p102
        %p259 = pneg %p126
        %p260 = pneg %p123
        %p261 = pneg %p147
        %p262 = pneg %p144
        %p263 = pneg %p168
        %p264 = pneg %p165
        %p265 = pneg %p194
        %p266 = pneg %p191
        %s267 = sand.u32 %s181, 1
        %s268 = scalar_lea.sflag [#allocation5], %s267
        %s269 = sand.u32 %s181, 1
        %s270 = smul.addr %s269, 8
        %s271 = scalar_lea.vmem [#allocation4], %s270
        %p272 = scmp.lt.s32.totalorder %s21, 1
        %s273 = scalar_select %p272, %s21, 1
        %s274 = smul.addr %s273, 54
        %s275 = smul.addr %s274, 4
        %s276 = scalar_lea.vmem %s0, %s275
        %v278 = vld [vmem:[%s276] sm:$0xf]
        %v279 = vld [vmem:[%s276 + $0x4] sm:$0xf]
        %v280 = vld [vmem:[%s276 + $0x8] sm:$0x1]
        %v281 = vld [vmem:[%s276 + $0xc] sm:$0xf]
        %v282 = vld [vmem:[%s276 + $0x10] sm:$0xf]
        %v283 = vld [vmem:[%s276 + $0x14] sm:$0x1]
        %v284 = vld [vmem:[%s276 + $0x18] sm:$0xf]
        %v285 = vld [vmem:[%s276 + $0x1c] sm:$0xf]
        %v286 = vld [vmem:[%s276 + $0x20] sm:$0x1]
        %v287 = vld [vmem:[%s276 + $0x24] sm:$0xf]
        %v288 = vld [vmem:[%s276 + $0x28] sm:$0xf]
        %v289 = vld [vmem:[%s276 + $0x2c] sm:$0x1]
        %v290 = vld [vmem:[%s276 + $0x30] sm:$0xf]
        %v291 = vld [vmem:[%s276 + $0x34] sm:$0xf]
        %v292 = vld [vmem:[%s276 + $0x38] sm:$0x1]
        %v293 = vld [vmem:[%s276 + $0x3c] sm:$0xf]
        %v294 = vld [vmem:[%s276 + $0x40] sm:$0xf]
        %v295 = vld [vmem:[%s276 + $0x44] sm:$0x1]
        %v296 = vld [vmem:[%s276 + $0x48] sm:$0xf]
        %v297 = vld [vmem:[%s276 + $0x4c] sm:$0xf]
        %v298 = vld [vmem:[%s276 + $0x50] sm:$0x1]
        %v299 = vld [vmem:[%s276 + $0x54] sm:$0xf]
        %v300 = vld [vmem:[%s276 + $0x58] sm:$0xf]
        %v301 = vld [vmem:[%s276 + $0x5c] sm:$0x1]
        %v302 = vld [vmem:[%s276 + $0x60] sm:$0xf]
        %v303 = vld [vmem:[%s276 + $0x64] sm:$0xf]
        %v304 = vld [vmem:[%s276 + $0x68] sm:$0x1]
        %v305 = vld [vmem:[%s276 + $0x6c] sm:$0xf]
        %v306 = vld [vmem:[%s276 + $0x70] sm:$0xf]
        %v307 = vld [vmem:[%s276 + $0x74] sm:$0x1]
        %v308 = vld [vmem:[%s276 + $0x78] sm:$0xf]
        %v309 = vld [vmem:[%s276 + $0x7c] sm:$0xf]
        %v310 = vld [vmem:[%s276 + $0x80] sm:$0x1]
        %v311 = vld [vmem:[%s276 + $0x84] sm:$0xf]
        %v312 = vld [vmem:[%s276 + $0x88] sm:$0xf]
        %v313 = vld [vmem:[%s276 + $0x8c] sm:$0x1]
        %v314 = vld [vmem:[%s276 + $0x90] sm:$0xf]
        %v315 = vld [vmem:[%s276 + $0x94] sm:$0xf]
        %v316 = vld [vmem:[%s276 + $0x98] sm:$0x1]
        %v317 = vld [vmem:[%s276 + $0x9c] sm:$0xf]
        %v318 = vld [vmem:[%s276 + $0xa0] sm:$0xf]
        %v319 = vld [vmem:[%s276 + $0xa4] sm:$0x1]
        %v320 = vld [vmem:[%s276 + $0xa8] sm:$0xf]
        %v321 = vld [vmem:[%s276 + $0xac] sm:$0xf]
        %v322 = vld [vmem:[%s276 + $0xb0] sm:$0x1]
        %v323 = vld [vmem:[%s276 + $0xb4] sm:$0xf]
        %v324 = vld [vmem:[%s276 + $0xb8] sm:$0xf]
        %v325 = vld [vmem:[%s276 + $0xbc] sm:$0x1]
        %v326 = vld [vmem:[%s276 + $0xc0] sm:$0xf]
        %v327 = vld [vmem:[%s276 + $0xc4] sm:$0xf]
        %v328 = vld [vmem:[%s276 + $0xc8] sm:$0x1]
        %v329 = vld [vmem:[%s276 + $0xcc] sm:$0xf]
        %v330 = vld [vmem:[%s276 + $0xd0] sm:$0xf]
        %v331 = vld [vmem:[%s276 + $0xd4] sm:$0x1]
        %v332 = vunpack.c.l.bf16 %v278
        %v333 = vunpack.c.l.bf16 %v279
        %v334 = vunpack.c.l.bf16 %v280
        %v335 = vunpack.c.l.bf16 %v281
        %v336 = vunpack.c.l.bf16 %v282
        %v337 = vunpack.c.l.bf16 %v283
        %v338 = vunpack.c.l.bf16 %v284
        %v339 = vunpack.c.l.bf16 %v285
        %v340 = vunpack.c.l.bf16 %v286
        %v341 = vunpack.c.l.bf16 %v287
        %v342 = vunpack.c.l.bf16 %v288
        %v343 = vunpack.c.l.bf16 %v289
        %v344 = vunpack.c.l.bf16 %v290
        %v345 = vunpack.c.l.bf16 %v291
        %v346 = vunpack.c.l.bf16 %v292
        %v347 = vunpack.c.l.bf16 %v293
        %v348 = vunpack.c.l.bf16 %v294
        %v349 = vunpack.c.l.bf16 %v295
        %v350 = vunpack.c.l.bf16 %v296
        %v351 = vunpack.c.l.bf16 %v297
        %v352 = vunpack.c.l.bf16 %v298
        %v353 = vunpack.c.l.bf16 %v299
        %v354 = vunpack.c.l.bf16 %v300
        %v355 = vunpack.c.l.bf16 %v301
        %v356 = vunpack.c.l.bf16 %v302
        %v357 = vunpack.c.l.bf16 %v303
        %v358 = vunpack.c.l.bf16 %v304
        %v359 = vunpack.c.l.bf16 %v305
        %v360 = vunpack.c.l.bf16 %v306
        %v361 = vunpack.c.l.bf16 %v307
        %v362 = vunpack.c.l.bf16 %v308
        %v363 = vunpack.c.l.bf16 %v309
        %v364 = vunpack.c.l.bf16 %v310
        %v365 = vunpack.c.l.bf16 %v311
        %v366 = vunpack.c.l.bf16 %v312
        %v367 = vunpack.c.l.bf16 %v313
        %v368 = vunpack.c.l.bf16 %v314
        %v369 = vunpack.c.l.bf16 %v315
        %v370 = vunpack.c.l.bf16 %v316
        %v371 = vunpack.c.l.bf16 %v317
        %v372 = vunpack.c.l.bf16 %v318
        %v373 = vunpack.c.l.bf16 %v319
        %v374 = vunpack.c.l.bf16 %v320
        %v375 = vunpack.c.l.bf16 %v321
        %v376 = vunpack.c.l.bf16 %v322
        %v377 = vunpack.c.l.bf16 %v323
        %v378 = vunpack.c.l.bf16 %v324
        %v379 = vunpack.c.l.bf16 %v325
        %v380 = vunpack.c.l.bf16 %v326
        %v381 = vunpack.c.l.bf16 %v327
        %v382 = vunpack.c.l.bf16 %v328
        %v383 = vunpack.c.l.bf16 %v329
        %v384 = vunpack.c.l.bf16 %v330
        %v385 = vunpack.c.l.bf16 %v331
        %v386 = vmax.f32 %v332, 0.0
        %v387 = vmax.f32 %v333, 0.0
        %v388 = vmax.f32 %v334, 0.0
        %v389 = vmax.f32 %v335, 0.0
        %v390 = vmax.f32 %v336, 0.0
        %v391 = vmax.f32 %v337, 0.0
        %v392 = vmax.f32 %v338, 0.0
        %v393 = vmax.f32 %v339, 0.0
        %v394 = vmax.f32 %v340, 0.0
        %v395 = vmax.f32 %v341, 0.0
        %v396 = vmax.f32 %v342, 0.0
        %v397 = vmax.f32 %v343, 0.0
        %v398 = vmax.f32 %v344, 0.0
        %v399 = vmax.f32 %v345, 0.0
        %v400 = vmax.f32 %v346, 0.0
        %v401 = vmax.f32 %v347, 0.0
        %v402 = vmax.f32 %v348, 0.0
        %v403 = vmax.f32 %v349, 0.0
        %v404 = vmax.f32 %v350, 0.0
        %v405 = vmax.f32 %v351, 0.0
        %v406 = vmax.f32 %v352, 0.0
        %v407 = vmax.f32 %v353, 0.0
        %v408 = vmax.f32 %v354, 0.0
        %v409 = vmax.f32 %v355, 0.0
        %v410 = vmax.f32 %v356, 0.0
        %v411 = vmax.f32 %v357, 0.0
        %v412 = vmax.f32 %v358, 0.0
        %v413 = vmax.f32 %v359, 0.0
        %v414 = vmax.f32 %v360, 0.0
        %v415 = vmax.f32 %v361, 0.0
        %v416 = vmax.f32 %v362, 0.0
        %v417 = vmax.f32 %v363, 0.0
        %v418 = vmax.f32 %v364, 0.0
        %v419 = vmax.f32 %v365, 0.0
        %v420 = vmax.f32 %v366, 0.0
        %v421 = vmax.f32 %v367, 0.0
        %v422 = vmax.f32 %v368, 0.0
        %v423 = vmax.f32 %v369, 0.0
        %v424 = vmax.f32 %v370, 0.0
        %v425 = vmax.f32 %v371, 0.0
        %v426 = vmax.f32 %v372, 0.0
        %v427 = vmax.f32 %v373, 0.0
        %v428 = vmax.f32 %v374, 0.0
        %v429 = vmax.f32 %v375, 0.0
        %v430 = vmax.f32 %v376, 0.0
        %v431 = vmax.f32 %v377, 0.0
        %v432 = vmax.f32 %v378, 0.0
        %v433 = vmax.f32 %v379, 0.0
        %v434 = vmax.f32 %v380, 0.0
        %v435 = vmax.f32 %v381, 0.0
        %v436 = vmax.f32 %v382, 0.0
        %v437 = vmax.f32 %v383, 0.0
        %v438 = vmax.f32 %v384, 0.0
        %v439 = vmax.f32 %v385, 0.0
        %vm440 = vcmask 31744
        %441 = vst.msk [vmem:[#allocation2] sm:$0xff] %vm440, %v386
        %442 = vst.msk [vmem:[#allocation2 + $0x8] sm:$0xff] %vm440, %v387
        %vm443 = vcmask 25600
        %444 = vst.msk [vmem:[#allocation2 + $0x10] sm:$0x3] %vm443, %v388
        %445 = vst.msk [vmem:[#allocation2 + $0x18] sm:$0xff] %vm440, %v389
        %446 = vst.msk [vmem:[#allocation2 + $0x20] sm:$0xff] %vm440, %v390
        %447 = vst.msk [vmem:[#allocation2 + $0x28] sm:$0x3] %vm443, %v391
        %448 = vst.msk [vmem:[#allocation2 + $0x30] sm:$0xff] %vm440, %v392
        %449 = vst.msk [vmem:[#allocation2 + $0x38] sm:$0xff] %vm440, %v393
        %450 = vst.msk [vmem:[#allocation2 + $0x40] sm:$0x3] %vm443, %v394
        %451 = vst.msk [vmem:[#allocation2 + $0x48] sm:$0xff] %vm440, %v395
        %452 = vst.msk [vmem:[#allocation2 + $0x50] sm:$0xff] %vm440, %v396
        %453 = vst.msk [vmem:[#allocation2 + $0x58] sm:$0x3] %vm443, %v397
        %454 = vst.msk [vmem:[#allocation2 + $0x60] sm:$0xff] %vm440, %v398
        %455 = vst.msk [vmem:[#allocation2 + $0x68] sm:$0xff] %vm440, %v399
        %456 = vst.msk [vmem:[#allocation2 + $0x70] sm:$0x3] %vm443, %v400
        %457 = vst.msk [vmem:[#allocation2 + $0x78] sm:$0xff] %vm440, %v401
        %458 = vst.msk [vmem:[#allocation2 + $0x80] sm:$0xff] %vm440, %v402
        %459 = vst.msk [vmem:[#allocation2 + $0x88] sm:$0x3] %vm443, %v403
        %460 = vst.msk [vmem:[#allocation2 + $0x90] sm:$0xff] %vm440, %v404
        %461 = vst.msk [vmem:[#allocation2 + $0x98] sm:$0xff] %vm440, %v405
        %462 = vst.msk [vmem:[#allocation2 + $0xa0] sm:$0x3] %vm443, %v406
        %463 = vst.msk [vmem:[#allocation2 + $0xa8] sm:$0xff] %vm440, %v407
        %464 = vst.msk [vmem:[#allocation2 + $0xb0] sm:$0xff] %vm440, %v408
        %465 = vst.msk [vmem:[#allocation2 + $0xb8] sm:$0x3] %vm443, %v409
        %466 = vst.msk [vmem:[#allocation2 + $0xc0] sm:$0xff] %vm440, %v410
        %467 = vst.msk [vmem:[#allocation2 + $0xc8] sm:$0xff] %vm440, %v411
        %468 = vst.msk [vmem:[#allocation2 + $0xd0] sm:$0x3] %vm443, %v412
        %469 = vst.msk [vmem:[#allocation2 + $0xd8] sm:$0xff] %vm440, %v413
        %470 = vst.msk [vmem:[#allocation2 + $0xe0] sm:$0xff] %vm440, %v414
        %471 = vst.msk [vmem:[#allocation2 + $0xe8] sm:$0x3] %vm443, %v415
        %472 = vst.msk [vmem:[#allocation2 + $0xf0] sm:$0xff] %vm440, %v416
        %473 = vst.msk [vmem:[#allocation2 + $0xf8] sm:$0xff] %vm440, %v417
        %474 = vst.msk [vmem:[#allocation2 + $0x100] sm:$0x3] %vm443, %v418
        %475 = vst.msk [vmem:[#allocation2 + $0x108] sm:$0xff] %vm440, %v419
        %476 = vst.msk [vmem:[#allocation2 + $0x110] sm:$0xff] %vm440, %v420
        %477 = vst.msk [vmem:[#allocation2 + $0x118] sm:$0x3] %vm443, %v421
        %478 = vst.msk [vmem:[#allocation2 + $0x120] sm:$0xff] %vm440, %v422
        %479 = vst.msk [vmem:[#allocation2 + $0x128] sm:$0xff] %vm440, %v423
        %480 = vst.msk [vmem:[#allocation2 + $0x130] sm:$0x3] %vm443, %v424
        %481 = vst.msk [vmem:[#allocation2 + $0x138] sm:$0xff] %vm440, %v425
        %482 = vst.msk [vmem:[#allocation2 + $0x140] sm:$0xff] %vm440, %v426
        %483 = vst.msk [vmem:[#allocation2 + $0x148] sm:$0x3] %vm443, %v427
        %484 = vst.msk [vmem:[#allocation2 + $0x150] sm:$0xff] %vm440, %v428
        %485 = vst.msk [vmem:[#allocation2 + $0x158] sm:$0xff] %vm440, %v429
        %486 = vst.msk [vmem:[#allocation2 + $0x160] sm:$0x3] %vm443, %v430
        %487 = vst.msk [vmem:[#allocation2 + $0x168] sm:$0xff] %vm440, %v431
        %488 = vst.msk [vmem:[#allocation2 + $0x170] sm:$0xff] %vm440, %v432
        %489 = vst.msk [vmem:[#allocation2 + $0x178] sm:$0x3] %vm443, %v433
        %490 = vst.msk [vmem:[#allocation2 + $0x180] sm:$0xff] %vm440, %v434
        %491 = vst.msk [vmem:[#allocation2 + $0x188] sm:$0xff] %vm440, %v435
        %492 = vst.msk [vmem:[#allocation2 + $0x190] sm:$0x3] %vm443, %v436
        %493 = vst.msk [vmem:[#allocation2 + $0x198] sm:$0xff] %vm440, %v437
        %494 = vst.msk [vmem:[#allocation2 + $0x1a0] sm:$0xff] %vm440, %v438
        %495 = vst.msk [vmem:[#allocation2 + $0x1a8] sm:$0x3] %vm443, %v439
        %496 = vst.msk [vmem:[#allocation3] sm:$0xff] %vm440, 0.0
        %497 = vst.msk [vmem:[#allocation3 + $0x8] sm:$0xff] %vm440, 0.0
        %498 = vst.msk [vmem:[#allocation3 + $0x10] sm:$0x3] %vm443, 0.0
        %499 = vst.msk [vmem:[#allocation3 + $0x18] sm:$0xff] %vm440, 0.0
        %500 = vst.msk [vmem:[#allocation3 + $0x20] sm:$0xff] %vm440, 0.0
        %501 = vst.msk [vmem:[#allocation3 + $0x28] sm:$0x3] %vm443, 0.0
        %502 = vst.msk [vmem:[#allocation3 + $0x30] sm:$0xff] %vm440, 0.0
        %503 = vst.msk [vmem:[#allocation3 + $0x38] sm:$0xff] %vm440, 0.0
        %504 = vst.msk [vmem:[#allocation3 + $0x40] sm:$0x3] %vm443, 0.0
        %505 = vst.msk [vmem:[#allocation3 + $0x48] sm:$0xff] %vm440, 0.0
        %506 = vst.msk [vmem:[#allocation3 + $0x50] sm:$0xff] %vm440, 0.0
        %507 = vst.msk [vmem:[#allocation3 + $0x58] sm:$0x3] %vm443, 0.0
        %508 = vst.msk [vmem:[#allocation3 + $0x60] sm:$0xff] %vm440, 0.0
        %509 = vst.msk [vmem:[#allocation3 + $0x68] sm:$0xff] %vm440, 0.0
        %510 = vst.msk [vmem:[#allocation3 + $0x70] sm:$0x3] %vm443, 0.0
        %511 = vst.msk [vmem:[#allocation3 + $0x78] sm:$0xff] %vm440, 0.0
        %512 = vst.msk [vmem:[#allocation3 + $0x80] sm:$0xff] %vm440, 0.0
        %513 = vst.msk [vmem:[#allocation3 + $0x88] sm:$0x3] %vm443, 0.0
        %514 = vst.msk [vmem:[#allocation3 + $0x90] sm:$0xff] %vm440, 0.0
        %515 = vst.msk [vmem:[#allocation3 + $0x98] sm:$0xff] %vm440, 0.0
        %516 = vst.msk [vmem:[#allocation3 + $0xa0] sm:$0x3] %vm443, 0.0
        %517 = vst.msk [vmem:[#allocation3 + $0xa8] sm:$0xff] %vm440, 0.0
        %518 = vst.msk [vmem:[#allocation3 + $0xb0] sm:$0xff] %vm440, 0.0
        %519 = vst.msk [vmem:[#allocation3 + $0xb8] sm:$0x3] %vm443, 0.0
        %520 = vst.msk [vmem:[#allocation3 + $0xc0] sm:$0xff] %vm440, 0.0
        %521 = vst.msk [vmem:[#allocation3 + $0xc8] sm:$0xff] %vm440, 0.0
        %522 = vst.msk [vmem:[#allocation3 + $0xd0] sm:$0x3] %vm443, 0.0
        %523 = vst.msk [vmem:[#allocation3 + $0xd8] sm:$0xff] %vm440, 0.0
        %524 = vst.msk [vmem:[#allocation3 + $0xe0] sm:$0xff] %vm440, 0.0
        %525 = vst.msk [vmem:[#allocation3 + $0xe8] sm:$0x3] %vm443, 0.0
        %526 = vst.msk [vmem:[#allocation3 + $0xf0] sm:$0xff] %vm440, 0.0
        %527 = vst.msk [vmem:[#allocation3 + $0xf8] sm:$0xff] %vm440, 0.0
        %528 = vst.msk [vmem:[#allocation3 + $0x100] sm:$0x3] %vm443, 0.0
        %529 = vst.msk [vmem:[#allocation3 + $0x108] sm:$0xff] %vm440, 0.0
        %530 = vst.msk [vmem:[#allocation3 + $0x110] sm:$0xff] %vm440, 0.0
        %531 = vst.msk [vmem:[#allocation3 + $0x118] sm:$0x3] %vm443, 0.0
        %532 = vst.msk [vmem:[#allocation3 + $0x120] sm:$0xff] %vm440, 0.0
        %533 = vst.msk [vmem:[#allocation3 + $0x128] sm:$0xff] %vm440, 0.0
        %534 = vst.msk [vmem:[#allocation3 + $0x130] sm:$0x3] %vm443, 0.0
        %535 = vst.msk [vmem:[#allocation3 + $0x138] sm:$0xff] %vm440, 0.0
        %536 = vst.msk [vmem:[#allocation3 + $0x140] sm:$0xff] %vm440, 0.0
        %537 = vst.msk [vmem:[#allocation3 + $0x148] sm:$0x3] %vm443, 0.0
        %538 = vst.msk [vmem:[#allocation3 + $0x150] sm:$0xff] %vm440, 0.0
        %539 = vst.msk [vmem:[#allocation3 + $0x158] sm:$0xff] %vm440, 0.0
        %540 = vst.msk [vmem:[#allocation3 + $0x160] sm:$0x3] %vm443, 0.0
        %541 = vst.msk [vmem:[#allocation3 + $0x168] sm:$0xff] %vm440, 0.0
        %542 = vst.msk [vmem:[#allocation3 + $0x170] sm:$0xff] %vm440, 0.0
        %543 = vst.msk [vmem:[#allocation3 + $0x178] sm:$0x3] %vm443, 0.0
        %544 = vst.msk [vmem:[#allocation3 + $0x180] sm:$0xff] %vm440, 0.0
        %545 = vst.msk [vmem:[#allocation3 + $0x188] sm:$0xff] %vm440, 0.0
        %546 = vst.msk [vmem:[#allocation3 + $0x190] sm:$0x3] %vm443, 0.0
        %547 = vst.msk [vmem:[#allocation3 + $0x198] sm:$0xff] %vm440, 0.0
        %548 = vst.msk [vmem:[#allocation3 + $0x1a0] sm:$0xff] %vm440, 0.0
        %549 = vst.msk [vmem:[#allocation3 + $0x1a8] sm:$0x3] %vm443, 0.0
        %v550 = vld [vmem:[#allocation2] sm:$0xff]
        %v551 = vld [vmem:[#allocation2 + $0x8] sm:$0xff]
        %v552 = vld [vmem:[#allocation2 + $0x18] sm:$0xff]
        %v553 = vld [vmem:[#allocation2 + $0x20] sm:$0xff]
        %v554 = vld [vmem:[#allocation2 + $0x30] sm:$0xff]
        %v555 = vld [vmem:[#allocation2 + $0x38] sm:$0xff]
        %v556 = vld [vmem:[#allocation2 + $0x48] sm:$0xff]
        %v557 = vld [vmem:[#allocation2 + $0x50] sm:$0xff]
        %v558 = vld [vmem:[#allocation2 + $0x60] sm:$0xff]
        %v559 = vld [vmem:[#allocation2 + $0x68] sm:$0xff]
        %v560 = vld [vmem:[#allocation2 + $0x78] sm:$0xff]
        %v561 = vld [vmem:[#allocation2 + $0x80] sm:$0xff]
        %v562 = vld [vmem:[#allocation2 + $0x90] sm:$0xff]
        %v563 = vld [vmem:[#allocation2 + $0x98] sm:$0xff]
        %v564 = vld [vmem:[#allocation2 + $0xa8] sm:$0xff]
        %v565 = vld [vmem:[#allocation2 + $0xb0] sm:$0xff]
        %v566 = vld [vmem:[#allocation2 + $0xc0] sm:$0xff]
        %v567 = vld [vmem:[#allocation2 + $0xc8] sm:$0xff]
        %v568 = vld [vmem:[#allocation2 + $0xd8] sm:$0xff]
        %v569 = vld [vmem:[#allocation2 + $0xe0] sm:$0xff]
        %v570 = vld [vmem:[#allocation2 + $0xf0] sm:$0xff]
        %v571 = vld [vmem:[#allocation2 + $0xf8] sm:$0xff]
        %v572 = vld [vmem:[#allocation2 + $0x108] sm:$0xff]
        %v573 = vld [vmem:[#allocation2 + $0x110] sm:$0xff]
        %v574 = vld [vmem:[#allocation2 + $0x120] sm:$0xff]
        %v575 = vld [vmem:[#allocation2 + $0x128] sm:$0xff]
        %v576 = vld [vmem:[#allocation2 + $0x138] sm:$0xff]
        %v577 = vld [vmem:[#allocation2 + $0x140] sm:$0xff]
        %v578 = vld [vmem:[#allocation2 + $0x150] sm:$0xff]
        %v579 = vld [vmem:[#allocation2 + $0x158] sm:$0xff]
        %v580 = vld [vmem:[#allocation2 + $0x168] sm:$0xff]
        %v581 = vld [vmem:[#allocation2 + $0x170] sm:$0xff]
        %v582 = vpack.c.bf16 %v551, %v550
        %v583 = vpack.c.bf16 %v553, %v552
        %v584 = vpack.c.bf16 %v555, %v554
        %v585 = vpack.c.bf16 %v557, %v556
        %v586 = vpack.c.bf16 %v559, %v558
        %v587 = vpack.c.bf16 %v561, %v560
        %v588 = vpack.c.bf16 %v563, %v562
        %v589 = vpack.c.bf16 %v565, %v564
        %v590 = vpack.c.bf16 %v567, %v566
        %v591 = vpack.c.bf16 %v569, %v568
        %v592 = vpack.c.bf16 %v571, %v570
        %v593 = vpack.c.bf16 %v573, %v572
        %v594 = vpack.c.bf16 %v575, %v574
        %v595 = vpack.c.bf16 %v577, %v576
        %v596 = vpack.c.bf16 %v579, %v578
        %v597 = vpack.c.bf16 %v581, %v580
        %v598 = vld [vmem:[%s1] sm:$0x3]
        %v599 = vld [vmem:[#allocation2 + $0x1] sm:$0xff]
        %v600 = vld [vmem:[#allocation2 + $0x9] sm:$0xff]
        %v601 = vld [vmem:[#allocation2 + $0x19] sm:$0xff]
        %v602 = vld [vmem:[#allocation2 + $0x21] sm:$0xff]
        %v603 = vld [vmem:[#allocation2 + $0x31] sm:$0xff]
        %v604 = vld [vmem:[#allocation2 + $0x39] sm:$0xff]
        %v605 = vld [vmem:[#allocation2 + $0x49] sm:$0xff]
        %v606 = vld [vmem:[#allocation2 + $0x51] sm:$0xff]
        %v607 = vld [vmem:[#allocation2 + $0x61] sm:$0xff]
        %v608 = vld [vmem:[#allocation2 + $0x69] sm:$0xff]
        %v609 = vld [vmem:[#allocation2 + $0x79] sm:$0xff]
        %v610 = vld [vmem:[#allocation2 + $0x81] sm:$0xff]
        %v611 = vld [vmem:[#allocation2 + $0x91] sm:$0xff]
        %v612 = vld [vmem:[#allocation2 + $0x99] sm:$0xff]
        %v613 = vld [vmem:[#allocation2 + $0xa9] sm:$0xff]
        %v614 = vld [vmem:[#allocation2 + $0xb1] sm:$0xff]
        %v615 = vld [vmem:[#allocation2 + $0xc1] sm:$0xff]
        %v616 = vld [vmem:[#allocation2 + $0xc9] sm:$0xff]
        %v617 = vld [vmem:[#allocation2 + $0xd9] sm:$0xff]
        %v618 = vld [vmem:[#allocation2 + $0xe1] sm:$0xff]
        %v619 = vld [vmem:[#allocation2 + $0xf1] sm:$0xff]
        %v620 = vld [vmem:[#allocation2 + $0xf9] sm:$0xff]
        %v621 = vld [vmem:[#allocation2 + $0x109] sm:$0xff]
        %v622 = vld [vmem:[#allocation2 + $0x111] sm:$0xff]
        %v623 = vld [vmem:[#allocation2 + $0x121] sm:$0xff]
        %v624 = vld [vmem:[#allocation2 + $0x129] sm:$0xff]
        %v625 = vld [vmem:[#allocation2 + $0x139] sm:$0xff]
        %v626 = vld [vmem:[#allocation2 + $0x141] sm:$0xff]
        %v627 = vld [vmem:[#allocation2 + $0x151] sm:$0xff]
        %v628 = vld [vmem:[#allocation2 + $0x159] sm:$0xff]
        %v629 = vld [vmem:[#allocation2 + $0x169] sm:$0xff]
        %v630 = vld [vmem:[#allocation2 + $0x171] sm:$0xff]
        %v631 = vpack.c.bf16 %v600, %v599
        %v632 = vpack.c.bf16 %v602, %v601
        %v633 = vpack.c.bf16 %v604, %v603
        %v634 = vpack.c.bf16 %v606, %v605
        %v635 = vpack.c.bf16 %v608, %v607
        %v636 = vpack.c.bf16 %v610, %v609
        %v637 = vpack.c.bf16 %v612, %v611
        %v638 = vpack.c.bf16 %v614, %v613
        %v639 = vpack.c.bf16 %v616, %v615
        %v640 = vpack.c.bf16 %v618, %v617
        %v641 = vpack.c.bf16 %v620, %v619
        %v642 = vpack.c.bf16 %v622, %v621
        %v643 = vpack.c.bf16 %v624, %v623
        %v644 = vpack.c.bf16 %v626, %v625
        %v645 = vpack.c.bf16 %v628, %v627
        %v646 = vpack.c.bf16 %v630, %v629
        %s647 = scalar_lea.vmem %s1, 2
        %v648 = vld [vmem:[%s647] sm:$0x3]
        %v650 = vsel %vm440, %v631, 0
        %v653 = vsel %vm440, %v632, 0
        %v656 = vsel %vm440, %v633, 0
        %v659 = vsel %vm440, %v634, 0
        %v662 = vsel %vm440, %v635, 0
        %v665 = vsel %vm440, %v636, 0
        %v668 = vsel %vm440, %v637, 0
        %v671 = vsel %vm440, %v638, 0
        %v674 = vsel %vm440, %v639, 0
        %v677 = vsel %vm440, %v640, 0
        %v680 = vsel %vm440, %v641, 0
        %v683 = vsel %vm440, %v642, 0
        %v686 = vsel %vm440, %v643, 0
        %v689 = vsel %vm440, %v644, 0
        %v692 = vsel %vm440, %v645, 0
        %v695 = vsel %vm440, %v646, 0
        %vm697 = vcmask 1041408
        %v699 = vsel %vm697, %v648, 0
        %701 = vmatpush.bf16.msra.mxu0 0
        %702 = vmatpush.bf16.msra.mxu0 0
        %703 = vmatpush.bf16.msra.mxu0 0
        %704 = vmatpush.bf16.msra.mxu0 0
        %705 = vmatpush.bf16.msra.mxu0 0
        %706 = vmatpush.bf16.msra.mxu0 0
        %707 = vmatpush.bf16.msra.mxu0 0
        %708 = vmatpush.bf16.msra.mxu0 %v699
        %709 = vmatmul.bf16.gmra.mxu0 %v650
        %v710 = vpop.f32.mrf.mxu0
        %v711 = vadd.f32 0.0, %v710
        %v712 = vpop.f32.mrf.mxu0
        %v713 = vadd.f32 0.0, %v712
        %714 = vmatmul.bf16.gmra.mxu0 %v653
        %v715 = vpop.f32.mrf.mxu0
        %v716 = vadd.f32 0.0, %v715
        %v717 = vpop.f32.mrf.mxu0
        %v718 = vadd.f32 0.0, %v717
        %719 = vmatmul.bf16.gmra.mxu0 %v656
        %v720 = vpop.f32.mrf.mxu0
        %v721 = vadd.f32 0.0, %v720
        %v722 = vpop.f32.mrf.mxu0
        %v723 = vadd.f32 0.0, %v722
        %724 = vmatmul.bf16.gmra.mxu0 %v659
        %v725 = vpop.f32.mrf.mxu0
        %v726 = vadd.f32 0.0, %v725
        %v727 = vpop.f32.mrf.mxu0
        %v728 = vadd.f32 0.0, %v727
        %729 = vmatmul.bf16.gmra.mxu0 %v662
        %v730 = vpop.f32.mrf.mxu0
        %v731 = vadd.f32 0.0, %v730
        %v732 = vpop.f32.mrf.mxu0
        %v733 = vadd.f32 0.0, %v732
        %734 = vmatmul.bf16.gmra.mxu0 %v665
        %v735 = vpop.f32.mrf.mxu0
        %v736 = vadd.f32 0.0, %v735
        %v737 = vpop.f32.mrf.mxu0
        %v738 = vadd.f32 0.0, %v737
        %739 = vmatmul.bf16.gmra.mxu0 %v668
        %v740 = vpop.f32.mrf.mxu0
        %v741 = vadd.f32 0.0, %v740
        %v742 = vpop.f32.mrf.mxu0
        %v743 = vadd.f32 0.0, %v742
        %744 = vmatmul.bf16.gmra.mxu0 %v671
        %v745 = vpop.f32.mrf.mxu0
        %v746 = vadd.f32 0.0, %v745
        %v747 = vpop.f32.mrf.mxu0
        %v748 = vadd.f32 0.0, %v747
        %749 = vmatmul.bf16.gmra.mxu0 %v674
        %v750 = vpop.f32.mrf.mxu0
        %v751 = vadd.f32 0.0, %v750
        %v752 = vpop.f32.mrf.mxu0
        %v753 = vadd.f32 0.0, %v752
        %754 = vmatmul.bf16.gmra.mxu0 %v677
        %v755 = vpop.f32.mrf.mxu0
        %v756 = vadd.f32 0.0, %v755
        %v757 = vpop.f32.mrf.mxu0
        %v758 = vadd.f32 0.0, %v757
        %759 = vmatmul.bf16.gmra.mxu0 %v680
        %v760 = vpop.f32.mrf.mxu0
        %v761 = vadd.f32 0.0, %v760
        %v762 = vpop.f32.mrf.mxu0
        %v763 = vadd.f32 0.0, %v762
        %764 = vmatmul.bf16.gmra.mxu0 %v683
        %v765 = vpop.f32.mrf.mxu0
        %v766 = vadd.f32 0.0, %v765
        %v767 = vpop.f32.mrf.mxu0
        %v768 = vadd.f32 0.0, %v767
        %769 = vmatmul.bf16.gmra.mxu0 %v686
        %v770 = vpop.f32.mrf.mxu0
        %v771 = vadd.f32 0.0, %v770
        %v772 = vpop.f32.mrf.mxu0
        %v773 = vadd.f32 0.0, %v772
        %774 = vmatmul.bf16.gmra.mxu0 %v689
        %v775 = vpop.f32.mrf.mxu0
        %v776 = vadd.f32 0.0, %v775
        %v777 = vpop.f32.mrf.mxu0
        %v778 = vadd.f32 0.0, %v777
        %779 = vmatmul.bf16.gmra.mxu0 %v692
        %v780 = vpop.f32.mrf.mxu0
        %v781 = vadd.f32 0.0, %v780
        %v782 = vpop.f32.mrf.mxu0
        %v783 = vadd.f32 0.0, %v782
        %784 = vmatmul.bf16.gmra.mxu0 %v695
        %v785 = vpop.f32.mrf.mxu0
        %v786 = vadd.f32 0.0, %v785
        %v787 = vpop.f32.mrf.mxu0
        %v788 = vadd.f32 0.0, %v787
        %789 = vdwg.mxu0
        %v791 = vsel %vm440, %v582, 0
        %v794 = vsel %vm440, %v583, 0
        %v797 = vsel %vm440, %v584, 0
        %v800 = vsel %vm440, %v585, 0
        %v803 = vsel %vm440, %v586, 0
        %v806 = vsel %vm440, %v587, 0
        %v809 = vsel %vm440, %v588, 0
        %v812 = vsel %vm440, %v589, 0
        %v815 = vsel %vm440, %v590, 0
        %v818 = vsel %vm440, %v591, 0
        %v821 = vsel %vm440, %v592, 0
        %v824 = vsel %vm440, %v593, 0
        %v827 = vsel %vm440, %v594, 0
        %v830 = vsel %vm440, %v595, 0
        %v833 = vsel %vm440, %v596, 0
        %v836 = vsel %vm440, %v597, 0
        %v839 = vsel %vm697, %v598, 0
        %841 = vmatpush.bf16.msra.mxu0 0
        %842 = vmatpush.bf16.msra.mxu0 0
        %843 = vmatpush.bf16.msra.mxu0 0
        %844 = vmatpush.bf16.msra.mxu0 0
        %845 = vmatpush.bf16.msra.mxu0 0
        %846 = vmatpush.bf16.msra.mxu0 0
        %847 = vmatpush.bf16.msra.mxu0 0
        %848 = vmatpush.bf16.msra.mxu0 %v839
        %849 = vmatmul.bf16.gmra.mxu0 %v791
        %v850 = vpop.f32.mrf.mxu0
        %v851 = vadd.f32 %v711, %v850
        %v852 = vpop.f32.mrf.mxu0
        %v853 = vadd.f32 %v713, %v852
        %854 = vmatmul.bf16.gmra.mxu0 %v794
        %v855 = vpop.f32.mrf.mxu0
        %v856 = vadd.f32 %v716, %v855
        %v857 = vpop.f32.mrf.mxu0
        %v858 = vadd.f32 %v718, %v857
        %859 = vmatmul.bf16.gmra.mxu0 %v797
        %v860 = vpop.f32.mrf.mxu0
        %v861 = vadd.f32 %v721, %v860
        %v862 = vpop.f32.mrf.mxu0
        %v863 = vadd.f32 %v723, %v862
        %864 = vmatmul.bf16.gmra.mxu0 %v800
        %v865 = vpop.f32.mrf.mxu0
        %v866 = vadd.f32 %v726, %v865
        %v867 = vpop.f32.mrf.mxu0
        %v868 = vadd.f32 %v728, %v867
        %869 = vmatmul.bf16.gmra.mxu0 %v803
        %v870 = vpop.f32.mrf.mxu0
        %v871 = vadd.f32 %v731, %v870
        %v872 = vpop.f32.mrf.mxu0
        %v873 = vadd.f32 %v733, %v872
        %874 = vmatmul.bf16.gmra.mxu0 %v806
        %v875 = vpop.f32.mrf.mxu0
        %v876 = vadd.f32 %v736, %v875
        %v877 = vpop.f32.mrf.mxu0
        %v878 = vadd.f32 %v738, %v877
        %879 = vmatmul.bf16.gmra.mxu0 %v809
        %v880 = vpop.f32.mrf.mxu0
        %v881 = vadd.f32 %v741, %v880
        %v882 = vpop.f32.mrf.mxu0
        %v883 = vadd.f32 %v743, %v882
        %884 = vmatmul.bf16.gmra.mxu0 %v812
        %v885 = vpop.f32.mrf.mxu0
        %v886 = vadd.f32 %v746, %v885
        %v887 = vpop.f32.mrf.mxu0
        %v888 = vadd.f32 %v748, %v887
        %889 = vmatmul.bf16.gmra.mxu0 %v815
        %v890 = vpop.f32.mrf.mxu0
        %v891 = vadd.f32 %v751, %v890
        %v892 = vpop.f32.mrf.mxu0
        %v893 = vadd.f32 %v753, %v892
        %894 = vmatmul.bf16.gmra.mxu0 %v818
        %v895 = vpop.f32.mrf.mxu0
        %v896 = vadd.f32 %v756, %v895
        %v897 = vpop.f32.mrf.mxu0
        %v898 = vadd.f32 %v758, %v897
        %899 = vmatmul.bf16.gmra.mxu0 %v821
        %v900 = vpop.f32.mrf.mxu0
        %v901 = vadd.f32 %v761, %v900
        %v902 = vpop.f32.mrf.mxu0
        %v903 = vadd.f32 %v763, %v902
        %904 = vmatmul.bf16.gmra.mxu0 %v824
        %v905 = vpop.f32.mrf.mxu0
        %v906 = vadd.f32 %v766, %v905
        %v907 = vpop.f32.mrf.mxu0
        %v908 = vadd.f32 %v768, %v907
        %909 = vmatmul.bf16.gmra.mxu0 %v827
        %v910 = vpop.f32.mrf.mxu0
        %v911 = vadd.f32 %v771, %v910
        %v912 = vpop.f32.mrf.mxu0
        %v913 = vadd.f32 %v773, %v912
        %914 = vmatmul.bf16.gmra.mxu0 %v830
        %v915 = vpop.f32.mrf.mxu0
        %v916 = vadd.f32 %v776, %v915
        %v917 = vpop.f32.mrf.mxu0
        %v918 = vadd.f32 %v778, %v917
        %919 = vmatmul.bf16.gmra.mxu0 %v833
        %v920 = vpop.f32.mrf.mxu0
        %v921 = vadd.f32 %v781, %v920
        %v922 = vpop.f32.mrf.mxu0
        %v923 = vadd.f32 %v783, %v922
        %924 = vmatmul.bf16.gmra.mxu0 %v836
        %v925 = vpop.f32.mrf.mxu0
        %v926 = vadd.f32 %v786, %v925
        %v927 = vpop.f32.mrf.mxu0
        %v928 = vadd.f32 %v788, %v927
        %929 = vdwg.mxu0
        %v930 = vld [vmem:[#allocation2 + $0x2] sm:$0xff]
        %v931 = vld [vmem:[#allocation2 + $0xa] sm:$0xff]
        %v932 = vld [vmem:[#allocation2 + $0x1a] sm:$0xff]
        %v933 = vld [vmem:[#allocation2 + $0x22] sm:$0xff]
        %v934 = vld [vmem:[#allocation2 + $0x32] sm:$0xff]
        %v935 = vld [vmem:[#allocation2 + $0x3a] sm:$0xff]
        %v936 = vld [vmem:[#allocation2 + $0x4a] sm:$0xff]
        %v937 = vld [vmem:[#allocation2 + $0x52] sm:$0xff]
        %v938 = vld [vmem:[#allocation2 + $0x62] sm:$0xff]
        %v939 = vld [vmem:[#allocation2 + $0x6a] sm:$0xff]
        %v940 = vld [vmem:[#allocation2 + $0x7a] sm:$0xff]
        %v941 = vld [vmem:[#allocation2 + $0x82] sm:$0xff]
        %v942 = vld [vmem:[#allocation2 + $0x92] sm:$0xff]
        %v943 = vld [vmem:[#allocation2 + $0x9a] sm:$0xff]
        %v944 = vld [vmem:[#allocation2 + $0xaa] sm:$0xff]
        %v945 = vld [vmem:[#allocation2 + $0xb2] sm:$0xff]
        %v946 = vld [vmem:[#allocation2 + $0xc2] sm:$0xff]
        %v947 = vld [vmem:[#allocation2 + $0xca] sm:$0xff]
        %v948 = vld [vmem:[#allocation2 + $0xda] sm:$0xff]
        %v949 = vld [vmem:[#allocation2 + $0xe2] sm:$0xff]
        %v950 = vld [vmem:[#allocation2 + $0xf2] sm:$0xff]
        %v951 = vld [vmem:[#allocation2 + $0xfa] sm:$0xff]
        %v952 = vld [vmem:[#allocation2 + $0x10a] sm:$0xff]
        %v953 = vld [vmem:[#allocation2 + $0x112] sm:$0xff]
        %v954 = vld [vmem:[#allocation2 + $0x122] sm:$0xff]
        %v955 = vld [vmem:[#allocation2 + $0x12a] sm:$0xff]
        %v956 = vld [vmem:[#allocation2 + $0x13a] sm:$0xff]
        %v957 = vld [vmem:[#allocation2 + $0x142] sm:$0xff]
        %v958 = vld [vmem:[#allocation2 + $0x152] sm:$0xff]
        %v959 = vld [vmem:[#allocation2 + $0x15a] sm:$0xff]
        %v960 = vld [vmem:[#allocation2 + $0x16a] sm:$0xff]
        %v961 = vld [vmem:[#allocation2 + $0x172] sm:$0xff]
        %v962 = vpack.c.bf16 %v931, %v930
        %v963 = vpack.c.bf16 %v933, %v932
        %v964 = vpack.c.bf16 %v935, %v934
        %v965 = vpack.c.bf16 %v937, %v936
        %v966 = vpack.c.bf16 %v939, %v938
        %v967 = vpack.c.bf16 %v941, %v940
        %v968 = vpack.c.bf16 %v943, %v942
        %v969 = vpack.c.bf16 %v945, %v944
        %v970 = vpack.c.bf16 %v947, %v946
        %v971 = vpack.c.bf16 %v949, %v948
        %v972 = vpack.c.bf16 %v951, %v950
        %v973 = vpack.c.bf16 %v953, %v952
        %v974 = vpack.c.bf16 %v955, %v954
        %v975 = vpack.c.bf16 %v957, %v956
        %v976 = vpack.c.bf16 %v959, %v958
        %v977 = vpack.c.bf16 %v961, %v960
        %s978 = scalar_lea.vmem %s1, 4
        %v979 = vld [vmem:[%s978] sm:$0x3]
        %v981 = vsel %vm440, %v962, 0
        %v984 = vsel %vm440, %v963, 0
        %v987 = vsel %vm440, %v964, 0
        %v990 = vsel %vm440, %v965, 0
        %v993 = vsel %vm440, %v966, 0
        %v996 = vsel %vm440, %v967, 0
        %v999 = vsel %vm440, %v968, 0
        %v1002 = vsel %vm440, %v969, 0
        %v1005 = vsel %vm440, %v970, 0
        %v1008 = vsel %vm440, %v971, 0
        %v1011 = vsel %vm440, %v972, 0
        %v1014 = vsel %vm440, %v973, 0
        %v1017 = vsel %vm440, %v974, 0
        %v1020 = vsel %vm440, %v975, 0
        %v1023 = vsel %vm440, %v976, 0
        %v1026 = vsel %vm440, %v977, 0
        %v1029 = vsel %vm697, %v979, 0
        %1031 = vmatpush.bf16.msra.mxu0 0
        %1032 = vmatpush.bf16.msra.mxu0 0
        %1033 = vmatpush.bf16.msra.mxu0 0
        %1034 = vmatpush.bf16.msra.mxu0 0
        %1035 = vmatpush.bf16.msra.mxu0 0
        %1036 = vmatpush.bf16.msra.mxu0 0
        %1037 = vmatpush.bf16.msra.mxu0 0
        %1038 = vmatpush.bf16.msra.mxu0 %v1029
        %1039 = vmatmul.bf16.gmra.mxu0 %v981
        %v1040 = vpop.f32.mrf.mxu0
        %v1041 = vadd.f32 0.0, %v1040
        %v1042 = vpop.f32.mrf.mxu0
        %v1043 = vadd.f32 0.0, %v1042
        %1044 = vmatmul.bf16.gmra.mxu0 %v984
        %v1045 = vpop.f32.mrf.mxu0
        %v1046 = vadd.f32 0.0, %v1045
        %v1047 = vpop.f32.mrf.mxu0
        %v1048 = vadd.f32 0.0, %v1047
        %1049 = vmatmul.bf16.gmra.mxu0 %v987
        %v1050 = vpop.f32.mrf.mxu0
        %v1051 = vadd.f32 0.0, %v1050
        %v1052 = vpop.f32.mrf.mxu0
        %v1053 = vadd.f32 0.0, %v1052
        %1054 = vmatmul.bf16.gmra.mxu0 %v990
        %v1055 = vpop.f32.mrf.mxu0
        %v1056 = vadd.f32 0.0, %v1055
        %v1057 = vpop.f32.mrf.mxu0
        %v1058 = vadd.f32 0.0, %v1057
        %1059 = vmatmul.bf16.gmra.mxu0 %v993
        %v1060 = vpop.f32.mrf.mxu0
        %v1061 = vadd.f32 0.0, %v1060
        %v1062 = vpop.f32.mrf.mxu0
        %v1063 = vadd.f32 0.0, %v1062
        %1064 = vmatmul.bf16.gmra.mxu0 %v996
        %v1065 = vpop.f32.mrf.mxu0
        %v1066 = vadd.f32 0.0, %v1065
        %v1067 = vpop.f32.mrf.mxu0
        %v1068 = vadd.f32 0.0, %v1067
        %1069 = vmatmul.bf16.gmra.mxu0 %v999
        %v1070 = vpop.f32.mrf.mxu0
        %v1071 = vadd.f32 0.0, %v1070
        %v1072 = vpop.f32.mrf.mxu0
        %v1073 = vadd.f32 0.0, %v1072
        %1074 = vmatmul.bf16.gmra.mxu0 %v1002
        %v1075 = vpop.f32.mrf.mxu0
        %v1076 = vadd.f32 0.0, %v1075
        %v1077 = vpop.f32.mrf.mxu0
        %v1078 = vadd.f32 0.0, %v1077
        %1079 = vmatmul.bf16.gmra.mxu0 %v1005
        %v1080 = vpop.f32.mrf.mxu0
        %v1081 = vadd.f32 0.0, %v1080
        %v1082 = vpop.f32.mrf.mxu0
        %v1083 = vadd.f32 0.0, %v1082
        %1084 = vmatmul.bf16.gmra.mxu0 %v1008
        %v1085 = vpop.f32.mrf.mxu0
        %v1086 = vadd.f32 0.0, %v1085
        %v1087 = vpop.f32.mrf.mxu0
        %v1088 = vadd.f32 0.0, %v1087
        %1089 = vmatmul.bf16.gmra.mxu0 %v1011
        %v1090 = vpop.f32.mrf.mxu0
        %v1091 = vadd.f32 0.0, %v1090
        %v1092 = vpop.f32.mrf.mxu0
        %v1093 = vadd.f32 0.0, %v1092
        %1094 = vmatmul.bf16.gmra.mxu0 %v1014
        %v1095 = vpop.f32.mrf.mxu0
        %v1096 = vadd.f32 0.0, %v1095
        %v1097 = vpop.f32.mrf.mxu0
        %v1098 = vadd.f32 0.0, %v1097
        %1099 = vmatmul.bf16.gmra.mxu0 %v1017
        %v1100 = vpop.f32.mrf.mxu0
        %v1101 = vadd.f32 0.0, %v1100
        %v1102 = vpop.f32.mrf.mxu0
        %v1103 = vadd.f32 0.0, %v1102
        %1104 = vmatmul.bf16.gmra.mxu0 %v1020
        %v1105 = vpop.f32.mrf.mxu0
        %v1106 = vadd.f32 0.0, %v1105
        %v1107 = vpop.f32.mrf.mxu0
        %v1108 = vadd.f32 0.0, %v1107
        %1109 = vmatmul.bf16.gmra.mxu0 %v1023
        %v1110 = vpop.f32.mrf.mxu0
        %v1111 = vadd.f32 0.0, %v1110
        %v1112 = vpop.f32.mrf.mxu0
        %v1113 = vadd.f32 0.0, %v1112
        %1114 = vmatmul.bf16.gmra.mxu0 %v1026
        %v1115 = vpop.f32.mrf.mxu0
        %v1116 = vadd.f32 0.0, %v1115
        %v1117 = vpop.f32.mrf.mxu0
        %v1118 = vadd.f32 0.0, %v1117
        %1119 = vdwg.mxu0
        %v1120 = vadd.f32 %v851, %v1041
        %v1121 = vadd.f32 %v853, %v1043
        %v1122 = vadd.f32 %v856, %v1046
        %v1123 = vadd.f32 %v858, %v1048
        %v1124 = vadd.f32 %v861, %v1051
        %v1125 = vadd.f32 %v863, %v1053
        %v1126 = vadd.f32 %v866, %v1056
        %v1127 = vadd.f32 %v868, %v1058
        %v1128 = vadd.f32 %v871, %v1061
        %v1129 = vadd.f32 %v873, %v1063
        %v1130 = vadd.f32 %v876, %v1066
        %v1131 = vadd.f32 %v878, %v1068
        %v1132 = vadd.f32 %v881, %v1071
        %v1133 = vadd.f32 %v883, %v1073
        %v1134 = vadd.f32 %v886, %v1076
        %v1135 = vadd.f32 %v888, %v1078
        %v1136 = vadd.f32 %v891, %v1081
        %v1137 = vadd.f32 %v893, %v1083
        %v1138 = vadd.f32 %v896, %v1086
        %v1139 = vadd.f32 %v898, %v1088
        %v1140 = vadd.f32 %v901, %v1091
        %v1141 = vadd.f32 %v903, %v1093
        %v1142 = vadd.f32 %v906, %v1096
        %v1143 = vadd.f32 %v908, %v1098
        %v1144 = vadd.f32 %v911, %v1101
        %v1145 = vadd.f32 %v913, %v1103
        %v1146 = vadd.f32 %v916, %v1106
        %v1147 = vadd.f32 %v918, %v1108
        %v1148 = vadd.f32 %v921, %v1111
        %v1149 = vadd.f32 %v923, %v1113
        %v1150 = vadd.f32 %v926, %v1116
        %v1151 = vadd.f32 %v928, %v1118
        %s1152 = scalar_lea.vmem [#allocation2], 24
        %v1153 = vld [vmem:[%s1152] sm:$0xff]
        %v1154 = vld [vmem:[%s1152 + $0x8] sm:$0xff]
        %v1155 = vld [vmem:[%s1152 + $0x18] sm:$0xff]
        %v1156 = vld [vmem:[%s1152 + $0x20] sm:$0xff]
        %v1157 = vld [vmem:[%s1152 + $0x30] sm:$0xff]
        %v1158 = vld [vmem:[%s1152 + $0x38] sm:$0xff]
        %v1159 = vld [vmem:[%s1152 + $0x48] sm:$0xff]
        %v1160 = vld [vmem:[%s1152 + $0x50] sm:$0xff]
        %v1161 = vld [vmem:[%s1152 + $0x60] sm:$0xff]
        %v1162 = vld [vmem:[%s1152 + $0x68] sm:$0xff]
        %v1163 = vld [vmem:[%s1152 + $0x78] sm:$0xff]
        %v1164 = vld [vmem:[%s1152 + $0x80] sm:$0xff]
        %v1165 = vld [vmem:[%s1152 + $0x90] sm:$0xff]
        %v1166 = vld [vmem:[%s1152 + $0x98] sm:$0xff]
        %v1167 = vld [vmem:[%s1152 + $0xa8] sm:$0xff]
        %v1168 = vld [vmem:[%s1152 + $0xb0] sm:$0xff]
        %v1169 = vld [vmem:[%s1152 + $0xc0] sm:$0xff]
        %v1170 = vld [vmem:[%s1152 + $0xc8] sm:$0xff]
        %v1171 = vld [vmem:[%s1152 + $0xd8] sm:$0xff]
        %v1172 = vld [vmem:[%s1152 + $0xe0] sm:$0xff]
        %v1173 = vld [vmem:[%s1152 + $0xf0] sm:$0xff]
        %v1174 = vld [vmem:[%s1152 + $0xf8] sm:$0xff]
        %v1175 = vld [vmem:[%s1152 + $0x108] sm:$0xff]
        %v1176 = vld [vmem:[%s1152 + $0x110] sm:$0xff]
        %v1177 = vld [vmem:[%s1152 + $0x120] sm:$0xff]
        %v1178 = vld [vmem:[%s1152 + $0x128] sm:$0xff]
        %v1179 = vld [vmem:[%s1152 + $0x138] sm:$0xff]
        %v1180 = vld [vmem:[%s1152 + $0x140] sm:$0xff]
        %v1181 = vld [vmem:[%s1152 + $0x150] sm:$0xff]
        %v1182 = vld [vmem:[%s1152 + $0x158] sm:$0xff]
        %v1183 = vld [vmem:[%s1152 + $0x168] sm:$0xff]
        %v1184 = vld [vmem:[%s1152 + $0x170] sm:$0xff]
        %v1185 = vpack.c.bf16 %v1154, %v1153
        %v1186 = vpack.c.bf16 %v1156, %v1155
        %v1187 = vpack.c.bf16 %v1158, %v1157
        %v1188 = vpack.c.bf16 %v1160, %v1159
        %v1189 = vpack.c.bf16 %v1162, %v1161
        %v1190 = vpack.c.bf16 %v1164, %v1163
        %v1191 = vpack.c.bf16 %v1166, %v1165
        %v1192 = vpack.c.bf16 %v1168, %v1167
        %v1193 = vpack.c.bf16 %v1170, %v1169
        %v1194 = vpack.c.bf16 %v1172, %v1171
        %v1195 = vpack.c.bf16 %v1174, %v1173
        %v1196 = vpack.c.bf16 %v1176, %v1175
        %v1197 = vpack.c.bf16 %v1178, %v1177
        %v1198 = vpack.c.bf16 %v1180, %v1179
        %v1199 = vpack.c.bf16 %v1182, %v1181
        %v1200 = vpack.c.bf16 %v1184, %v1183
        %s1201 = scalar_lea.vmem %s1, 6
        %v1202 = vld [vmem:[%s1201] sm:$0x3]
        %v1204 = vsel %vm440, %v1185, 0
        %v1207 = vsel %vm440, %v1186, 0
        %v1210 = vsel %vm440, %v1187, 0
        %v1213 = vsel %vm440, %v1188, 0
        %v1216 = vsel %vm440, %v1189, 0
        %v1219 = vsel %vm440, %v1190, 0
        %v1222 = vsel %vm440, %v1191, 0
        %v1225 = vsel %vm440, %v1192, 0
        %v1228 = vsel %vm440, %v1193, 0
        %v1231 = vsel %vm440, %v1194, 0
        %v1234 = vsel %vm440, %v1195, 0
        %v1237 = vsel %vm440, %v1196, 0
        %v1240 = vsel %vm440, %v1197, 0
        %v1243 = vsel %vm440, %v1198, 0
        %v1246 = vsel %vm440, %v1199, 0
        %v1249 = vsel %vm440, %v1200, 0
        %v1252 = vsel %vm697, %v1202, 0
        %1254 = vmatpush.bf16.msra.mxu0 0
        %1255 = vmatpush.bf16.msra.mxu0 0
        %1256 = vmatpush.bf16.msra.mxu0 0
        %1257 = vmatpush.bf16.msra.mxu0 0
        %1258 = vmatpush.bf16.msra.mxu0 0
        %1259 = vmatpush.bf16.msra.mxu0 0
        %1260 = vmatpush.bf16.msra.mxu0 0
        %1261 = vmatpush.bf16.msra.mxu0 %v1252
        %1262 = vmatmul.bf16.gmra.mxu0 %v1204
        %v1263 = vpop.f32.mrf.mxu0
        %v1264 = vadd.f32 0.0, %v1263
        %v1265 = vpop.f32.mrf.mxu0
        %v1266 = vadd.f32 0.0, %v1265
        %1267 = vmatmul.bf16.gmra.mxu0 %v1207
        %v1268 = vpop.f32.mrf.mxu0
        %v1269 = vadd.f32 0.0, %v1268
        %v1270 = vpop.f32.mrf.mxu0
        %v1271 = vadd.f32 0.0, %v1270
        %1272 = vmatmul.bf16.gmra.mxu0 %v1210
        %v1273 = vpop.f32.mrf.mxu0
        %v1274 = vadd.f32 0.0, %v1273
        %v1275 = vpop.f32.mrf.mxu0
        %v1276 = vadd.f32 0.0, %v1275
        %1277 = vmatmul.bf16.gmra.mxu0 %v1213
        %v1278 = vpop.f32.mrf.mxu0
        %v1279 = vadd.f32 0.0, %v1278
        %v1280 = vpop.f32.mrf.mxu0
        %v1281 = vadd.f32 0.0, %v1280
        %1282 = vmatmul.bf16.gmra.mxu0 %v1216
        %v1283 = vpop.f32.mrf.mxu0
        %v1284 = vadd.f32 0.0, %v1283
        %v1285 = vpop.f32.mrf.mxu0
        %v1286 = vadd.f32 0.0, %v1285
        %1287 = vmatmul.bf16.gmra.mxu0 %v1219
        %v1288 = vpop.f32.mrf.mxu0
        %v1289 = vadd.f32 0.0, %v1288
        %v1290 = vpop.f32.mrf.mxu0
        %v1291 = vadd.f32 0.0, %v1290
        %1292 = vmatmul.bf16.gmra.mxu0 %v1222
        %v1293 = vpop.f32.mrf.mxu0
        %v1294 = vadd.f32 0.0, %v1293
        %v1295 = vpop.f32.mrf.mxu0
        %v1296 = vadd.f32 0.0, %v1295
        %1297 = vmatmul.bf16.gmra.mxu0 %v1225
        %v1298 = vpop.f32.mrf.mxu0
        %v1299 = vadd.f32 0.0, %v1298
        %v1300 = vpop.f32.mrf.mxu0
        %v1301 = vadd.f32 0.0, %v1300
        %1302 = vmatmul.bf16.gmra.mxu0 %v1228
        %v1303 = vpop.f32.mrf.mxu0
        %v1304 = vadd.f32 0.0, %v1303
        %v1305 = vpop.f32.mrf.mxu0
        %v1306 = vadd.f32 0.0, %v1305
        %1307 = vmatmul.bf16.gmra.mxu0 %v1231
        %v1308 = vpop.f32.mrf.mxu0
        %v1309 = vadd.f32 0.0, %v1308
        %v1310 = vpop.f32.mrf.mxu0
        %v1311 = vadd.f32 0.0, %v1310
        %1312 = vmatmul.bf16.gmra.mxu0 %v1234
        %v1313 = vpop.f32.mrf.mxu0
        %v1314 = vadd.f32 0.0, %v1313
        %v1315 = vpop.f32.mrf.mxu0
        %v1316 = vadd.f32 0.0, %v1315
        %1317 = vmatmul.bf16.gmra.mxu0 %v1237
        %v1318 = vpop.f32.mrf.mxu0
        %v1319 = vadd.f32 0.0, %v1318
        %v1320 = vpop.f32.mrf.mxu0
        %v1321 = vadd.f32 0.0, %v1320
        %1322 = vmatmul.bf16.gmra.mxu0 %v1240
        %v1323 = vpop.f32.mrf.mxu0
        %v1324 = vadd.f32 0.0, %v1323
        %v1325 = vpop.f32.mrf.mxu0
        %v1326 = vadd.f32 0.0, %v1325
        %1327 = vmatmul.bf16.gmra.mxu0 %v1243
        %v1328 = vpop.f32.mrf.mxu0
        %v1329 = vadd.f32 0.0, %v1328
        %v1330 = vpop.f32.mrf.mxu0
        %v1331 = vadd.f32 0.0, %v1330
        %1332 = vmatmul.bf16.gmra.mxu0 %v1246
        %v1333 = vpop.f32.mrf.mxu0
        %v1334 = vadd.f32 0.0, %v1333
        %v1335 = vpop.f32.mrf.mxu0
        %v1336 = vadd.f32 0.0, %v1335
        %1337 = vmatmul.bf16.gmra.mxu0 %v1249
        %v1338 = vpop.f32.mrf.mxu0
        %v1339 = vadd.f32 0.0, %v1338
        %v1340 = vpop.f32.mrf.mxu0
        %v1341 = vadd.f32 0.0, %v1340
        %1342 = vdwg.mxu0
        %v1343 = vadd.f32 %v1120, %v1264
        %v1344 = vadd.f32 %v1121, %v1266
        %v1345 = vadd.f32 %v1122, %v1269
        %v1346 = vadd.f32 %v1123, %v1271
        %v1347 = vadd.f32 %v1124, %v1274
        %v1348 = vadd.f32 %v1125, %v1276
        %v1349 = vadd.f32 %v1126, %v1279
        %v1350 = vadd.f32 %v1127, %v1281
        %v1351 = vadd.f32 %v1128, %v1284
        %v1352 = vadd.f32 %v1129, %v1286
        %v1353 = vadd.f32 %v1130, %v1289
        %v1354 = vadd.f32 %v1131, %v1291
        %v1355 = vadd.f32 %v1132, %v1294
        %v1356 = vadd.f32 %v1133, %v1296
        %v1357 = vadd.f32 %v1134, %v1299
        %v1358 = vadd.f32 %v1135, %v1301
        %v1359 = vadd.f32 %v1136, %v1304
        %v1360 = vadd.f32 %v1137, %v1306
        %v1361 = vadd.f32 %v1138, %v1309
        %v1362 = vadd.f32 %v1139, %v1311
        %v1363 = vadd.f32 %v1140, %v1314
        %v1364 = vadd.f32 %v1141, %v1316
        %v1365 = vadd.f32 %v1142, %v1319
        %v1366 = vadd.f32 %v1143, %v1321
        %v1367 = vadd.f32 %v1144, %v1324
        %v1368 = vadd.f32 %v1145, %v1326
        %v1369 = vadd.f32 %v1146, %v1329
        %v1370 = vadd.f32 %v1147, %v1331
        %v1371 = vadd.f32 %v1148, %v1334
        %v1372 = vadd.f32 %v1149, %v1336
        %v1373 = vadd.f32 %v1150, %v1339
        %v1374 = vadd.f32 %v1151, %v1341
        %v1375 = vld [vmem:[%s1152 + $0x1] sm:$0xff]
        %v1376 = vld [vmem:[%s1152 + $0x9] sm:$0xff]
        %v1377 = vld [vmem:[%s1152 + $0x19] sm:$0xff]
        %v1378 = vld [vmem:[%s1152 + $0x21] sm:$0xff]
        %v1379 = vld [vmem:[%s1152 + $0x31] sm:$0xff]
        %v1380 = vld [vmem:[%s1152 + $0x39] sm:$0xff]
        %v1381 = vld [vmem:[%s1152 + $0x49] sm:$0xff]
        %v1382 = vld [vmem:[%s1152 + $0x51] sm:$0xff]
        %v1383 = vld [vmem:[%s1152 + $0x61] sm:$0xff]
        %v1384 = vld [vmem:[%s1152 + $0x69] sm:$0xff]
        %v1385 = vld [vmem:[%s1152 + $0x79] sm:$0xff]
        %v1386 = vld [vmem:[%s1152 + $0x81] sm:$0xff]
        %v1387 = vld [vmem:[%s1152 + $0x91] sm:$0xff]
        %v1388 = vld [vmem:[%s1152 + $0x99] sm:$0xff]
        %v1389 = vld [vmem:[%s1152 + $0xa9] sm:$0xff]
        %v1390 = vld [vmem:[%s1152 + $0xb1] sm:$0xff]
        %v1391 = vld [vmem:[%s1152 + $0xc1] sm:$0xff]
        %v1392 = vld [vmem:[%s1152 + $0xc9] sm:$0xff]
        %v1393 = vld [vmem:[%s1152 + $0xd9] sm:$0xff]
        %v1394 = vld [vmem:[%s1152 + $0xe1] sm:$0xff]
        %v1395 = vld [vmem:[%s1152 + $0xf1] sm:$0xff]
        %v1396 = vld [vmem:[%s1152 + $0xf9] sm:$0xff]
        %v1397 = vld [vmem:[%s1152 + $0x109] sm:$0xff]
        %v1398 = vld [vmem:[%s1152 + $0x111] sm:$0xff]
        %v1399 = vld [vmem:[%s1152 + $0x121] sm:$0xff]
        %v1400 = vld [vmem:[%s1152 + $0x129] sm:$0xff]
        %v1401 = vld [vmem:[%s1152 + $0x139] sm:$0xff]
        %v1402 = vld [vmem:[%s1152 + $0x141] sm:$0xff]
        %v1403 = vld [vmem:[%s1152 + $0x151] sm:$0xff]
        %v1404 = vld [vmem:[%s1152 + $0x159] sm:$0xff]
        %v1405 = vld [vmem:[%s1152 + $0x169] sm:$0xff]
        %v1406 = vld [vmem:[%s1152 + $0x171] sm:$0xff]
        %v1407 = vpack.c.bf16 %v1376, %v1375
        %v1408 = vpack.c.bf16 %v1378, %v1377
        %v1409 = vpack.c.bf16 %v1380, %v1379
        %v1410 = vpack.c.bf16 %v1382, %v1381
        %v1411 = vpack.c.bf16 %v1384, %v1383
        %v1412 = vpack.c.bf16 %v1386, %v1385
        %v1413 = vpack.c.bf16 %v1388, %v1387
        %v1414 = vpack.c.bf16 %v1390, %v1389
        %v1415 = vpack.c.bf16 %v1392, %v1391
        %v1416 = vpack.c.bf16 %v1394, %v1393
        %v1417 = vpack.c.bf16 %v1396, %v1395
        %v1418 = vpack.c.bf16 %v1398, %v1397
        %v1419 = vpack.c.bf16 %v1400, %v1399
        %v1420 = vpack.c.bf16 %v1402, %v1401
        %v1421 = vpack.c.bf16 %v1404, %v1403
        %v1422 = vpack.c.bf16 %v1406, %v1405
        %s1423 = scalar_lea.vmem %s1, 8
        %v1424 = vld [vmem:[%s1423] sm:$0x3]
        %v1426 = vsel %vm440, %v1407, 0
        %v1429 = vsel %vm440, %v1408, 0
        %v1432 = vsel %vm440, %v1409, 0
        %v1435 = vsel %vm440, %v1410, 0
        %v1438 = vsel %vm440, %v1411, 0
        %v1441 = vsel %vm440, %v1412, 0
        %v1444 = vsel %vm440, %v1413, 0
        %v1447 = vsel %vm440, %v1414, 0
        %v1450 = vsel %vm440, %v1415, 0
        %v1453 = vsel %vm440, %v1416, 0
        %v1456 = vsel %vm440, %v1417, 0
        %v1459 = vsel %vm440, %v1418, 0
        %v1462 = vsel %vm440, %v1419, 0
        %v1465 = vsel %vm440, %v1420, 0
        %v1468 = vsel %vm440, %v1421, 0
        %v1471 = vsel %vm440, %v1422, 0
        %v1474 = vsel %vm697, %v1424, 0
        %1476 = vmatpush.bf16.msra.mxu0 0
        %1477 = vmatpush.bf16.msra.mxu0 0
        %1478 = vmatpush.bf16.msra.mxu0 0
        %1479 = vmatpush.bf16.msra.mxu0 0
        %1480 = vmatpush.bf16.msra.mxu0 0
        %1481 = vmatpush.bf16.msra.mxu0 0
        %1482 = vmatpush.bf16.msra.mxu0 0
        %1483 = vmatpush.bf16.msra.mxu0 %v1474
        %1484 = vmatmul.bf16.gmra.mxu0 %v1426
        %v1485 = vpop.f32.mrf.mxu0
        %v1486 = vadd.f32 0.0, %v1485
        %v1487 = vpop.f32.mrf.mxu0
        %v1488 = vadd.f32 0.0, %v1487
        %1489 = vmatmul.bf16.gmra.mxu0 %v1429
        %v1490 = vpop.f32.mrf.mxu0
        %v1491 = vadd.f32 0.0, %v1490
        %v1492 = vpop.f32.mrf.mxu0
        %v1493 = vadd.f32 0.0, %v1492
        %1494 = vmatmul.bf16.gmra.mxu0 %v1432
        %v1495 = vpop.f32.mrf.mxu0
        %v1496 = vadd.f32 0.0, %v1495
        %v1497 = vpop.f32.mrf.mxu0
        %v1498 = vadd.f32 0.0, %v1497
        %1499 = vmatmul.bf16.gmra.mxu0 %v1435
        %v1500 = vpop.f32.mrf.mxu0
        %v1501 = vadd.f32 0.0, %v1500
        %v1502 = vpop.f32.mrf.mxu0
        %v1503 = vadd.f32 0.0, %v1502
        %1504 = vmatmul.bf16.gmra.mxu0 %v1438
        %v1505 = vpop.f32.mrf.mxu0
        %v1506 = vadd.f32 0.0, %v1505
        %v1507 = vpop.f32.mrf.mxu0
        %v1508 = vadd.f32 0.0, %v1507
        %1509 = vmatmul.bf16.gmra.mxu0 %v1441
        %v1510 = vpop.f32.mrf.mxu0
        %v1511 = vadd.f32 0.0, %v1510
        %v1512 = vpop.f32.mrf.mxu0
        %v1513 = vadd.f32 0.0, %v1512
        %1514 = vmatmul.bf16.gmra.mxu0 %v1444
        %v1515 = vpop.f32.mrf.mxu0
        %v1516 = vadd.f32 0.0, %v1515
        %v1517 = vpop.f32.mrf.mxu0
        %v1518 = vadd.f32 0.0, %v1517
        %1519 = vmatmul.bf16.gmra.mxu0 %v1447
        %v1520 = vpop.f32.mrf.mxu0
        %v1521 = vadd.f32 0.0, %v1520
        %v1522 = vpop.f32.mrf.mxu0
        %v1523 = vadd.f32 0.0, %v1522
        %1524 = vmatmul.bf16.gmra.mxu0 %v1450
        %v1525 = vpop.f32.mrf.mxu0
        %v1526 = vadd.f32 0.0, %v1525
        %v1527 = vpop.f32.mrf.mxu0
        %v1528 = vadd.f32 0.0, %v1527
        %1529 = vmatmul.bf16.gmra.mxu0 %v1453
        %v1530 = vpop.f32.mrf.mxu0
        %v1531 = vadd.f32 0.0, %v1530
        %v1532 = vpop.f32.mrf.mxu0
        %v1533 = vadd.f32 0.0, %v1532
        %1534 = vmatmul.bf16.gmra.mxu0 %v1456
        %v1535 = vpop.f32.mrf.mxu0
        %v1536 = vadd.f32 0.0, %v1535
        %v1537 = vpop.f32.mrf.mxu0
        %v1538 = vadd.f32 0.0, %v1537
        %1539 = vmatmul.bf16.gmra.mxu0 %v1459
        %v1540 = vpop.f32.mrf.mxu0
        %v1541 = vadd.f32 0.0, %v1540
        %v1542 = vpop.f32.mrf.mxu0
        %v1543 = vadd.f32 0.0, %v1542
        %1544 = vmatmul.bf16.gmra.mxu0 %v1462
        %v1545 = vpop.f32.mrf.mxu0
        %v1546 = vadd.f32 0.0, %v1545
        %v1547 = vpop.f32.mrf.mxu0
        %v1548 = vadd.f32 0.0, %v1547
        %1549 = vmatmul.bf16.gmra.mxu0 %v1465
        %v1550 = vpop.f32.mrf.mxu0
        %v1551 = vadd.f32 0.0, %v1550
        %v1552 = vpop.f32.mrf.mxu0
        %v1553 = vadd.f32 0.0, %v1552
        %1554 = vmatmul.bf16.gmra.mxu0 %v1468
        %v1555 = vpop.f32.mrf.mxu0
        %v1556 = vadd.f32 0.0, %v1555
        %v1557 = vpop.f32.mrf.mxu0
        %v1558 = vadd.f32 0.0, %v1557
        %1559 = vmatmul.bf16.gmra.mxu0 %v1471
        %v1560 = vpop.f32.mrf.mxu0
        %v1561 = vadd.f32 0.0, %v1560
        %v1562 = vpop.f32.mrf.mxu0
        %v1563 = vadd.f32 0.0, %v1562
        %1564 = vdwg.mxu0
        %v1565 = vadd.f32 %v1343, %v1486
        %v1566 = vadd.f32 %v1344, %v1488
        %v1567 = vadd.f32 %v1345, %v1491
        %v1568 = vadd.f32 %v1346, %v1493
        %v1569 = vadd.f32 %v1347, %v1496
        %v1570 = vadd.f32 %v1348, %v1498
        %v1571 = vadd.f32 %v1349, %v1501
        %v1572 = vadd.f32 %v1350, %v1503
        %v1573 = vadd.f32 %v1351, %v1506
        %v1574 = vadd.f32 %v1352, %v1508
        %v1575 = vadd.f32 %v1353, %v1511
        %v1576 = vadd.f32 %v1354, %v1513
        %v1577 = vadd.f32 %v1355, %v1516
        %v1578 = vadd.f32 %v1356, %v1518
        %v1579 = vadd.f32 %v1357, %v1521
        %v1580 = vadd.f32 %v1358, %v1523
        %v1581 = vadd.f32 %v1359, %v1526
        %v1582 = vadd.f32 %v1360, %v1528
        %v1583 = vadd.f32 %v1361, %v1531
        %v1584 = vadd.f32 %v1362, %v1533
        %v1585 = vadd.f32 %v1363, %v1536
        %v1586 = vadd.f32 %v1364, %v1538
        %v1587 = vadd.f32 %v1365, %v1541
        %v1588 = vadd.f32 %v1366, %v1543
        %v1589 = vadd.f32 %v1367, %v1546
        %v1590 = vadd.f32 %v1368, %v1548
        %v1591 = vadd.f32 %v1369, %v1551
        %v1592 = vadd.f32 %v1370, %v1553
        %v1593 = vadd.f32 %v1371, %v1556
        %v1594 = vadd.f32 %v1372, %v1558
        %v1595 = vadd.f32 %v1373, %v1561
        %v1596 = vadd.f32 %v1374, %v1563
        %v1597 = vld [vmem:[%s1152 + $0x2] sm:$0xff]
        %v1598 = vld [vmem:[%s1152 + $0xa] sm:$0xff]
        %v1599 = vld [vmem:[%s1152 + $0x1a] sm:$0xff]
        %v1600 = vld [vmem:[%s1152 + $0x22] sm:$0xff]
        %v1601 = vld [vmem:[%s1152 + $0x32] sm:$0xff]
        %v1602 = vld [vmem:[%s1152 + $0x3a] sm:$0xff]
        %v1603 = vld [vmem:[%s1152 + $0x4a] sm:$0xff]
        %v1604 = vld [vmem:[%s1152 + $0x52] sm:$0xff]
        %v1605 = vld [vmem:[%s1152 + $0x62] sm:$0xff]
        %v1606 = vld [vmem:[%s1152 + $0x6a] sm:$0xff]
        %v1607 = vld [vmem:[%s1152 + $0x7a] sm:$0xff]
        %v1608 = vld [vmem:[%s1152 + $0x82] sm:$0xff]
        %v1609 = vld [vmem:[%s1152 + $0x92] sm:$0xff]
        %v1610 = vld [vmem:[%s1152 + $0x9a] sm:$0xff]
        %v1611 = vld [vmem:[%s1152 + $0xaa] sm:$0xff]
        %v1612 = vld [vmem:[%s1152 + $0xb2] sm:$0xff]
        %v1613 = vld [vmem:[%s1152 + $0xc2] sm:$0xff]
        %v1614 = vld [vmem:[%s1152 + $0xca] sm:$0xff]
        %v1615 = vld [vmem:[%s1152 + $0xda] sm:$0xff]
        %v1616 = vld [vmem:[%s1152 + $0xe2] sm:$0xff]
        %v1617 = vld [vmem:[%s1152 + $0xf2] sm:$0xff]
        %v1618 = vld [vmem:[%s1152 + $0xfa] sm:$0xff]
        %v1619 = vld [vmem:[%s1152 + $0x10a] sm:$0xff]
        %v1620 = vld [vmem:[%s1152 + $0x112] sm:$0xff]
        %v1621 = vld [vmem:[%s1152 + $0x122] sm:$0xff]
        %v1622 = vld [vmem:[%s1152 + $0x12a] sm:$0xff]
        %v1623 = vld [vmem:[%s1152 + $0x13a] sm:$0xff]
        %v1624 = vld [vmem:[%s1152 + $0x142] sm:$0xff]
        %v1625 = vld [vmem:[%s1152 + $0x152] sm:$0xff]
        %v1626 = vld [vmem:[%s1152 + $0x15a] sm:$0xff]
        %v1627 = vld [vmem:[%s1152 + $0x16a] sm:$0xff]
        %v1628 = vld [vmem:[%s1152 + $0x172] sm:$0xff]
        %v1629 = vpack.c.bf16 %v1598, %v1597
        %v1630 = vpack.c.bf16 %v1600, %v1599
        %v1631 = vpack.c.bf16 %v1602, %v1601
        %v1632 = vpack.c.bf16 %v1604, %v1603
        %v1633 = vpack.c.bf16 %v1606, %v1605
        %v1634 = vpack.c.bf16 %v1608, %v1607
        %v1635 = vpack.c.bf16 %v1610, %v1609
        %v1636 = vpack.c.bf16 %v1612, %v1611
        %v1637 = vpack.c.bf16 %v1614, %v1613
        %v1638 = vpack.c.bf16 %v1616, %v1615
        %v1639 = vpack.c.bf16 %v1618, %v1617
        %v1640 = vpack.c.bf16 %v1620, %v1619
        %v1641 = vpack.c.bf16 %v1622, %v1621
        %v1642 = vpack.c.bf16 %v1624, %v1623
        %v1643 = vpack.c.bf16 %v1626, %v1625
        %v1644 = vpack.c.bf16 %v1628, %v1627
        %s1645 = scalar_lea.vmem %s1, 10
        %v1646 = vld [vmem:[%s1645] sm:$0x3]
        %v1648 = vsel %vm440, %v1629, 0
        %v1651 = vsel %vm440, %v1630, 0
        %v1654 = vsel %vm440, %v1631, 0
        %v1657 = vsel %vm440, %v1632, 0
        %v1660 = vsel %vm440, %v1633, 0
        %v1663 = vsel %vm440, %v1634, 0
        %v1666 = vsel %vm440, %v1635, 0
        %v1669 = vsel %vm440, %v1636, 0
        %v1672 = vsel %vm440, %v1637, 0
        %v1675 = vsel %vm440, %v1638, 0
        %v1678 = vsel %vm440, %v1639, 0
        %v1681 = vsel %vm440, %v1640, 0
        %v1684 = vsel %vm440, %v1641, 0
        %v1687 = vsel %vm440, %v1642, 0
        %v1690 = vsel %vm440, %v1643, 0
        %v1693 = vsel %vm440, %v1644, 0
        %v1696 = vsel %vm697, %v1646, 0
        %1698 = vmatpush.bf16.msra.mxu0 0
        %1699 = vmatpush.bf16.msra.mxu0 0
        %1700 = vmatpush.bf16.msra.mxu0 0
        %1701 = vmatpush.bf16.msra.mxu0 0
        %1702 = vmatpush.bf16.msra.mxu0 0
        %1703 = vmatpush.bf16.msra.mxu0 0
        %1704 = vmatpush.bf16.msra.mxu0 0
        %1705 = vmatpush.bf16.msra.mxu0 %v1696
        %1706 = vmatmul.bf16.gmra.mxu0 %v1648
        %v1707 = vpop.f32.mrf.mxu0
        %v1708 = vadd.f32 0.0, %v1707
        %v1709 = vpop.f32.mrf.mxu0
        %v1710 = vadd.f32 0.0, %v1709
        %1711 = vmatmul.bf16.gmra.mxu0 %v1651
        %v1712 = vpop.f32.mrf.mxu0
        %v1713 = vadd.f32 0.0, %v1712
        %v1714 = vpop.f32.mrf.mxu0
        %v1715 = vadd.f32 0.0, %v1714
        %1716 = vmatmul.bf16.gmra.mxu0 %v1654
        %v1717 = vpop.f32.mrf.mxu0
        %v1718 = vadd.f32 0.0, %v1717
        %v1719 = vpop.f32.mrf.mxu0
        %v1720 = vadd.f32 0.0, %v1719
        %1721 = vmatmul.bf16.gmra.mxu0 %v1657
        %v1722 = vpop.f32.mrf.mxu0
        %v1723 = vadd.f32 0.0, %v1722
        %v1724 = vpop.f32.mrf.mxu0
        %v1725 = vadd.f32 0.0, %v1724
        %1726 = vmatmul.bf16.gmra.mxu0 %v1660
        %v1727 = vpop.f32.mrf.mxu0
        %v1728 = vadd.f32 0.0, %v1727
        %v1729 = vpop.f32.mrf.mxu0
        %v1730 = vadd.f32 0.0, %v1729
        %1731 = vmatmul.bf16.gmra.mxu0 %v1663
        %v1732 = vpop.f32.mrf.mxu0
        %v1733 = vadd.f32 0.0, %v1732
        %v1734 = vpop.f32.mrf.mxu0
        %v1735 = vadd.f32 0.0, %v1734
        %1736 = vmatmul.bf16.gmra.mxu0 %v1666
        %v1737 = vpop.f32.mrf.mxu0
        %v1738 = vadd.f32 0.0, %v1737
        %v1739 = vpop.f32.mrf.mxu0
        %v1740 = vadd.f32 0.0, %v1739
        %1741 = vmatmul.bf16.gmra.mxu0 %v1669
        %v1742 = vpop.f32.mrf.mxu0
        %v1743 = vadd.f32 0.0, %v1742
        %v1744 = vpop.f32.mrf.mxu0
        %v1745 = vadd.f32 0.0, %v1744
        %1746 = vmatmul.bf16.gmra.mxu0 %v1672
        %v1747 = vpop.f32.mrf.mxu0
        %v1748 = vadd.f32 0.0, %v1747
        %v1749 = vpop.f32.mrf.mxu0
        %v1750 = vadd.f32 0.0, %v1749
        %1751 = vmatmul.bf16.gmra.mxu0 %v1675
        %v1752 = vpop.f32.mrf.mxu0
        %v1753 = vadd.f32 0.0, %v1752
        %v1754 = vpop.f32.mrf.mxu0
        %v1755 = vadd.f32 0.0, %v1754
        %1756 = vmatmul.bf16.gmra.mxu0 %v1678
        %v1757 = vpop.f32.mrf.mxu0
        %v1758 = vadd.f32 0.0, %v1757
        %v1759 = vpop.f32.mrf.mxu0
        %v1760 = vadd.f32 0.0, %v1759
        %1761 = vmatmul.bf16.gmra.mxu0 %v1681
        %v1762 = vpop.f32.mrf.mxu0
        %v1763 = vadd.f32 0.0, %v1762
        %v1764 = vpop.f32.mrf.mxu0
        %v1765 = vadd.f32 0.0, %v1764
        %1766 = vmatmul.bf16.gmra.mxu0 %v1684
        %v1767 = vpop.f32.mrf.mxu0
        %v1768 = vadd.f32 0.0, %v1767
        %v1769 = vpop.f32.mrf.mxu0
        %v1770 = vadd.f32 0.0, %v1769
        %1771 = vmatmul.bf16.gmra.mxu0 %v1687
        %v1772 = vpop.f32.mrf.mxu0
        %v1773 = vadd.f32 0.0, %v1772
        %v1774 = vpop.f32.mrf.mxu0
        %v1775 = vadd.f32 0.0, %v1774
        %1776 = vmatmul.bf16.gmra.mxu0 %v1690
        %v1777 = vpop.f32.mrf.mxu0
        %v1778 = vadd.f32 0.0, %v1777
        %v1779 = vpop.f32.mrf.mxu0
        %v1780 = vadd.f32 0.0, %v1779
        %1781 = vmatmul.bf16.gmra.mxu0 %v1693
        %v1782 = vpop.f32.mrf.mxu0
        %v1783 = vadd.f32 0.0, %v1782
        %v1784 = vpop.f32.mrf.mxu0
        %v1785 = vadd.f32 0.0, %v1784
        %1786 = vdwg.mxu0
        %v1787 = vadd.f32 %v1565, %v1708
        %v1788 = vadd.f32 %v1566, %v1710
        %v1789 = vadd.f32 %v1567, %v1713
        %v1790 = vadd.f32 %v1568, %v1715
        %v1791 = vadd.f32 %v1569, %v1718
        %v1792 = vadd.f32 %v1570, %v1720
        %v1793 = vadd.f32 %v1571, %v1723
        %v1794 = vadd.f32 %v1572, %v1725
        %v1795 = vadd.f32 %v1573, %v1728
        %v1796 = vadd.f32 %v1574, %v1730
        %v1797 = vadd.f32 %v1575, %v1733
        %v1798 = vadd.f32 %v1576, %v1735
        %v1799 = vadd.f32 %v1577, %v1738
        %v1800 = vadd.f32 %v1578, %v1740
        %v1801 = vadd.f32 %v1579, %v1743
        %v1802 = vadd.f32 %v1580, %v1745
        %v1803 = vadd.f32 %v1581, %v1748
        %v1804 = vadd.f32 %v1582, %v1750
        %v1805 = vadd.f32 %v1583, %v1753
        %v1806 = vadd.f32 %v1584, %v1755
        %v1807 = vadd.f32 %v1585, %v1758
        %v1808 = vadd.f32 %v1586, %v1760
        %v1809 = vadd.f32 %v1587, %v1763
        %v1810 = vadd.f32 %v1588, %v1765
        %v1811 = vadd.f32 %v1589, %v1768
        %v1812 = vadd.f32 %v1590, %v1770
        %v1813 = vadd.f32 %v1591, %v1773
        %v1814 = vadd.f32 %v1592, %v1775
        %v1815 = vadd.f32 %v1593, %v1778
        %v1816 = vadd.f32 %v1594, %v1780
        %v1817 = vadd.f32 %v1595, %v1783
        %v1818 = vadd.f32 %v1596, %v1785
        %s1819 = scalar_lea.vmem [#allocation2], 48
        %v1820 = vld [vmem:[%s1819] sm:$0xff]
        %v1821 = vld [vmem:[%s1819 + $0x8] sm:$0xff]
        %v1822 = vld [vmem:[%s1819 + $0x18] sm:$0xff]
        %v1823 = vld [vmem:[%s1819 + $0x20] sm:$0xff]
        %v1824 = vld [vmem:[%s1819 + $0x30] sm:$0xff]
        %v1825 = vld [vmem:[%s1819 + $0x38] sm:$0xff]
        %v1826 = vld [vmem:[%s1819 + $0x48] sm:$0xff]
        %v1827 = vld [vmem:[%s1819 + $0x50] sm:$0xff]
        %v1828 = vld [vmem:[%s1819 + $0x60] sm:$0xff]
        %v1829 = vld [vmem:[%s1819 + $0x68] sm:$0xff]
        %v1830 = vld [vmem:[%s1819 + $0x78] sm:$0xff]
        %v1831 = vld [vmem:[%s1819 + $0x80] sm:$0xff]
        %v1832 = vld [vmem:[%s1819 + $0x90] sm:$0xff]
        %v1833 = vld [vmem:[%s1819 + $0x98] sm:$0xff]
        %v1834 = vld [vmem:[%s1819 + $0xa8] sm:$0xff]
        %v1835 = vld [vmem:[%s1819 + $0xb0] sm:$0xff]
        %v1836 = vld [vmem:[%s1819 + $0xc0] sm:$0xff]
        %v1837 = vld [vmem:[%s1819 + $0xc8] sm:$0xff]
        %v1838 = vld [vmem:[%s1819 + $0xd8] sm:$0xff]
        %v1839 = vld [vmem:[%s1819 + $0xe0] sm:$0xff]
        %v1840 = vld [vmem:[%s1819 + $0xf0] sm:$0xff]
        %v1841 = vld [vmem:[%s1819 + $0xf8] sm:$0xff]
        %v1842 = vld [vmem:[%s1819 + $0x108] sm:$0xff]
        %v1843 = vld [vmem:[%s1819 + $0x110] sm:$0xff]
        %v1844 = vld [vmem:[%s1819 + $0x120] sm:$0xff]
        %v1845 = vld [vmem:[%s1819 + $0x128] sm:$0xff]
        %v1846 = vld [vmem:[%s1819 + $0x138] sm:$0xff]
        %v1847 = vld [vmem:[%s1819 + $0x140] sm:$0xff]
        %v1848 = vld [vmem:[%s1819 + $0x150] sm:$0xff]
        %v1849 = vld [vmem:[%s1819 + $0x158] sm:$0xff]
        %v1850 = vld [vmem:[%s1819 + $0x168] sm:$0xff]
        %v1851 = vld [vmem:[%s1819 + $0x170] sm:$0xff]
        %v1852 = vpack.c.bf16 %v1821, %v1820
        %v1853 = vpack.c.bf16 %v1823, %v1822
        %v1854 = vpack.c.bf16 %v1825, %v1824
        %v1855 = vpack.c.bf16 %v1827, %v1826
        %v1856 = vpack.c.bf16 %v1829, %v1828
        %v1857 = vpack.c.bf16 %v1831, %v1830
        %v1858 = vpack.c.bf16 %v1833, %v1832
        %v1859 = vpack.c.bf16 %v1835, %v1834
        %v1860 = vpack.c.bf16 %v1837, %v1836
        %v1861 = vpack.c.bf16 %v1839, %v1838
        %v1862 = vpack.c.bf16 %v1841, %v1840
        %v1863 = vpack.c.bf16 %v1843, %v1842
        %v1864 = vpack.c.bf16 %v1845, %v1844
        %v1865 = vpack.c.bf16 %v1847, %v1846
        %v1866 = vpack.c.bf16 %v1849, %v1848
        %v1867 = vpack.c.bf16 %v1851, %v1850
        %s1868 = scalar_lea.vmem %s1, 12
        %v1869 = vld [vmem:[%s1868] sm:$0x3]
        %v1871 = vsel %vm440, %v1852, 0
        %v1874 = vsel %vm440, %v1853, 0
        %v1877 = vsel %vm440, %v1854, 0
        %v1880 = vsel %vm440, %v1855, 0
        %v1883 = vsel %vm440, %v1856, 0
        %v1886 = vsel %vm440, %v1857, 0
        %v1889 = vsel %vm440, %v1858, 0
        %v1892 = vsel %vm440, %v1859, 0
        %v1895 = vsel %vm440, %v1860, 0
        %v1898 = vsel %vm440, %v1861, 0
        %v1901 = vsel %vm440, %v1862, 0
        %v1904 = vsel %vm440, %v1863, 0
        %v1907 = vsel %vm440, %v1864, 0
        %v1910 = vsel %vm440, %v1865, 0
        %v1913 = vsel %vm440, %v1866, 0
        %v1916 = vsel %vm440, %v1867, 0
        %v1919 = vsel %vm697, %v1869, 0
        %1921 = vmatpush.bf16.msra.mxu0 0
        %1922 = vmatpush.bf16.msra.mxu0 0
        %1923 = vmatpush.bf16.msra.mxu0 0
        %1924 = vmatpush.bf16.msra.mxu0 0
        %1925 = vmatpush.bf16.msra.mxu0 0
        %1926 = vmatpush.bf16.msra.mxu0 0
        %1927 = vmatpush.bf16.msra.mxu0 0
        %1928 = vmatpush.bf16.msra.mxu0 %v1919
        %1929 = vmatmul.bf16.gmra.mxu0 %v1871
        %v1930 = vpop.f32.mrf.mxu0
        %v1931 = vadd.f32 0.0, %v1930
        %v1932 = vpop.f32.mrf.mxu0
        %v1933 = vadd.f32 0.0, %v1932
        %1934 = vmatmul.bf16.gmra.mxu0 %v1874
        %v1935 = vpop.f32.mrf.mxu0
        %v1936 = vadd.f32 0.0, %v1935
        %v1937 = vpop.f32.mrf.mxu0
        %v1938 = vadd.f32 0.0, %v1937
        %1939 = vmatmul.bf16.gmra.mxu0 %v1877
        %v1940 = vpop.f32.mrf.mxu0
        %v1941 = vadd.f32 0.0, %v1940
        %v1942 = vpop.f32.mrf.mxu0
        %v1943 = vadd.f32 0.0, %v1942
        %1944 = vmatmul.bf16.gmra.mxu0 %v1880
        %v1945 = vpop.f32.mrf.mxu0
        %v1946 = vadd.f32 0.0, %v1945
        %v1947 = vpop.f32.mrf.mxu0
        %v1948 = vadd.f32 0.0, %v1947
        %1949 = vmatmul.bf16.gmra.mxu0 %v1883
        %v1950 = vpop.f32.mrf.mxu0
        %v1951 = vadd.f32 0.0, %v1950
        %v1952 = vpop.f32.mrf.mxu0
        %v1953 = vadd.f32 0.0, %v1952
        %1954 = vmatmul.bf16.gmra.mxu0 %v1886
        %v1955 = vpop.f32.mrf.mxu0
        %v1956 = vadd.f32 0.0, %v1955
        %v1957 = vpop.f32.mrf.mxu0
        %v1958 = vadd.f32 0.0, %v1957
        %1959 = vmatmul.bf16.gmra.mxu0 %v1889
        %v1960 = vpop.f32.mrf.mxu0
        %v1961 = vadd.f32 0.0, %v1960
        %v1962 = vpop.f32.mrf.mxu0
        %v1963 = vadd.f32 0.0, %v1962
        %1964 = vmatmul.bf16.gmra.mxu0 %v1892
        %v1965 = vpop.f32.mrf.mxu0
        %v1966 = vadd.f32 0.0, %v1965
        %v1967 = vpop.f32.mrf.mxu0
        %v1968 = vadd.f32 0.0, %v1967
        %1969 = vmatmul.bf16.gmra.mxu0 %v1895
        %v1970 = vpop.f32.mrf.mxu0
        %v1971 = vadd.f32 0.0, %v1970
        %v1972 = vpop.f32.mrf.mxu0
        %v1973 = vadd.f32 0.0, %v1972
        %1974 = vmatmul.bf16.gmra.mxu0 %v1898
        %v1975 = vpop.f32.mrf.mxu0
        %v1976 = vadd.f32 0.0, %v1975
        %v1977 = vpop.f32.mrf.mxu0
        %v1978 = vadd.f32 0.0, %v1977
        %1979 = vmatmul.bf16.gmra.mxu0 %v1901
        %v1980 = vpop.f32.mrf.mxu0
        %v1981 = vadd.f32 0.0, %v1980
        %v1982 = vpop.f32.mrf.mxu0
        %v1983 = vadd.f32 0.0, %v1982
        %1984 = vmatmul.bf16.gmra.mxu0 %v1904
        %v1985 = vpop.f32.mrf.mxu0
        %v1986 = vadd.f32 0.0, %v1985
        %v1987 = vpop.f32.mrf.mxu0
        %v1988 = vadd.f32 0.0, %v1987
        %1989 = vmatmul.bf16.gmra.mxu0 %v1907
        %v1990 = vpop.f32.mrf.mxu0
        %v1991 = vadd.f32 0.0, %v1990
        %v1992 = vpop.f32.mrf.mxu0
        %v1993 = vadd.f32 0.0, %v1992
        %1994 = vmatmul.bf16.gmra.mxu0 %v1910
        %v1995 = vpop.f32.mrf.mxu0
        %v1996 = vadd.f32 0.0, %v1995
        %v1997 = vpop.f32.mrf.mxu0
        %v1998 = vadd.f32 0.0, %v1997
        %1999 = vmatmul.bf16.gmra.mxu0 %v1913
        %v2000 = vpop.f32.mrf.mxu0
        %v2001 = vadd.f32 0.0, %v2000
        %v2002 = vpop.f32.mrf.mxu0
        %v2003 = vadd.f32 0.0, %v2002
        %2004 = vmatmul.bf16.gmra.mxu0 %v1916
        %v2005 = vpop.f32.mrf.mxu0
        %v2006 = vadd.f32 0.0, %v2005
        %v2007 = vpop.f32.mrf.mxu0
        %v2008 = vadd.f32 0.0, %v2007
        %2009 = vdwg.mxu0
        %v2010 = vadd.f32 %v1787, %v1931
        %v2011 = vadd.f32 %v1788, %v1933
        %v2012 = vadd.f32 %v1789, %v1936
        %v2013 = vadd.f32 %v1790, %v1938
        %v2014 = vadd.f32 %v1791, %v1941
        %v2015 = vadd.f32 %v1792, %v1943
        %v2016 = vadd.f32 %v1793, %v1946
        %v2017 = vadd.f32 %v1794, %v1948
        %v2018 = vadd.f32 %v1795, %v1951
        %v2019 = vadd.f32 %v1796, %v1953
        %v2020 = vadd.f32 %v1797, %v1956
        %v2021 = vadd.f32 %v1798, %v1958
        %v2022 = vadd.f32 %v1799, %v1961
        %v2023 = vadd.f32 %v1800, %v1963
        %v2024 = vadd.f32 %v1801, %v1966
        %v2025 = vadd.f32 %v1802, %v1968
        %v2026 = vadd.f32 %v1803, %v1971
        %v2027 = vadd.f32 %v1804, %v1973
        %v2028 = vadd.f32 %v1805, %v1976
        %v2029 = vadd.f32 %v1806, %v1978
        %v2030 = vadd.f32 %v1807, %v1981
        %v2031 = vadd.f32 %v1808, %v1983
        %v2032 = vadd.f32 %v1809, %v1986
        %v2033 = vadd.f32 %v1810, %v1988
        %v2034 = vadd.f32 %v1811, %v1991
        %v2035 = vadd.f32 %v1812, %v1993
        %v2036 = vadd.f32 %v1813, %v1996
        %v2037 = vadd.f32 %v1814, %v1998
        %v2038 = vadd.f32 %v1815, %v2001
        %v2039 = vadd.f32 %v1816, %v2003
        %v2040 = vadd.f32 %v1817, %v2006
        %v2041 = vadd.f32 %v1818, %v2008
        %v2042 = vld [vmem:[%s1819 + $0x1] sm:$0xff]
        %v2043 = vld [vmem:[%s1819 + $0x9] sm:$0xff]
        %v2044 = vld [vmem:[%s1819 + $0x19] sm:$0xff]
        %v2045 = vld [vmem:[%s1819 + $0x21] sm:$0xff]
        %v2046 = vld [vmem:[%s1819 + $0x31] sm:$0xff]
        %v2047 = vld [vmem:[%s1819 + $0x39] sm:$0xff]
        %v2048 = vld [vmem:[%s1819 + $0x49] sm:$0xff]
        %v2049 = vld [vmem:[%s1819 + $0x51] sm:$0xff]
        %v2050 = vld [vmem:[%s1819 + $0x61] sm:$0xff]
        %v2051 = vld [vmem:[%s1819 + $0x69] sm:$0xff]
        %v2052 = vld [vmem:[%s1819 + $0x79] sm:$0xff]
        %v2053 = vld [vmem:[%s1819 + $0x81] sm:$0xff]
        %v2054 = vld [vmem:[%s1819 + $0x91] sm:$0xff]
        %v2055 = vld [vmem:[%s1819 + $0x99] sm:$0xff]
        %v2056 = vld [vmem:[%s1819 + $0xa9] sm:$0xff]
        %v2057 = vld [vmem:[%s1819 + $0xb1] sm:$0xff]
        %v2058 = vld [vmem:[%s1819 + $0xc1] sm:$0xff]
        %v2059 = vld [vmem:[%s1819 + $0xc9] sm:$0xff]
        %v2060 = vld [vmem:[%s1819 + $0xd9] sm:$0xff]
        %v2061 = vld [vmem:[%s1819 + $0xe1] sm:$0xff]
        %v2062 = vld [vmem:[%s1819 + $0xf1] sm:$0xff]
        %v2063 = vld [vmem:[%s1819 + $0xf9] sm:$0xff]
        %v2064 = vld [vmem:[%s1819 + $0x109] sm:$0xff]
        %v2065 = vld [vmem:[%s1819 + $0x111] sm:$0xff]
        %v2066 = vld [vmem:[%s1819 + $0x121] sm:$0xff]
        %v2067 = vld [vmem:[%s1819 + $0x129] sm:$0xff]
        %v2068 = vld [vmem:[%s1819 + $0x139] sm:$0xff]
        %v2069 = vld [vmem:[%s1819 + $0x141] sm:$0xff]
        %v2070 = vld [vmem:[%s1819 + $0x151] sm:$0xff]
        %v2071 = vld [vmem:[%s1819 + $0x159] sm:$0xff]
        %v2072 = vld [vmem:[%s1819 + $0x169] sm:$0xff]
        %v2073 = vld [vmem:[%s1819 + $0x171] sm:$0xff]
        %v2074 = vpack.c.bf16 %v2043, %v2042
        %v2075 = vpack.c.bf16 %v2045, %v2044
        %v2076 = vpack.c.bf16 %v2047, %v2046
        %v2077 = vpack.c.bf16 %v2049, %v2048
        %v2078 = vpack.c.bf16 %v2051, %v2050
        %v2079 = vpack.c.bf16 %v2053, %v2052
        %v2080 = vpack.c.bf16 %v2055, %v2054
        %v2081 = vpack.c.bf16 %v2057, %v2056
        %v2082 = vpack.c.bf16 %v2059, %v2058
        %v2083 = vpack.c.bf16 %v2061, %v2060
        %v2084 = vpack.c.bf16 %v2063, %v2062
        %v2085 = vpack.c.bf16 %v2065, %v2064
        %v2086 = vpack.c.bf16 %v2067, %v2066
        %v2087 = vpack.c.bf16 %v2069, %v2068
        %v2088 = vpack.c.bf16 %v2071, %v2070
        %v2089 = vpack.c.bf16 %v2073, %v2072
        %s2090 = scalar_lea.vmem %s1, 14
        %v2091 = vld [vmem:[%s2090] sm:$0x3]
        %v2093 = vsel %vm440, %v2074, 0
        %v2096 = vsel %vm440, %v2075, 0
        %v2099 = vsel %vm440, %v2076, 0
        %v2102 = vsel %vm440, %v2077, 0
        %v2105 = vsel %vm440, %v2078, 0
        %v2108 = vsel %vm440, %v2079, 0
        %v2111 = vsel %vm440, %v2080, 0
        %v2114 = vsel %vm440, %v2081, 0
        %v2117 = vsel %vm440, %v2082, 0
        %v2120 = vsel %vm440, %v2083, 0
        %v2123 = vsel %vm440, %v2084, 0
        %v2126 = vsel %vm440, %v2085, 0
        %v2129 = vsel %vm440, %v2086, 0
        %v2132 = vsel %vm440, %v2087, 0
        %v2135 = vsel %vm440, %v2088, 0
        %v2138 = vsel %vm440, %v2089, 0
        %v2141 = vsel %vm697, %v2091, 0
        %2143 = vmatpush.bf16.msra.mxu0 0
        %2144 = vmatpush.bf16.msra.mxu0 0
        %2145 = vmatpush.bf16.msra.mxu0 0
        %2146 = vmatpush.bf16.msra.mxu0 0
        %2147 = vmatpush.bf16.msra.mxu0 0
        %2148 = vmatpush.bf16.msra.mxu0 0
        %2149 = vmatpush.bf16.msra.mxu0 0
        %2150 = vmatpush.bf16.msra.mxu0 %v2141
        %2151 = vmatmul.bf16.gmra.mxu0 %v2093
        %v2152 = vpop.f32.mrf.mxu0
        %v2153 = vadd.f32 0.0, %v2152
        %v2154 = vpop.f32.mrf.mxu0
        %v2155 = vadd.f32 0.0, %v2154
        %2156 = vmatmul.bf16.gmra.mxu0 %v2096
        %v2157 = vpop.f32.mrf.mxu0
        %v2158 = vadd.f32 0.0, %v2157
        %v2159 = vpop.f32.mrf.mxu0
        %v2160 = vadd.f32 0.0, %v2159
        %2161 = vmatmul.bf16.gmra.mxu0 %v2099
        %v2162 = vpop.f32.mrf.mxu0
        %v2163 = vadd.f32 0.0, %v2162
        %v2164 = vpop.f32.mrf.mxu0
        %v2165 = vadd.f32 0.0, %v2164
        %2166 = vmatmul.bf16.gmra.mxu0 %v2102
        %v2167 = vpop.f32.mrf.mxu0
        %v2168 = vadd.f32 0.0, %v2167
        %v2169 = vpop.f32.mrf.mxu0
        %v2170 = vadd.f32 0.0, %v2169
        %2171 = vmatmul.bf16.gmra.mxu0 %v2105
        %v2172 = vpop.f32.mrf.mxu0
        %v2173 = vadd.f32 0.0, %v2172
        %v2174 = vpop.f32.mrf.mxu0
        %v2175 = vadd.f32 0.0, %v2174
        %2176 = vmatmul.bf16.gmra.mxu0 %v2108
        %v2177 = vpop.f32.mrf.mxu0
        %v2178 = vadd.f32 0.0, %v2177
        %v2179 = vpop.f32.mrf.mxu0
        %v2180 = vadd.f32 0.0, %v2179
        %2181 = vmatmul.bf16.gmra.mxu0 %v2111
        %v2182 = vpop.f32.mrf.mxu0
        %v2183 = vadd.f32 0.0, %v2182
        %v2184 = vpop.f32.mrf.mxu0
        %v2185 = vadd.f32 0.0, %v2184
        %2186 = vmatmul.bf16.gmra.mxu0 %v2114
        %v2187 = vpop.f32.mrf.mxu0
        %v2188 = vadd.f32 0.0, %v2187
        %v2189 = vpop.f32.mrf.mxu0
        %v2190 = vadd.f32 0.0, %v2189
        %2191 = vmatmul.bf16.gmra.mxu0 %v2117
        %v2192 = vpop.f32.mrf.mxu0
        %v2193 = vadd.f32 0.0, %v2192
        %v2194 = vpop.f32.mrf.mxu0
        %v2195 = vadd.f32 0.0, %v2194
        %2196 = vmatmul.bf16.gmra.mxu0 %v2120
        %v2197 = vpop.f32.mrf.mxu0
        %v2198 = vadd.f32 0.0, %v2197
        %v2199 = vpop.f32.mrf.mxu0
        %v2200 = vadd.f32 0.0, %v2199
        %2201 = vmatmul.bf16.gmra.mxu0 %v2123
        %v2202 = vpop.f32.mrf.mxu0
        %v2203 = vadd.f32 0.0, %v2202
        %v2204 = vpop.f32.mrf.mxu0
        %v2205 = vadd.f32 0.0, %v2204
        %2206 = vmatmul.bf16.gmra.mxu0 %v2126
        %v2207 = vpop.f32.mrf.mxu0
        %v2208 = vadd.f32 0.0, %v2207
        %v2209 = vpop.f32.mrf.mxu0
        %v2210 = vadd.f32 0.0, %v2209
        %2211 = vmatmul.bf16.gmra.mxu0 %v2129
        %v2212 = vpop.f32.mrf.mxu0
        %v2213 = vadd.f32 0.0, %v2212
        %v2214 = vpop.f32.mrf.mxu0
        %v2215 = vadd.f32 0.0, %v2214
        %2216 = vmatmul.bf16.gmra.mxu0 %v2132
        %v2217 = vpop.f32.mrf.mxu0
        %v2218 = vadd.f32 0.0, %v2217
        %v2219 = vpop.f32.mrf.mxu0
        %v2220 = vadd.f32 0.0, %v2219
        %2221 = vmatmul.bf16.gmra.mxu0 %v2135
        %v2222 = vpop.f32.mrf.mxu0
        %v2223 = vadd.f32 0.0, %v2222
        %v2224 = vpop.f32.mrf.mxu0
        %v2225 = vadd.f32 0.0, %v2224
        %2226 = vmatmul.bf16.gmra.mxu0 %v2138
        %v2227 = vpop.f32.mrf.mxu0
        %v2228 = vadd.f32 0.0, %v2227
        %v2229 = vpop.f32.mrf.mxu0
        %v2230 = vadd.f32 0.0, %v2229
        %2231 = vdwg.mxu0
        %v2232 = vadd.f32 %v2010, %v2153
        %v2233 = vadd.f32 %v2011, %v2155
        %v2234 = vadd.f32 %v2012, %v2158
        %v2235 = vadd.f32 %v2013, %v2160
        %v2236 = vadd.f32 %v2014, %v2163
        %v2237 = vadd.f32 %v2015, %v2165
        %v2238 = vadd.f32 %v2016, %v2168
        %v2239 = vadd.f32 %v2017, %v2170
        %v2240 = vadd.f32 %v2018, %v2173
        %v2241 = vadd.f32 %v2019, %v2175
        %v2242 = vadd.f32 %v2020, %v2178
        %v2243 = vadd.f32 %v2021, %v2180
        %v2244 = vadd.f32 %v2022, %v2183
        %v2245 = vadd.f32 %v2023, %v2185
        %v2246 = vadd.f32 %v2024, %v2188
        %v2247 = vadd.f32 %v2025, %v2190
        %v2248 = vadd.f32 %v2026, %v2193
        %v2249 = vadd.f32 %v2027, %v2195
        %v2250 = vadd.f32 %v2028, %v2198
        %v2251 = vadd.f32 %v2029, %v2200
        %v2252 = vadd.f32 %v2030, %v2203
        %v2253 = vadd.f32 %v2031, %v2205
        %v2254 = vadd.f32 %v2032, %v2208
        %v2255 = vadd.f32 %v2033, %v2210
        %v2256 = vadd.f32 %v2034, %v2213
        %v2257 = vadd.f32 %v2035, %v2215
        %v2258 = vadd.f32 %v2036, %v2218
        %v2259 = vadd.f32 %v2037, %v2220
        %v2260 = vadd.f32 %v2038, %v2223
        %v2261 = vadd.f32 %v2039, %v2225
        %v2262 = vadd.f32 %v2040, %v2228
        %v2263 = vadd.f32 %v2041, %v2230
        %v2264 = vld [vmem:[%s1819 + $0x2] sm:$0xff]
        %v2265 = vld [vmem:[%s1819 + $0xa] sm:$0xff]
        %v2266 = vld [vmem:[%s1819 + $0x1a] sm:$0xff]
        %v2267 = vld [vmem:[%s1819 + $0x22] sm:$0xff]
        %v2268 = vld [vmem:[%s1819 + $0x32] sm:$0xff]
        %v2269 = vld [vmem:[%s1819 + $0x3a] sm:$0xff]
        %v2270 = vld [vmem:[%s1819 + $0x4a] sm:$0xff]
        %v2271 = vld [vmem:[%s1819 + $0x52] sm:$0xff]
        %v2272 = vld [vmem:[%s1819 + $0x62] sm:$0xff]
        %v2273 = vld [vmem:[%s1819 + $0x6a] sm:$0xff]
        %v2274 = vld [vmem:[%s1819 + $0x7a] sm:$0xff]
        %v2275 = vld [vmem:[%s1819 + $0x82] sm:$0xff]
        %v2276 = vld [vmem:[%s1819 + $0x92] sm:$0xff]
        %v2277 = vld [vmem:[%s1819 + $0x9a] sm:$0xff]
        %v2278 = vld [vmem:[%s1819 + $0xaa] sm:$0xff]
        %v2279 = vld [vmem:[%s1819 + $0xb2] sm:$0xff]
        %v2280 = vld [vmem:[%s1819 + $0xc2] sm:$0xff]
        %v2281 = vld [vmem:[%s1819 + $0xca] sm:$0xff]
        %v2282 = vld [vmem:[%s1819 + $0xda] sm:$0xff]
        %v2283 = vld [vmem:[%s1819 + $0xe2] sm:$0xff]
        %v2284 = vld [vmem:[%s1819 + $0xf2] sm:$0xff]
        %v2285 = vld [vmem:[%s1819 + $0xfa] sm:$0xff]
        %v2286 = vld [vmem:[%s1819 + $0x10a] sm:$0xff]
        %v2287 = vld [vmem:[%s1819 + $0x112] sm:$0xff]
        %v2288 = vld [vmem:[%s1819 + $0x122] sm:$0xff]
        %v2289 = vld [vmem:[%s1819 + $0x12a] sm:$0xff]
        %v2290 = vld [vmem:[%s1819 + $0x13a] sm:$0xff]
        %v2291 = vld [vmem:[%s1819 + $0x142] sm:$0xff]
        %v2292 = vld [vmem:[%s1819 + $0x152] sm:$0xff]
        %v2293 = vld [vmem:[%s1819 + $0x15a] sm:$0xff]
        %v2294 = vld [vmem:[%s1819 + $0x16a] sm:$0xff]
        %v2295 = vld [vmem:[%s1819 + $0x172] sm:$0xff]
        %v2296 = vpack.c.bf16 %v2265, %v2264
        %v2297 = vpack.c.bf16 %v2267, %v2266
        %v2298 = vpack.c.bf16 %v2269, %v2268
        %v2299 = vpack.c.bf16 %v2271, %v2270
        %v2300 = vpack.c.bf16 %v2273, %v2272
        %v2301 = vpack.c.bf16 %v2275, %v2274
        %v2302 = vpack.c.bf16 %v2277, %v2276
        %v2303 = vpack.c.bf16 %v2279, %v2278
        %v2304 = vpack.c.bf16 %v2281, %v2280
        %v2305 = vpack.c.bf16 %v2283, %v2282
        %v2306 = vpack.c.bf16 %v2285, %v2284
        %v2307 = vpack.c.bf16 %v2287, %v2286
        %v2308 = vpack.c.bf16 %v2289, %v2288
        %v2309 = vpack.c.bf16 %v2291, %v2290
        %v2310 = vpack.c.bf16 %v2293, %v2292
        %v2311 = vpack.c.bf16 %v2295, %v2294
        %s2312 = scalar_lea.vmem %s1, 16
        %v2313 = vld [vmem:[%s2312] sm:$0x3]
        %v2315 = vsel %vm440, %v2296, 0
        %v2318 = vsel %vm440, %v2297, 0
        %v2321 = vsel %vm440, %v2298, 0
        %v2324 = vsel %vm440, %v2299, 0
        %v2327 = vsel %vm440, %v2300, 0
        %v2330 = vsel %vm440, %v2301, 0
        %v2333 = vsel %vm440, %v2302, 0
        %v2336 = vsel %vm440, %v2303, 0
        %v2339 = vsel %vm440, %v2304, 0
        %v2342 = vsel %vm440, %v2305, 0
        %v2345 = vsel %vm440, %v2306, 0
        %v2348 = vsel %vm440, %v2307, 0
        %v2351 = vsel %vm440, %v2308, 0
        %v2354 = vsel %vm440, %v2309, 0
        %v2357 = vsel %vm440, %v2310, 0
        %v2360 = vsel %vm440, %v2311, 0
        %v2363 = vsel %vm697, %v2313, 0
        %2365 = vmatpush.bf16.msra.mxu0 0
        %2366 = vmatpush.bf16.msra.mxu0 0
        %2367 = vmatpush.bf16.msra.mxu0 0
        %2368 = vmatpush.bf16.msra.mxu0 0
        %2369 = vmatpush.bf16.msra.mxu0 0
        %2370 = vmatpush.bf16.msra.mxu0 0
        %2371 = vmatpush.bf16.msra.mxu0 0
        %2372 = vmatpush.bf16.msra.mxu0 %v2363
        %2373 = vmatmul.bf16.gmra.mxu0 %v2315
        %v2374 = vpop.f32.mrf.mxu0
        %v2375 = vadd.f32 0.0, %v2374
        %v2376 = vpop.f32.mrf.mxu0
        %v2377 = vadd.f32 0.0, %v2376
        %2378 = vmatmul.bf16.gmra.mxu0 %v2318
        %v2379 = vpop.f32.mrf.mxu0
        %v2380 = vadd.f32 0.0, %v2379
        %v2381 = vpop.f32.mrf.mxu0
        %v2382 = vadd.f32 0.0, %v2381
        %2383 = vmatmul.bf16.gmra.mxu0 %v2321
        %v2384 = vpop.f32.mrf.mxu0
        %v2385 = vadd.f32 0.0, %v2384
        %v2386 = vpop.f32.mrf.mxu0
        %v2387 = vadd.f32 0.0, %v2386
        %2388 = vmatmul.bf16.gmra.mxu0 %v2324
        %v2389 = vpop.f32.mrf.mxu0
        %v2390 = vadd.f32 0.0, %v2389
        %v2391 = vpop.f32.mrf.mxu0
        %v2392 = vadd.f32 0.0, %v2391
        %2393 = vmatmul.bf16.gmra.mxu0 %v2327
        %v2394 = vpop.f32.mrf.mxu0
        %v2395 = vadd.f32 0.0, %v2394
        %v2396 = vpop.f32.mrf.mxu0
        %v2397 = vadd.f32 0.0, %v2396
        %2398 = vmatmul.bf16.gmra.mxu0 %v2330
        %v2399 = vpop.f32.mrf.mxu0
        %v2400 = vadd.f32 0.0, %v2399
        %v2401 = vpop.f32.mrf.mxu0
        %v2402 = vadd.f32 0.0, %v2401
        %2403 = vmatmul.bf16.gmra.mxu0 %v2333
        %v2404 = vpop.f32.mrf.mxu0
        %v2405 = vadd.f32 0.0, %v2404
        %v2406 = vpop.f32.mrf.mxu0
        %v2407 = vadd.f32 0.0, %v2406
        %2408 = vmatmul.bf16.gmra.mxu0 %v2336
        %v2409 = vpop.f32.mrf.mxu0
        %v2410 = vadd.f32 0.0, %v2409
        %v2411 = vpop.f32.mrf.mxu0
        %v2412 = vadd.f32 0.0, %v2411
        %2413 = vmatmul.bf16.gmra.mxu0 %v2339
        %v2414 = vpop.f32.mrf.mxu0
        %v2415 = vadd.f32 0.0, %v2414
        %v2416 = vpop.f32.mrf.mxu0
        %v2417 = vadd.f32 0.0, %v2416
        %2418 = vmatmul.bf16.gmra.mxu0 %v2342
        %v2419 = vpop.f32.mrf.mxu0
        %v2420 = vadd.f32 0.0, %v2419
        %v2421 = vpop.f32.mrf.mxu0
        %v2422 = vadd.f32 0.0, %v2421
        %2423 = vmatmul.bf16.gmra.mxu0 %v2345
        %v2424 = vpop.f32.mrf.mxu0
        %v2425 = vadd.f32 0.0, %v2424
        %v2426 = vpop.f32.mrf.mxu0
        %v2427 = vadd.f32 0.0, %v2426
        %2428 = vmatmul.bf16.gmra.mxu0 %v2348
        %v2429 = vpop.f32.mrf.mxu0
        %v2430 = vadd.f32 0.0, %v2429
        %v2431 = vpop.f32.mrf.mxu0
        %v2432 = vadd.f32 0.0, %v2431
        %2433 = vmatmul.bf16.gmra.mxu0 %v2351
        %v2434 = vpop.f32.mrf.mxu0
        %v2435 = vadd.f32 0.0, %v2434
        %v2436 = vpop.f32.mrf.mxu0
        %v2437 = vadd.f32 0.0, %v2436
        %2438 = vmatmul.bf16.gmra.mxu0 %v2354
        %v2439 = vpop.f32.mrf.mxu0
        %v2440 = vadd.f32 0.0, %v2439
        %v2441 = vpop.f32.mrf.mxu0
        %v2442 = vadd.f32 0.0, %v2441
        %2443 = vmatmul.bf16.gmra.mxu0 %v2357
        %v2444 = vpop.f32.mrf.mxu0
        %v2445 = vadd.f32 0.0, %v2444
        %v2446 = vpop.f32.mrf.mxu0
        %v2447 = vadd.f32 0.0, %v2446
        %2448 = vmatmul.bf16.gmra.mxu0 %v2360
        %v2449 = vpop.f32.mrf.mxu0
        %v2450 = vadd.f32 0.0, %v2449
        %v2451 = vpop.f32.mrf.mxu0
        %v2452 = vadd.f32 0.0, %v2451
        %2453 = vdwg.mxu0
        %v2454 = vadd.f32 %v2232, %v2375
        %v2455 = vadd.f32 %v2233, %v2377
        %v2456 = vadd.f32 %v2234, %v2380
        %v2457 = vadd.f32 %v2235, %v2382
        %v2458 = vadd.f32 %v2236, %v2385
        %v2459 = vadd.f32 %v2237, %v2387
        %v2460 = vadd.f32 %v2238, %v2390
        %v2461 = vadd.f32 %v2239, %v2392
        %v2462 = vadd.f32 %v2240, %v2395
        %v2463 = vadd.f32 %v2241, %v2397
        %v2464 = vadd.f32 %v2242, %v2400
        %v2465 = vadd.f32 %v2243, %v2402
        %v2466 = vadd.f32 %v2244, %v2405
        %v2467 = vadd.f32 %v2245, %v2407
        %v2468 = vadd.f32 %v2246, %v2410
        %v2469 = vadd.f32 %v2247, %v2412
        %v2470 = vadd.f32 %v2248, %v2415
        %v2471 = vadd.f32 %v2249, %v2417
        %v2472 = vadd.f32 %v2250, %v2420
        %v2473 = vadd.f32 %v2251, %v2422
        %v2474 = vadd.f32 %v2252, %v2425
        %v2475 = vadd.f32 %v2253, %v2427
        %v2476 = vadd.f32 %v2254, %v2430
        %v2477 = vadd.f32 %v2255, %v2432
        %v2478 = vadd.f32 %v2256, %v2435
        %v2479 = vadd.f32 %v2257, %v2437
        %v2480 = vadd.f32 %v2258, %v2440
        %v2481 = vadd.f32 %v2259, %v2442
        %v2482 = vadd.f32 %v2260, %v2445
        %v2483 = vadd.f32 %v2261, %v2447
        %v2484 = vadd.f32 %v2262, %v2450
        %v2485 = vadd.f32 %v2263, %v2452
        %v2486 = vld [vmem:[%s2] sm:$0x1]
        %v2488 = vperm.slane %v2486, 0
        %v2490 = vadd.f32 %v2454, %v2488
        %v2491 = vadd.f32 %v2455, %v2488
        %v2492 = vadd.f32 %v2456, %v2488
        %v2493 = vadd.f32 %v2457, %v2488
        %v2494 = vadd.f32 %v2458, %v2488
        %v2495 = vadd.f32 %v2459, %v2488
        %v2496 = vadd.f32 %v2460, %v2488
        %v2497 = vadd.f32 %v2461, %v2488
        %v2498 = vadd.f32 %v2462, %v2488
        %v2499 = vadd.f32 %v2463, %v2488
        %v2500 = vadd.f32 %v2464, %v2488
        %v2501 = vadd.f32 %v2465, %v2488
        %v2502 = vadd.f32 %v2466, %v2488
        %v2503 = vadd.f32 %v2467, %v2488
        %v2504 = vadd.f32 %v2468, %v2488
        %v2505 = vadd.f32 %v2469, %v2488
        %v2506 = vadd.f32 %v2470, %v2488
        %v2507 = vadd.f32 %v2471, %v2488
        %v2508 = vadd.f32 %v2472, %v2488
        %v2509 = vadd.f32 %v2473, %v2488
        %v2510 = vadd.f32 %v2474, %v2488
        %v2511 = vadd.f32 %v2475, %v2488
        %v2512 = vadd.f32 %v2476, %v2488
        %v2513 = vadd.f32 %v2477, %v2488
        %v2514 = vadd.f32 %v2478, %v2488
        %v2515 = vadd.f32 %v2479, %v2488
        %v2516 = vadd.f32 %v2480, %v2488
        %v2517 = vadd.f32 %v2481, %v2488
        %v2518 = vadd.f32 %v2482, %v2488
        %v2519 = vadd.f32 %v2483, %v2488
        %v2520 = vadd.f32 %v2484, %v2488
        %v2521 = vadd.f32 %v2485, %v2488
        %v2522 = vmax.f32 %v2490, 0.0
        %v2523 = vmax.f32 %v2491, 0.0
        %v2524 = vmax.f32 %v2492, 0.0
        %v2525 = vmax.f32 %v2493, 0.0
        %v2526 = vmax.f32 %v2494, 0.0
        %v2527 = vmax.f32 %v2495, 0.0
        %v2528 = vmax.f32 %v2496, 0.0
        %v2529 = vmax.f32 %v2497, 0.0
        %v2530 = vmax.f32 %v2498, 0.0
        %v2531 = vmax.f32 %v2499, 0.0
        %v2532 = vmax.f32 %v2500, 0.0
        %v2533 = vmax.f32 %v2501, 0.0
        %v2534 = vmax.f32 %v2502, 0.0
        %v2535 = vmax.f32 %v2503, 0.0
        %v2536 = vmax.f32 %v2504, 0.0
        %v2537 = vmax.f32 %v2505, 0.0
        %v2538 = vmax.f32 %v2506, 0.0
        %v2539 = vmax.f32 %v2507, 0.0
        %v2540 = vmax.f32 %v2508, 0.0
        %v2541 = vmax.f32 %v2509, 0.0
        %v2542 = vmax.f32 %v2510, 0.0
        %v2543 = vmax.f32 %v2511, 0.0
        %v2544 = vmax.f32 %v2512, 0.0
        %v2545 = vmax.f32 %v2513, 0.0
        %v2546 = vmax.f32 %v2514, 0.0
        %v2547 = vmax.f32 %v2515, 0.0
        %v2548 = vmax.f32 %v2516, 0.0
        %v2549 = vmax.f32 %v2517, 0.0
        %v2550 = vmax.f32 %v2518, 0.0
        %v2551 = vmax.f32 %v2519, 0.0
        %v2552 = vmax.f32 %v2520, 0.0
        %v2553 = vmax.f32 %v2521, 0.0
        %s2554 = scalar_lea.vmem [#allocation3], 24
        %2555 = vst.msk [vmem:[%s2554 + $0x1] sm:$0xff] %vm440, %v2522
        %2556 = vst.msk [vmem:[%s2554 + $0x9] sm:$0xff] %vm440, %v2523
        %2557 = vst.msk [vmem:[%s2554 + $0x19] sm:$0xff] %vm440, %v2524
        %2558 = vst.msk [vmem:[%s2554 + $0x21] sm:$0xff] %vm440, %v2525
        %2559 = vst.msk [vmem:[%s2554 + $0x31] sm:$0xff] %vm440, %v2526
        %2560 = vst.msk [vmem:[%s2554 + $0x39] sm:$0xff] %vm440, %v2527
        %2561 = vst.msk [vmem:[%s2554 + $0x49] sm:$0xff] %vm440, %v2528
        %2562 = vst.msk [vmem:[%s2554 + $0x51] sm:$0xff] %vm440, %v2529
        %2563 = vst.msk [vmem:[%s2554 + $0x61] sm:$0xff] %vm440, %v2530
        %2564 = vst.msk [vmem:[%s2554 + $0x69] sm:$0xff] %vm440, %v2531
        %2565 = vst.msk [vmem:[%s2554 + $0x79] sm:$0xff] %vm440, %v2532
        %2566 = vst.msk [vmem:[%s2554 + $0x81] sm:$0xff] %vm440, %v2533
        %2567 = vst.msk [vmem:[%s2554 + $0x91] sm:$0xff] %vm440, %v2534
        %2568 = vst.msk [vmem:[%s2554 + $0x99] sm:$0xff] %vm440, %v2535
        %2569 = vst.msk [vmem:[%s2554 + $0xa9] sm:$0xff] %vm440, %v2536
        %2570 = vst.msk [vmem:[%s2554 + $0xb1] sm:$0xff] %vm440, %v2537
        %2571 = vst.msk [vmem:[%s2554 + $0xc1] sm:$0xff] %vm440, %v2538
        %2572 = vst.msk [vmem:[%s2554 + $0xc9] sm:$0xff] %vm440, %v2539
        %2573 = vst.msk [vmem:[%s2554 + $0xd9] sm:$0xff] %vm440, %v2540
        %2574 = vst.msk [vmem:[%s2554 + $0xe1] sm:$0xff] %vm440, %v2541
        %2575 = vst.msk [vmem:[%s2554 + $0xf1] sm:$0xff] %vm440, %v2542
        %2576 = vst.msk [vmem:[%s2554 + $0xf9] sm:$0xff] %vm440, %v2543
        %2577 = vst.msk [vmem:[%s2554 + $0x109] sm:$0xff] %vm440, %v2544
        %2578 = vst.msk [vmem:[%s2554 + $0x111] sm:$0xff] %vm440, %v2545
        %2579 = vst.msk [vmem:[%s2554 + $0x121] sm:$0xff] %vm440, %v2546
        %2580 = vst.msk [vmem:[%s2554 + $0x129] sm:$0xff] %vm440, %v2547
        %2581 = vst.msk [vmem:[%s2554 + $0x139] sm:$0xff] %vm440, %v2548
        %2582 = vst.msk [vmem:[%s2554 + $0x141] sm:$0xff] %vm440, %v2549
        %2583 = vst.msk [vmem:[%s2554 + $0x151] sm:$0xff] %vm440, %v2550
        %2584 = vst.msk [vmem:[%s2554 + $0x159] sm:$0xff] %vm440, %v2551
        %2585 = vst.msk [vmem:[%s2554 + $0x169] sm:$0xff] %vm440, %v2552
        %2586 = vst.msk [vmem:[%s2554 + $0x171] sm:$0xff] %vm440, %v2553
        %v2587 = vld [vmem:[#allocation3] sm:$0xff]
        %v2588 = vld [vmem:[#allocation3 + $0x8] sm:$0xff]
        %v2589 = vld [vmem:[#allocation3 + $0x18] sm:$0xff]
        %v2590 = vld [vmem:[#allocation3 + $0x20] sm:$0xff]
        %v2591 = vld [vmem:[#allocation3 + $0x30] sm:$0xff]
        %v2592 = vld [vmem:[#allocation3 + $0x38] sm:$0xff]
        %v2593 = vld [vmem:[#allocation3 + $0x48] sm:$0xff]
        %v2594 = vld [vmem:[#allocation3 + $0x50] sm:$0xff]
        %v2595 = vld [vmem:[#allocation3 + $0x60] sm:$0xff]
        %v2596 = vld [vmem:[#allocation3 + $0x68] sm:$0xff]
        %v2597 = vld [vmem:[#allocation3 + $0x78] sm:$0xff]
        %v2598 = vld [vmem:[#allocation3 + $0x80] sm:$0xff]
        %v2599 = vld [vmem:[#allocation3 + $0x90] sm:$0xff]
        %v2600 = vld [vmem:[#allocation3 + $0x98] sm:$0xff]
        %v2601 = vld [vmem:[#allocation3 + $0xa8] sm:$0xff]
        %v2602 = vld [vmem:[#allocation3 + $0xb0] sm:$0xff]
        %v2603 = vld [vmem:[#allocation3 + $0xc0] sm:$0xff]
        %v2604 = vld [vmem:[#allocation3 + $0xc8] sm:$0xff]
        %v2605 = vld [vmem:[#allocation3 + $0xd8] sm:$0xff]
        %v2606 = vld [vmem:[#allocation3 + $0xe0] sm:$0xff]
        %v2607 = vld [vmem:[#allocation3 + $0xf0] sm:$0xff]
        %v2608 = vld [vmem:[#allocation3 + $0xf8] sm:$0xff]
        %v2609 = vld [vmem:[#allocation3 + $0x108] sm:$0xff]
        %v2610 = vld [vmem:[#allocation3 + $0x110] sm:$0xff]
        %v2611 = vld [vmem:[#allocation3 + $0x120] sm:$0xff]
        %v2612 = vld [vmem:[#allocation3 + $0x128] sm:$0xff]
        %v2613 = vld [vmem:[#allocation3 + $0x138] sm:$0xff]
        %v2614 = vld [vmem:[#allocation3 + $0x140] sm:$0xff]
        %v2615 = vld [vmem:[#allocation3 + $0x150] sm:$0xff]
        %v2616 = vld [vmem:[#allocation3 + $0x158] sm:$0xff]
        %v2617 = vld [vmem:[#allocation3 + $0x168] sm:$0xff]
        %v2618 = vld [vmem:[#allocation3 + $0x170] sm:$0xff]
        %v2619 = vpack.c.bf16 %v2588, %v2587
        %v2620 = vpack.c.bf16 %v2590, %v2589
        %v2621 = vpack.c.bf16 %v2592, %v2591
        %v2622 = vpack.c.bf16 %v2594, %v2593
        %v2623 = vpack.c.bf16 %v2596, %v2595
        %v2624 = vpack.c.bf16 %v2598, %v2597
        %v2625 = vpack.c.bf16 %v2600, %v2599
        %v2626 = vpack.c.bf16 %v2602, %v2601
        %v2627 = vpack.c.bf16 %v2604, %v2603
        %v2628 = vpack.c.bf16 %v2606, %v2605
        %v2629 = vpack.c.bf16 %v2608, %v2607
        %v2630 = vpack.c.bf16 %v2610, %v2609
        %v2631 = vpack.c.bf16 %v2612, %v2611
        %v2632 = vpack.c.bf16 %v2614, %v2613
        %v2633 = vpack.c.bf16 %v2616, %v2615
        %v2634 = vpack.c.bf16 %v2618, %v2617
        %v2635 = vld [vmem:[%s3] sm:$0x3]
        %v2636 = vld [vmem:[#allocation3 + $0x1] sm:$0xff]
        %v2637 = vld [vmem:[#allocation3 + $0x9] sm:$0xff]
        %v2638 = vld [vmem:[#allocation3 + $0x19] sm:$0xff]
        %v2639 = vld [vmem:[#allocation3 + $0x21] sm:$0xff]
        %v2640 = vld [vmem:[#allocation3 + $0x31] sm:$0xff]
        %v2641 = vld [vmem:[#allocation3 + $0x39] sm:$0xff]
        %v2642 = vld [vmem:[#allocation3 + $0x49] sm:$0xff]
        %v2643 = vld [vmem:[#allocation3 + $0x51] sm:$0xff]
        %v2644 = vld [vmem:[#allocation3 + $0x61] sm:$0xff]
        %v2645 = vld [vmem:[#allocation3 + $0x69] sm:$0xff]
        %v2646 = vld [vmem:[#allocation3 + $0x79] sm:$0xff]
        %v2647 = vld [vmem:[#allocation3 + $0x81] sm:$0xff]
        %v2648 = vld [vmem:[#allocation3 + $0x91] sm:$0xff]
        %v2649 = vld [vmem:[#allocation3 + $0x99] sm:$0xff]
        %v2650 = vld [vmem:[#allocation3 + $0xa9] sm:$0xff]
        %v2651 = vld [vmem:[#allocation3 + $0xb1] sm:$0xff]
        %v2652 = vld [vmem:[#allocation3 + $0xc1] sm:$0xff]
        %v2653 = vld [vmem:[#allocation3 + $0xc9] sm:$0xff]
        %v2654 = vld [vmem:[#allocation3 + $0xd9] sm:$0xff]
        %v2655 = vld [vmem:[#allocation3 + $0xe1] sm:$0xff]
        %v2656 = vld [vmem:[#allocation3 + $0xf1] sm:$0xff]
        %v2657 = vld [vmem:[#allocation3 + $0xf9] sm:$0xff]
        %v2658 = vld [vmem:[#allocation3 + $0x109] sm:$0xff]
        %v2659 = vld [vmem:[#allocation3 + $0x111] sm:$0xff]
        %v2660 = vld [vmem:[#allocation3 + $0x121] sm:$0xff]
        %v2661 = vld [vmem:[#allocation3 + $0x129] sm:$0xff]
        %v2662 = vld [vmem:[#allocation3 + $0x139] sm:$0xff]
        %v2663 = vld [vmem:[#allocation3 + $0x141] sm:$0xff]
        %v2664 = vld [vmem:[#allocation3 + $0x151] sm:$0xff]
        %v2665 = vld [vmem:[#allocation3 + $0x159] sm:$0xff]
        %v2666 = vld [vmem:[#allocation3 + $0x169] sm:$0xff]
        %v2667 = vld [vmem:[#allocation3 + $0x171] sm:$0xff]
        %v2668 = vpack.c.bf16 %v2637, %v2636
        %v2669 = vpack.c.bf16 %v2639, %v2638
        %v2670 = vpack.c.bf16 %v2641, %v2640
        %v2671 = vpack.c.bf16 %v2643, %v2642
        %v2672 = vpack.c.bf16 %v2645, %v2644
        %v2673 = vpack.c.bf16 %v2647, %v2646
        %v2674 = vpack.c.bf16 %v2649, %v2648
        %v2675 = vpack.c.bf16 %v2651, %v2650
        %v2676 = vpack.c.bf16 %v2653, %v2652
        %v2677 = vpack.c.bf16 %v2655, %v2654
        %v2678 = vpack.c.bf16 %v2657, %v2656
        %v2679 = vpack.c.bf16 %v2659, %v2658
        %v2680 = vpack.c.bf16 %v2661, %v2660
        %v2681 = vpack.c.bf16 %v2663, %v2662
        %v2682 = vpack.c.bf16 %v2665, %v2664
        %v2683 = vpack.c.bf16 %v2667, %v2666
        %s2684 = scalar_lea.vmem %s3, 2
        %v2685 = vld [vmem:[%s2684] sm:$0x3]
        %v2687 = vsel %vm440, %v2668, 0
        %v2690 = vsel %vm440, %v2669, 0
        %v2693 = vsel %vm440, %v2670, 0
        %v2696 = vsel %vm440, %v2671, 0
        %v2699 = vsel %vm440, %v2672, 0
        %v2702 = vsel %vm440, %v2673, 0
        %v2705 = vsel %vm440, %v2674, 0
        %v2708 = vsel %vm440, %v2675, 0
        %v2711 = vsel %vm440, %v2676, 0
        %v2714 = vsel %vm440, %v2677, 0
        %v2717 = vsel %vm440, %v2678, 0
        %v2720 = vsel %vm440, %v2679, 0
        %v2723 = vsel %vm440, %v2680, 0
        %v2726 = vsel %vm440, %v2681, 0
        %v2729 = vsel %vm440, %v2682, 0
        %v2732 = vsel %vm440, %v2683, 0
        %v2735 = vsel %vm697, %v2685, 0
        %2737 = vmatpush.bf16.msra.mxu0 0
        %2738 = vmatpush.bf16.msra.mxu0 0
        %2739 = vmatpush.bf16.msra.mxu0 0
        %2740 = vmatpush.bf16.msra.mxu0 0
        %2741 = vmatpush.bf16.msra.mxu0 0
        %2742 = vmatpush.bf16.msra.mxu0 0
        %2743 = vmatpush.bf16.msra.mxu0 0
        %2744 = vmatpush.bf16.msra.mxu0 %v2735
        %2745 = vmatmul.bf16.gmra.mxu0 %v2687
        %v2746 = vpop.f32.mrf.mxu0
        %v2747 = vadd.f32 0.0, %v2746
        %v2748 = vpop.f32.mrf.mxu0
        %v2749 = vadd.f32 0.0, %v2748
        %2750 = vmatmul.bf16.gmra.mxu0 %v2690
        %v2751 = vpop.f32.mrf.mxu0
        %v2752 = vadd.f32 0.0, %v2751
        %v2753 = vpop.f32.mrf.mxu0
        %v2754 = vadd.f32 0.0, %v2753
        %2755 = vmatmul.bf16.gmra.mxu0 %v2693
        %v2756 = vpop.f32.mrf.mxu0
        %v2757 = vadd.f32 0.0, %v2756
        %v2758 = vpop.f32.mrf.mxu0
        %v2759 = vadd.f32 0.0, %v2758
        %2760 = vmatmul.bf16.gmra.mxu0 %v2696
        %v2761 = vpop.f32.mrf.mxu0
        %v2762 = vadd.f32 0.0, %v2761
        %v2763 = vpop.f32.mrf.mxu0
        %v2764 = vadd.f32 0.0, %v2763
        %2765 = vmatmul.bf16.gmra.mxu0 %v2699
        %v2766 = vpop.f32.mrf.mxu0
        %v2767 = vadd.f32 0.0, %v2766
        %v2768 = vpop.f32.mrf.mxu0
        %v2769 = vadd.f32 0.0, %v2768
        %2770 = vmatmul.bf16.gmra.mxu0 %v2702
        %v2771 = vpop.f32.mrf.mxu0
        %v2772 = vadd.f32 0.0, %v2771
        %v2773 = vpop.f32.mrf.mxu0
        %v2774 = vadd.f32 0.0, %v2773
        %2775 = vmatmul.bf16.gmra.mxu0 %v2705
        %v2776 = vpop.f32.mrf.mxu0
        %v2777 = vadd.f32 0.0, %v2776
        %v2778 = vpop.f32.mrf.mxu0
        %v2779 = vadd.f32 0.0, %v2778
        %2780 = vmatmul.bf16.gmra.mxu0 %v2708
        %v2781 = vpop.f32.mrf.mxu0
        %v2782 = vadd.f32 0.0, %v2781
        %v2783 = vpop.f32.mrf.mxu0
        %v2784 = vadd.f32 0.0, %v2783
        %2785 = vmatmul.bf16.gmra.mxu0 %v2711
        %v2786 = vpop.f32.mrf.mxu0
        %v2787 = vadd.f32 0.0, %v2786
        %v2788 = vpop.f32.mrf.mxu0
        %v2789 = vadd.f32 0.0, %v2788
        %2790 = vmatmul.bf16.gmra.mxu0 %v2714
        %v2791 = vpop.f32.mrf.mxu0
        %v2792 = vadd.f32 0.0, %v2791
        %v2793 = vpop.f32.mrf.mxu0
        %v2794 = vadd.f32 0.0, %v2793
        %2795 = vmatmul.bf16.gmra.mxu0 %v2717
        %v2796 = vpop.f32.mrf.mxu0
        %v2797 = vadd.f32 0.0, %v2796
        %v2798 = vpop.f32.mrf.mxu0
        %v2799 = vadd.f32 0.0, %v2798
        %2800 = vmatmul.bf16.gmra.mxu0 %v2720
        %v2801 = vpop.f32.mrf.mxu0
        %v2802 = vadd.f32 0.0, %v2801
        %v2803 = vpop.f32.mrf.mxu0
        %v2804 = vadd.f32 0.0, %v2803
        %2805 = vmatmul.bf16.gmra.mxu0 %v2723
        %v2806 = vpop.f32.mrf.mxu0
        %v2807 = vadd.f32 0.0, %v2806
        %v2808 = vpop.f32.mrf.mxu0
        %v2809 = vadd.f32 0.0, %v2808
        %2810 = vmatmul.bf16.gmra.mxu0 %v2726
        %v2811 = vpop.f32.mrf.mxu0
        %v2812 = vadd.f32 0.0, %v2811
        %v2813 = vpop.f32.mrf.mxu0
        %v2814 = vadd.f32 0.0, %v2813
        %2815 = vmatmul.bf16.gmra.mxu0 %v2729
        %v2816 = vpop.f32.mrf.mxu0
        %v2817 = vadd.f32 0.0, %v2816
        %v2818 = vpop.f32.mrf.mxu0
        %v2819 = vadd.f32 0.0, %v2818
        %2820 = vmatmul.bf16.gmra.mxu0 %v2732
        %v2821 = vpop.f32.mrf.mxu0
        %v2822 = vadd.f32 0.0, %v2821
        %v2823 = vpop.f32.mrf.mxu0
        %v2824 = vadd.f32 0.0, %v2823
        %2825 = vdwg.mxu0
        %v2827 = vsel %vm440, %v2619, 0
        %v2830 = vsel %vm440, %v2620, 0
        %v2833 = vsel %vm440, %v2621, 0
        %v2836 = vsel %vm440, %v2622, 0
        %v2839 = vsel %vm440, %v2623, 0
        %v2842 = vsel %vm440, %v2624, 0
        %v2845 = vsel %vm440, %v2625, 0
        %v2848 = vsel %vm440, %v2626, 0
        %v2851 = vsel %vm440, %v2627, 0
        %v2854 = vsel %vm440, %v2628, 0
        %v2857 = vsel %vm440, %v2629, 0
        %v2860 = vsel %vm440, %v2630, 0
        %v2863 = vsel %vm440, %v2631, 0
        %v2866 = vsel %vm440, %v2632, 0
        %v2869 = vsel %vm440, %v2633, 0
        %v2872 = vsel %vm440, %v2634, 0
        %v2875 = vsel %vm697, %v2635, 0
        %2877 = vmatpush.bf16.msra.mxu0 0
        %2878 = vmatpush.bf16.msra.mxu0 0
        %2879 = vmatpush.bf16.msra.mxu0 0
        %2880 = vmatpush.bf16.msra.mxu0 0
        %2881 = vmatpush.bf16.msra.mxu0 0
        %2882 = vmatpush.bf16.msra.mxu0 0
        %2883 = vmatpush.bf16.msra.mxu0 0
        %2884 = vmatpush.bf16.msra.mxu0 %v2875
        %2885 = vmatmul.bf16.gmra.mxu0 %v2827
        %v2886 = vpop.f32.mrf.mxu0
        %v2887 = vadd.f32 %v2747, %v2886
        %v2888 = vpop.f32.mrf.mxu0
        %v2889 = vadd.f32 %v2749, %v2888
        %2890 = vmatmul.bf16.gmra.mxu0 %v2830
        %v2891 = vpop.f32.mrf.mxu0
        %v2892 = vadd.f32 %v2752, %v2891
        %v2893 = vpop.f32.mrf.mxu0
        %v2894 = vadd.f32 %v2754, %v2893
        %2895 = vmatmul.bf16.gmra.mxu0 %v2833
        %v2896 = vpop.f32.mrf.mxu0
        %v2897 = vadd.f32 %v2757, %v2896
        %v2898 = vpop.f32.mrf.mxu0
        %v2899 = vadd.f32 %v2759, %v2898
        %2900 = vmatmul.bf16.gmra.mxu0 %v2836
        %v2901 = vpop.f32.mrf.mxu0
        %v2902 = vadd.f32 %v2762, %v2901
        %v2903 = vpop.f32.mrf.mxu0
        %v2904 = vadd.f32 %v2764, %v2903
        %2905 = vmatmul.bf16.gmra.mxu0 %v2839
        %v2906 = vpop.f32.mrf.mxu0
        %v2907 = vadd.f32 %v2767, %v2906
        %v2908 = vpop.f32.mrf.mxu0
        %v2909 = vadd.f32 %v2769, %v2908
        %2910 = vmatmul.bf16.gmra.mxu0 %v2842
        %v2911 = vpop.f32.mrf.mxu0
        %v2912 = vadd.f32 %v2772, %v2911
        %v2913 = vpop.f32.mrf.mxu0
        %v2914 = vadd.f32 %v2774, %v2913
        %2915 = vmatmul.bf16.gmra.mxu0 %v2845
        %v2916 = vpop.f32.mrf.mxu0
        %v2917 = vadd.f32 %v2777, %v2916
        %v2918 = vpop.f32.mrf.mxu0
        %v2919 = vadd.f32 %v2779, %v2918
        %2920 = vmatmul.bf16.gmra.mxu0 %v2848
        %v2921 = vpop.f32.mrf.mxu0
        %v2922 = vadd.f32 %v2782, %v2921
        %v2923 = vpop.f32.mrf.mxu0
        %v2924 = vadd.f32 %v2784, %v2923
        %2925 = vmatmul.bf16.gmra.mxu0 %v2851
        %v2926 = vpop.f32.mrf.mxu0
        %v2927 = vadd.f32 %v2787, %v2926
        %v2928 = vpop.f32.mrf.mxu0
        %v2929 = vadd.f32 %v2789, %v2928
        %2930 = vmatmul.bf16.gmra.mxu0 %v2854
        %v2931 = vpop.f32.mrf.mxu0
        %v2932 = vadd.f32 %v2792, %v2931
        %v2933 = vpop.f32.mrf.mxu0
        %v2934 = vadd.f32 %v2794, %v2933
        %2935 = vmatmul.bf16.gmra.mxu0 %v2857
        %v2936 = vpop.f32.mrf.mxu0
        %v2937 = vadd.f32 %v2797, %v2936
        %v2938 = vpop.f32.mrf.mxu0
        %v2939 = vadd.f32 %v2799, %v2938
        %2940 = vmatmul.bf16.gmra.mxu0 %v2860
        %v2941 = vpop.f32.mrf.mxu0
        %v2942 = vadd.f32 %v2802, %v2941
        %v2943 = vpop.f32.mrf.mxu0
        %v2944 = vadd.f32 %v2804, %v2943
        %2945 = vmatmul.bf16.gmra.mxu0 %v2863
        %v2946 = vpop.f32.mrf.mxu0
        %v2947 = vadd.f32 %v2807, %v2946
        %v2948 = vpop.f32.mrf.mxu0
        %v2949 = vadd.f32 %v2809, %v2948
        %2950 = vmatmul.bf16.gmra.mxu0 %v2866
        %v2951 = vpop.f32.mrf.mxu0
        %v2952 = vadd.f32 %v2812, %v2951
        %v2953 = vpop.f32.mrf.mxu0
        %v2954 = vadd.f32 %v2814, %v2953
        %2955 = vmatmul.bf16.gmra.mxu0 %v2869
        %v2956 = vpop.f32.mrf.mxu0
        %v2957 = vadd.f32 %v2817, %v2956
        %v2958 = vpop.f32.mrf.mxu0
        %v2959 = vadd.f32 %v2819, %v2958
        %2960 = vmatmul.bf16.gmra.mxu0 %v2872
        %v2961 = vpop.f32.mrf.mxu0
        %v2962 = vadd.f32 %v2822, %v2961
        %v2963 = vpop.f32.mrf.mxu0
        %v2964 = vadd.f32 %v2824, %v2963
        %2965 = vdwg.mxu0
        %v2966 = vld [vmem:[#allocation3 + $0x2] sm:$0xff]
        %v2967 = vld [vmem:[#allocation3 + $0xa] sm:$0xff]
        %v2968 = vld [vmem:[#allocation3 + $0x1a] sm:$0xff]
        %v2969 = vld [vmem:[#allocation3 + $0x22] sm:$0xff]
        %v2970 = vld [vmem:[#allocation3 + $0x32] sm:$0xff]
        %v2971 = vld [vmem:[#allocation3 + $0x3a] sm:$0xff]
        %v2972 = vld [vmem:[#allocation3 + $0x4a] sm:$0xff]
        %v2973 = vld [vmem:[#allocation3 + $0x52] sm:$0xff]
        %v2974 = vld [vmem:[#allocation3 + $0x62] sm:$0xff]
        %v2975 = vld [vmem:[#allocation3 + $0x6a] sm:$0xff]
        %v2976 = vld [vmem:[#allocation3 + $0x7a] sm:$0xff]
        %v2977 = vld [vmem:[#allocation3 + $0x82] sm:$0xff]
        %v2978 = vld [vmem:[#allocation3 + $0x92] sm:$0xff]
        %v2979 = vld [vmem:[#allocation3 + $0x9a] sm:$0xff]
        %v2980 = vld [vmem:[#allocation3 + $0xaa] sm:$0xff]
        %v2981 = vld [vmem:[#allocation3 + $0xb2] sm:$0xff]
        %v2982 = vld [vmem:[#allocation3 + $0xc2] sm:$0xff]
        %v2983 = vld [vmem:[#allocation3 + $0xca] sm:$0xff]
        %v2984 = vld [vmem:[#allocation3 + $0xda] sm:$0xff]
        %v2985 = vld [vmem:[#allocation3 + $0xe2] sm:$0xff]
        %v2986 = vld [vmem:[#allocation3 + $0xf2] sm:$0xff]
        %v2987 = vld [vmem:[#allocation3 + $0xfa] sm:$0xff]
        %v2988 = vld [vmem:[#allocation3 + $0x10a] sm:$0xff]
        %v2989 = vld [vmem:[#allocation3 + $0x112] sm:$0xff]
        %v2990 = vld [vmem:[#allocation3 + $0x122] sm:$0xff]
        %v2991 = vld [vmem:[#allocation3 + $0x12a] sm:$0xff]
        %v2992 = vld [vmem:[#allocation3 + $0x13a] sm:$0xff]
        %v2993 = vld [vmem:[#allocation3 + $0x142] sm:$0xff]
        %v2994 = vld [vmem:[#allocation3 + $0x152] sm:$0xff]
        %v2995 = vld [vmem:[#allocation3 + $0x15a] sm:$0xff]
        %v2996 = vld [vmem:[#allocation3 + $0x16a] sm:$0xff]
        %v2997 = vld [vmem:[#allocation3 + $0x172] sm:$0xff]
        %v2998 = vpack.c.bf16 %v2967, %v2966
        %v2999 = vpack.c.bf16 %v2969, %v2968
        %v3000 = vpack.c.bf16 %v2971, %v2970
        %v3001 = vpack.c.bf16 %v2973, %v2972
        %v3002 = vpack.c.bf16 %v2975, %v2974
        %v3003 = vpack.c.bf16 %v2977, %v2976
        %v3004 = vpack.c.bf16 %v2979, %v2978
        %v3005 = vpack.c.bf16 %v2981, %v2980
        %v3006 = vpack.c.bf16 %v2983, %v2982
        %v3007 = vpack.c.bf16 %v2985, %v2984
        %v3008 = vpack.c.bf16 %v2987, %v2986
        %v3009 = vpack.c.bf16 %v2989, %v2988
        %v3010 = vpack.c.bf16 %v2991, %v2990
        %v3011 = vpack.c.bf16 %v2993, %v2992
        %v3012 = vpack.c.bf16 %v2995, %v2994
        %v3013 = vpack.c.bf16 %v2997, %v2996
        %s3014 = scalar_lea.vmem %s3, 4
        %v3015 = vld [vmem:[%s3014] sm:$0x3]
        %v3017 = vsel %vm440, %v2998, 0
        %v3020 = vsel %vm440, %v2999, 0
        %v3023 = vsel %vm440, %v3000, 0
        %v3026 = vsel %vm440, %v3001, 0
        %v3029 = vsel %vm440, %v3002, 0
        %v3032 = vsel %vm440, %v3003, 0
        %v3035 = vsel %vm440, %v3004, 0
        %v3038 = vsel %vm440, %v3005, 0
        %v3041 = vsel %vm440, %v3006, 0
        %v3044 = vsel %vm440, %v3007, 0
        %v3047 = vsel %vm440, %v3008, 0
        %v3050 = vsel %vm440, %v3009, 0
        %v3053 = vsel %vm440, %v3010, 0
        %v3056 = vsel %vm440, %v3011, 0
        %v3059 = vsel %vm440, %v3012, 0
        %v3062 = vsel %vm440, %v3013, 0
        %v3065 = vsel %vm697, %v3015, 0
        %3067 = vmatpush.bf16.msra.mxu0 0
        %3068 = vmatpush.bf16.msra.mxu0 0
        %3069 = vmatpush.bf16.msra.mxu0 0
        %3070 = vmatpush.bf16.msra.mxu0 0
        %3071 = vmatpush.bf16.msra.mxu0 0
        %3072 = vmatpush.bf16.msra.mxu0 0
        %3073 = vmatpush.bf16.msra.mxu0 0
        %3074 = vmatpush.bf16.msra.mxu0 %v3065
        %3075 = vmatmul.bf16.gmra.mxu0 %v3017
        %v3076 = vpop.f32.mrf.mxu0
        %v3077 = vadd.f32 0.0, %v3076
        %v3078 = vpop.f32.mrf.mxu0
        %v3079 = vadd.f32 0.0, %v3078
        %3080 = vmatmul.bf16.gmra.mxu0 %v3020
        %v3081 = vpop.f32.mrf.mxu0
        %v3082 = vadd.f32 0.0, %v3081
        %v3083 = vpop.f32.mrf.mxu0
        %v3084 = vadd.f32 0.0, %v3083
        %3085 = vmatmul.bf16.gmra.mxu0 %v3023
        %v3086 = vpop.f32.mrf.mxu0
        %v3087 = vadd.f32 0.0, %v3086
        %v3088 = vpop.f32.mrf.mxu0
        %v3089 = vadd.f32 0.0, %v3088
        %3090 = vmatmul.bf16.gmra.mxu0 %v3026
        %v3091 = vpop.f32.mrf.mxu0
        %v3092 = vadd.f32 0.0, %v3091
        %v3093 = vpop.f32.mrf.mxu0
        %v3094 = vadd.f32 0.0, %v3093
        %3095 = vmatmul.bf16.gmra.mxu0 %v3029
        %v3096 = vpop.f32.mrf.mxu0
        %v3097 = vadd.f32 0.0, %v3096
        %v3098 = vpop.f32.mrf.mxu0
        %v3099 = vadd.f32 0.0, %v3098
        %3100 = vmatmul.bf16.gmra.mxu0 %v3032
        %v3101 = vpop.f32.mrf.mxu0
        %v3102 = vadd.f32 0.0, %v3101
        %v3103 = vpop.f32.mrf.mxu0
        %v3104 = vadd.f32 0.0, %v3103
        %3105 = vmatmul.bf16.gmra.mxu0 %v3035
        %v3106 = vpop.f32.mrf.mxu0
        %v3107 = vadd.f32 0.0, %v3106
        %v3108 = vpop.f32.mrf.mxu0
        %v3109 = vadd.f32 0.0, %v3108
        %3110 = vmatmul.bf16.gmra.mxu0 %v3038
        %v3111 = vpop.f32.mrf.mxu0
        %v3112 = vadd.f32 0.0, %v3111
        %v3113 = vpop.f32.mrf.mxu0
        %v3114 = vadd.f32 0.0, %v3113
        %3115 = vmatmul.bf16.gmra.mxu0 %v3041
        %v3116 = vpop.f32.mrf.mxu0
        %v3117 = vadd.f32 0.0, %v3116
        %v3118 = vpop.f32.mrf.mxu0
        %v3119 = vadd.f32 0.0, %v3118
        %3120 = vmatmul.bf16.gmra.mxu0 %v3044
        %v3121 = vpop.f32.mrf.mxu0
        %v3122 = vadd.f32 0.0, %v3121
        %v3123 = vpop.f32.mrf.mxu0
        %v3124 = vadd.f32 0.0, %v3123
        %3125 = vmatmul.bf16.gmra.mxu0 %v3047
        %v3126 = vpop.f32.mrf.mxu0
        %v3127 = vadd.f32 0.0, %v3126
        %v3128 = vpop.f32.mrf.mxu0
        %v3129 = vadd.f32 0.0, %v3128
        %3130 = vmatmul.bf16.gmra.mxu0 %v3050
        %v3131 = vpop.f32.mrf.mxu0
        %v3132 = vadd.f32 0.0, %v3131
        %v3133 = vpop.f32.mrf.mxu0
        %v3134 = vadd.f32 0.0, %v3133
        %3135 = vmatmul.bf16.gmra.mxu0 %v3053
        %v3136 = vpop.f32.mrf.mxu0
        %v3137 = vadd.f32 0.0, %v3136
        %v3138 = vpop.f32.mrf.mxu0
        %v3139 = vadd.f32 0.0, %v3138
        %3140 = vmatmul.bf16.gmra.mxu0 %v3056
        %v3141 = vpop.f32.mrf.mxu0
        %v3142 = vadd.f32 0.0, %v3141
        %v3143 = vpop.f32.mrf.mxu0
        %v3144 = vadd.f32 0.0, %v3143
        %3145 = vmatmul.bf16.gmra.mxu0 %v3059
        %v3146 = vpop.f32.mrf.mxu0
        %v3147 = vadd.f32 0.0, %v3146
        %v3148 = vpop.f32.mrf.mxu0
        %v3149 = vadd.f32 0.0, %v3148
        %3150 = vmatmul.bf16.gmra.mxu0 %v3062
        %v3151 = vpop.f32.mrf.mxu0
        %v3152 = vadd.f32 0.0, %v3151
        %v3153 = vpop.f32.mrf.mxu0
        %v3154 = vadd.f32 0.0, %v3153
        %3155 = vdwg.mxu0
        %v3156 = vadd.f32 %v2887, %v3077
        %v3157 = vadd.f32 %v2889, %v3079
        %v3158 = vadd.f32 %v2892, %v3082
        %v3159 = vadd.f32 %v2894, %v3084
        %v3160 = vadd.f32 %v2897, %v3087
        %v3161 = vadd.f32 %v2899, %v3089
        %v3162 = vadd.f32 %v2902, %v3092
        %v3163 = vadd.f32 %v2904, %v3094
        %v3164 = vadd.f32 %v2907, %v3097
        %v3165 = vadd.f32 %v2909, %v3099
        %v3166 = vadd.f32 %v2912, %v3102
        %v3167 = vadd.f32 %v2914, %v3104
        %v3168 = vadd.f32 %v2917, %v3107
        %v3169 = vadd.f32 %v2919, %v3109
        %v3170 = vadd.f32 %v2922, %v3112
        %v3171 = vadd.f32 %v2924, %v3114
        %v3172 = vadd.f32 %v2927, %v3117
        %v3173 = vadd.f32 %v2929, %v3119
        %v3174 = vadd.f32 %v2932, %v3122
        %v3175 = vadd.f32 %v2934, %v3124
        %v3176 = vadd.f32 %v2937, %v3127
        %v3177 = vadd.f32 %v2939, %v3129
        %v3178 = vadd.f32 %v2942, %v3132
        %v3179 = vadd.f32 %v2944, %v3134
        %v3180 = vadd.f32 %v2947, %v3137
        %v3181 = vadd.f32 %v2949, %v3139
        %v3182 = vadd.f32 %v2952, %v3142
        %v3183 = vadd.f32 %v2954, %v3144
        %v3184 = vadd.f32 %v2957, %v3147
        %v3185 = vadd.f32 %v2959, %v3149
        %v3186 = vadd.f32 %v2962, %v3152
        %v3187 = vadd.f32 %v2964, %v3154
        %v3188 = vld [vmem:[%s2554] sm:$0xff]
        %v3189 = vld [vmem:[%s2554 + $0x8] sm:$0xff]
        %v3190 = vld [vmem:[%s2554 + $0x18] sm:$0xff]
        %v3191 = vld [vmem:[%s2554 + $0x20] sm:$0xff]
        %v3192 = vld [vmem:[%s2554 + $0x30] sm:$0xff]
        %v3193 = vld [vmem:[%s2554 + $0x38] sm:$0xff]
        %v3194 = vld [vmem:[%s2554 + $0x48] sm:$0xff]
        %v3195 = vld [vmem:[%s2554 + $0x50] sm:$0xff]
        %v3196 = vld [vmem:[%s2554 + $0x60] sm:$0xff]
        %v3197 = vld [vmem:[%s2554 + $0x68] sm:$0xff]
        %v3198 = vld [vmem:[%s2554 + $0x78] sm:$0xff]
        %v3199 = vld [vmem:[%s2554 + $0x80] sm:$0xff]
        %v3200 = vld [vmem:[%s2554 + $0x90] sm:$0xff]
        %v3201 = vld [vmem:[%s2554 + $0x98] sm:$0xff]
        %v3202 = vld [vmem:[%s2554 + $0xa8] sm:$0xff]
        %v3203 = vld [vmem:[%s2554 + $0xb0] sm:$0xff]
        %v3204 = vld [vmem:[%s2554 + $0xc0] sm:$0xff]
        %v3205 = vld [vmem:[%s2554 + $0xc8] sm:$0xff]
        %v3206 = vld [vmem:[%s2554 + $0xd8] sm:$0xff]
        %v3207 = vld [vmem:[%s2554 + $0xe0] sm:$0xff]
        %v3208 = vld [vmem:[%s2554 + $0xf0] sm:$0xff]
        %v3209 = vld [vmem:[%s2554 + $0xf8] sm:$0xff]
        %v3210 = vld [vmem:[%s2554 + $0x108] sm:$0xff]
        %v3211 = vld [vmem:[%s2554 + $0x110] sm:$0xff]
        %v3212 = vld [vmem:[%s2554 + $0x120] sm:$0xff]
        %v3213 = vld [vmem:[%s2554 + $0x128] sm:$0xff]
        %v3214 = vld [vmem:[%s2554 + $0x138] sm:$0xff]
        %v3215 = vld [vmem:[%s2554 + $0x140] sm:$0xff]
        %v3216 = vld [vmem:[%s2554 + $0x150] sm:$0xff]
        %v3217 = vld [vmem:[%s2554 + $0x158] sm:$0xff]
        %v3218 = vld [vmem:[%s2554 + $0x168] sm:$0xff]
        %v3219 = vld [vmem:[%s2554 + $0x170] sm:$0xff]
        %v3220 = vpack.c.bf16 %v3189, %v3188
        %v3221 = vpack.c.bf16 %v3191, %v3190
        %v3222 = vpack.c.bf16 %v3193, %v3192
        %v3223 = vpack.c.bf16 %v3195, %v3194
        %v3224 = vpack.c.bf16 %v3197, %v3196
        %v3225 = vpack.c.bf16 %v3199, %v3198
        %v3226 = vpack.c.bf16 %v3201, %v3200
        %v3227 = vpack.c.bf16 %v3203, %v3202
        %v3228 = vpack.c.bf16 %v3205, %v3204
        %v3229 = vpack.c.bf16 %v3207, %v3206
        %v3230 = vpack.c.bf16 %v3209, %v3208
        %v3231 = vpack.c.bf16 %v3211, %v3210
        %v3232 = vpack.c.bf16 %v3213, %v3212
        %v3233 = vpack.c.bf16 %v3215, %v3214
        %v3234 = vpack.c.bf16 %v3217, %v3216
        %v3235 = vpack.c.bf16 %v3219, %v3218
        %s3236 = scalar_lea.vmem %s3, 6
        %v3237 = vld [vmem:[%s3236] sm:$0x3]
        %v3239 = vsel %vm440, %v3220, 0
        %v3242 = vsel %vm440, %v3221, 0
        %v3245 = vsel %vm440, %v3222, 0
        %v3248 = vsel %vm440, %v3223, 0
        %v3251 = vsel %vm440, %v3224, 0
        %v3254 = vsel %vm440, %v3225, 0
        %v3257 = vsel %vm440, %v3226, 0
        %v3260 = vsel %vm440, %v3227, 0
        %v3263 = vsel %vm440, %v3228, 0
        %v3266 = vsel %vm440, %v3229, 0
        %v3269 = vsel %vm440, %v3230, 0
        %v3272 = vsel %vm440, %v3231, 0
        %v3275 = vsel %vm440, %v3232, 0
        %v3278 = vsel %vm440, %v3233, 0
        %v3281 = vsel %vm440, %v3234, 0
        %v3284 = vsel %vm440, %v3235, 0
        %v3287 = vsel %vm697, %v3237, 0
        %3289 = vmatpush.bf16.msra.mxu0 0
        %3290 = vmatpush.bf16.msra.mxu0 0
        %3291 = vmatpush.bf16.msra.mxu0 0
        %3292 = vmatpush.bf16.msra.mxu0 0
        %3293 = vmatpush.bf16.msra.mxu0 0
        %3294 = vmatpush.bf16.msra.mxu0 0
        %3295 = vmatpush.bf16.msra.mxu0 0
        %3296 = vmatpush.bf16.msra.mxu0 %v3287
        %3297 = vmatmul.bf16.gmra.mxu0 %v3239
        %v3298 = vpop.f32.mrf.mxu0
        %v3299 = vadd.f32 0.0, %v3298
        %v3300 = vpop.f32.mrf.mxu0
        %v3301 = vadd.f32 0.0, %v3300
        %3302 = vmatmul.bf16.gmra.mxu0 %v3242
        %v3303 = vpop.f32.mrf.mxu0
        %v3304 = vadd.f32 0.0, %v3303
        %v3305 = vpop.f32.mrf.mxu0
        %v3306 = vadd.f32 0.0, %v3305
        %3307 = vmatmul.bf16.gmra.mxu0 %v3245
        %v3308 = vpop.f32.mrf.mxu0
        %v3309 = vadd.f32 0.0, %v3308
        %v3310 = vpop.f32.mrf.mxu0
        %v3311 = vadd.f32 0.0, %v3310
        %3312 = vmatmul.bf16.gmra.mxu0 %v3248
        %v3313 = vpop.f32.mrf.mxu0
        %v3314 = vadd.f32 0.0, %v3313
        %v3315 = vpop.f32.mrf.mxu0
        %v3316 = vadd.f32 0.0, %v3315
        %3317 = vmatmul.bf16.gmra.mxu0 %v3251
        %v3318 = vpop.f32.mrf.mxu0
        %v3319 = vadd.f32 0.0, %v3318
        %v3320 = vpop.f32.mrf.mxu0
        %v3321 = vadd.f32 0.0, %v3320
        %3322 = vmatmul.bf16.gmra.mxu0 %v3254
        %v3323 = vpop.f32.mrf.mxu0
        %v3324 = vadd.f32 0.0, %v3323
        %v3325 = vpop.f32.mrf.mxu0
        %v3326 = vadd.f32 0.0, %v3325
        %3327 = vmatmul.bf16.gmra.mxu0 %v3257
        %v3328 = vpop.f32.mrf.mxu0
        %v3329 = vadd.f32 0.0, %v3328
        %v3330 = vpop.f32.mrf.mxu0
        %v3331 = vadd.f32 0.0, %v3330
        %3332 = vmatmul.bf16.gmra.mxu0 %v3260
        %v3333 = vpop.f32.mrf.mxu0
        %v3334 = vadd.f32 0.0, %v3333
        %v3335 = vpop.f32.mrf.mxu0
        %v3336 = vadd.f32 0.0, %v3335
        %3337 = vmatmul.bf16.gmra.mxu0 %v3263
        %v3338 = vpop.f32.mrf.mxu0
        %v3339 = vadd.f32 0.0, %v3338
        %v3340 = vpop.f32.mrf.mxu0
        %v3341 = vadd.f32 0.0, %v3340
        %3342 = vmatmul.bf16.gmra.mxu0 %v3266
        %v3343 = vpop.f32.mrf.mxu0
        %v3344 = vadd.f32 0.0, %v3343
        %v3345 = vpop.f32.mrf.mxu0
        %v3346 = vadd.f32 0.0, %v3345
        %3347 = vmatmul.bf16.gmra.mxu0 %v3269
        %v3348 = vpop.f32.mrf.mxu0
        %v3349 = vadd.f32 0.0, %v3348
        %v3350 = vpop.f32.mrf.mxu0
        %v3351 = vadd.f32 0.0, %v3350
        %3352 = vmatmul.bf16.gmra.mxu0 %v3272
        %v3353 = vpop.f32.mrf.mxu0
        %v3354 = vadd.f32 0.0, %v3353
        %v3355 = vpop.f32.mrf.mxu0
        %v3356 = vadd.f32 0.0, %v3355
        %3357 = vmatmul.bf16.gmra.mxu0 %v3275
        %v3358 = vpop.f32.mrf.mxu0
        %v3359 = vadd.f32 0.0, %v3358
        %v3360 = vpop.f32.mrf.mxu0
        %v3361 = vadd.f32 0.0, %v3360
        %3362 = vmatmul.bf16.gmra.mxu0 %v3278
        %v3363 = vpop.f32.mrf.mxu0
        %v3364 = vadd.f32 0.0, %v3363
        %v3365 = vpop.f32.mrf.mxu0
        %v3366 = vadd.f32 0.0, %v3365
        %3367 = vmatmul.bf16.gmra.mxu0 %v3281
        %v3368 = vpop.f32.mrf.mxu0
        %v3369 = vadd.f32 0.0, %v3368
        %v3370 = vpop.f32.mrf.mxu0
        %v3371 = vadd.f32 0.0, %v3370
        %3372 = vmatmul.bf16.gmra.mxu0 %v3284
        %v3373 = vpop.f32.mrf.mxu0
        %v3374 = vadd.f32 0.0, %v3373
        %v3375 = vpop.f32.mrf.mxu0
        %v3376 = vadd.f32 0.0, %v3375
        %3377 = vdwg.mxu0
        %v3378 = vadd.f32 %v3156, %v3299
        %v3379 = vadd.f32 %v3157, %v3301
        %v3380 = vadd.f32 %v3158, %v3304
        %v3381 = vadd.f32 %v3159, %v3306
        %v3382 = vadd.f32 %v3160, %v3309
        %v3383 = vadd.f32 %v3161, %v3311
        %v3384 = vadd.f32 %v3162, %v3314
        %v3385 = vadd.f32 %v3163, %v3316
        %v3386 = vadd.f32 %v3164, %v3319
        %v3387 = vadd.f32 %v3165, %v3321
        %v3388 = vadd.f32 %v3166, %v3324
        %v3389 = vadd.f32 %v3167, %v3326
        %v3390 = vadd.f32 %v3168, %v3329
        %v3391 = vadd.f32 %v3169, %v3331
        %v3392 = vadd.f32 %v3170, %v3334
        %v3393 = vadd.f32 %v3171, %v3336
        %v3394 = vadd.f32 %v3172, %v3339
        %v3395 = vadd.f32 %v3173, %v3341
        %v3396 = vadd.f32 %v3174, %v3344
        %v3397 = vadd.f32 %v3175, %v3346
        %v3398 = vadd.f32 %v3176, %v3349
        %v3399 = vadd.f32 %v3177, %v3351
        %v3400 = vadd.f32 %v3178, %v3354
        %v3401 = vadd.f32 %v3179, %v3356
        %v3402 = vadd.f32 %v3180, %v3359
        %v3403 = vadd.f32 %v3181, %v3361
        %v3404 = vadd.f32 %v3182, %v3364
        %v3405 = vadd.f32 %v3183, %v3366
        %v3406 = vadd.f32 %v3184, %v3369
        %v3407 = vadd.f32 %v3185, %v3371
        %v3408 = vadd.f32 %v3186, %v3374
        %v3409 = vadd.f32 %v3187, %v3376
        %v3410 = vld [vmem:[%s2554 + $0x1] sm:$0xff]
        %v3411 = vld [vmem:[%s2554 + $0x9] sm:$0xff]
        %v3412 = vld [vmem:[%s2554 + $0x19] sm:$0xff]
        %v3413 = vld [vmem:[%s2554 + $0x21] sm:$0xff]
        %v3414 = vld [vmem:[%s2554 + $0x31] sm:$0xff]
        %v3415 = vld [vmem:[%s2554 + $0x39] sm:$0xff]
        %v3416 = vld [vmem:[%s2554 + $0x49] sm:$0xff]
        %v3417 = vld [vmem:[%s2554 + $0x51] sm:$0xff]
        %v3418 = vld [vmem:[%s2554 + $0x61] sm:$0xff]
        %v3419 = vld [vmem:[%s2554 + $0x69] sm:$0xff]
        %v3420 = vld [vmem:[%s2554 + $0x79] sm:$0xff]
        %v3421 = vld [vmem:[%s2554 + $0x81] sm:$0xff]
        %v3422 = vld [vmem:[%s2554 + $0x91] sm:$0xff]
        %v3423 = vld [vmem:[%s2554 + $0x99] sm:$0xff]
        %v3424 = vld [vmem:[%s2554 + $0xa9] sm:$0xff]
        %v3425 = vld [vmem:[%s2554 + $0xb1] sm:$0xff]
        %v3426 = vld [vmem:[%s2554 + $0xc1] sm:$0xff]
        %v3427 = vld [vmem:[%s2554 + $0xc9] sm:$0xff]
        %v3428 = vld [vmem:[%s2554 + $0xd9] sm:$0xff]
        %v3429 = vld [vmem:[%s2554 + $0xe1] sm:$0xff]
        %v3430 = vld [vmem:[%s2554 + $0xf1] sm:$0xff]
        %v3431 = vld [vmem:[%s2554 + $0xf9] sm:$0xff]
        %v3432 = vld [vmem:[%s2554 + $0x109] sm:$0xff]
        %v3433 = vld [vmem:[%s2554 + $0x111] sm:$0xff]
        %v3434 = vld [vmem:[%s2554 + $0x121] sm:$0xff]
        %v3435 = vld [vmem:[%s2554 + $0x129] sm:$0xff]
        %v3436 = vld [vmem:[%s2554 + $0x139] sm:$0xff]
        %v3437 = vld [vmem:[%s2554 + $0x141] sm:$0xff]
        %v3438 = vld [vmem:[%s2554 + $0x151] sm:$0xff]
        %v3439 = vld [vmem:[%s2554 + $0x159] sm:$0xff]
        %v3440 = vld [vmem:[%s2554 + $0x169] sm:$0xff]
        %v3441 = vld [vmem:[%s2554 + $0x171] sm:$0xff]
        %v3442 = vpack.c.bf16 %v3411, %v3410
        %v3443 = vpack.c.bf16 %v3413, %v3412
        %v3444 = vpack.c.bf16 %v3415, %v3414
        %v3445 = vpack.c.bf16 %v3417, %v3416
        %v3446 = vpack.c.bf16 %v3419, %v3418
        %v3447 = vpack.c.bf16 %v3421, %v3420
        %v3448 = vpack.c.bf16 %v3423, %v3422
        %v3449 = vpack.c.bf16 %v3425, %v3424
        %v3450 = vpack.c.bf16 %v3427, %v3426
        %v3451 = vpack.c.bf16 %v3429, %v3428
        %v3452 = vpack.c.bf16 %v3431, %v3430
        %v3453 = vpack.c.bf16 %v3433, %v3432
        %v3454 = vpack.c.bf16 %v3435, %v3434
        %v3455 = vpack.c.bf16 %v3437, %v3436
        %v3456 = vpack.c.bf16 %v3439, %v3438
        %v3457 = vpack.c.bf16 %v3441, %v3440
        %s3458 = scalar_lea.vmem %s3, 8
        %v3459 = vld [vmem:[%s3458] sm:$0x3]
        %v3461 = vsel %vm440, %v3442, 0
        %v3464 = vsel %vm440, %v3443, 0
        %v3467 = vsel %vm440, %v3444, 0
        %v3470 = vsel %vm440, %v3445, 0
        %v3473 = vsel %vm440, %v3446, 0
        %v3476 = vsel %vm440, %v3447, 0
        %v3479 = vsel %vm440, %v3448, 0
        %v3482 = vsel %vm440, %v3449, 0
        %v3485 = vsel %vm440, %v3450, 0
        %v3488 = vsel %vm440, %v3451, 0
        %v3491 = vsel %vm440, %v3452, 0
        %v3494 = vsel %vm440, %v3453, 0
        %v3497 = vsel %vm440, %v3454, 0
        %v3500 = vsel %vm440, %v3455, 0
        %v3503 = vsel %vm440, %v3456, 0
        %v3506 = vsel %vm440, %v3457, 0
        %v3509 = vsel %vm697, %v3459, 0
        %3511 = vmatpush.bf16.msra.mxu0 0
        %3512 = vmatpush.bf16.msra.mxu0 0
        %3513 = vmatpush.bf16.msra.mxu0 0
        %3514 = vmatpush.bf16.msra.mxu0 0
        %3515 = vmatpush.bf16.msra.mxu0 0
        %3516 = vmatpush.bf16.msra.mxu0 0
        %3517 = vmatpush.bf16.msra.mxu0 0
        %3518 = vmatpush.bf16.msra.mxu0 %v3509
        %3519 = vmatmul.bf16.gmra.mxu0 %v3461
        %v3520 = vpop.f32.mrf.mxu0
        %v3521 = vadd.f32 0.0, %v3520
        %v3522 = vpop.f32.mrf.mxu0
        %v3523 = vadd.f32 0.0, %v3522
        %3524 = vmatmul.bf16.gmra.mxu0 %v3464
        %v3525 = vpop.f32.mrf.mxu0
        %v3526 = vadd.f32 0.0, %v3525
        %v3527 = vpop.f32.mrf.mxu0
        %v3528 = vadd.f32 0.0, %v3527
        %3529 = vmatmul.bf16.gmra.mxu0 %v3467
        %v3530 = vpop.f32.mrf.mxu0
        %v3531 = vadd.f32 0.0, %v3530
        %v3532 = vpop.f32.mrf.mxu0
        %v3533 = vadd.f32 0.0, %v3532
        %3534 = vmatmul.bf16.gmra.mxu0 %v3470
        %v3535 = vpop.f32.mrf.mxu0
        %v3536 = vadd.f32 0.0, %v3535
        %v3537 = vpop.f32.mrf.mxu0
        %v3538 = vadd.f32 0.0, %v3537
        %3539 = vmatmul.bf16.gmra.mxu0 %v3473
        %v3540 = vpop.f32.mrf.mxu0
        %v3541 = vadd.f32 0.0, %v3540
        %v3542 = vpop.f32.mrf.mxu0
        %v3543 = vadd.f32 0.0, %v3542
        %3544 = vmatmul.bf16.gmra.mxu0 %v3476
        %v3545 = vpop.f32.mrf.mxu0
        %v3546 = vadd.f32 0.0, %v3545
        %v3547 = vpop.f32.mrf.mxu0
        %v3548 = vadd.f32 0.0, %v3547
        %3549 = vmatmul.bf16.gmra.mxu0 %v3479
        %v3550 = vpop.f32.mrf.mxu0
        %v3551 = vadd.f32 0.0, %v3550
        %v3552 = vpop.f32.mrf.mxu0
        %v3553 = vadd.f32 0.0, %v3552
        %3554 = vmatmul.bf16.gmra.mxu0 %v3482
        %v3555 = vpop.f32.mrf.mxu0
        %v3556 = vadd.f32 0.0, %v3555
        %v3557 = vpop.f32.mrf.mxu0
        %v3558 = vadd.f32 0.0, %v3557
        %3559 = vmatmul.bf16.gmra.mxu0 %v3485
        %v3560 = vpop.f32.mrf.mxu0
        %v3561 = vadd.f32 0.0, %v3560
        %v3562 = vpop.f32.mrf.mxu0
        %v3563 = vadd.f32 0.0, %v3562
        %3564 = vmatmul.bf16.gmra.mxu0 %v3488
        %v3565 = vpop.f32.mrf.mxu0
        %v3566 = vadd.f32 0.0, %v3565
        %v3567 = vpop.f32.mrf.mxu0
        %v3568 = vadd.f32 0.0, %v3567
        %3569 = vmatmul.bf16.gmra.mxu0 %v3491
        %v3570 = vpop.f32.mrf.mxu0
        %v3571 = vadd.f32 0.0, %v3570
        %v3572 = vpop.f32.mrf.mxu0
        %v3573 = vadd.f32 0.0, %v3572
        %3574 = vmatmul.bf16.gmra.mxu0 %v3494
        %v3575 = vpop.f32.mrf.mxu0
        %v3576 = vadd.f32 0.0, %v3575
        %v3577 = vpop.f32.mrf.mxu0
        %v3578 = vadd.f32 0.0, %v3577
        %3579 = vmatmul.bf16.gmra.mxu0 %v3497
        %v3580 = vpop.f32.mrf.mxu0
        %v3581 = vadd.f32 0.0, %v3580
        %v3582 = vpop.f32.mrf.mxu0
        %v3583 = vadd.f32 0.0, %v3582
        %3584 = vmatmul.bf16.gmra.mxu0 %v3500
        %v3585 = vpop.f32.mrf.mxu0
        %v3586 = vadd.f32 0.0, %v3585
        %v3587 = vpop.f32.mrf.mxu0
        %v3588 = vadd.f32 0.0, %v3587
        %3589 = vmatmul.bf16.gmra.mxu0 %v3503
        %v3590 = vpop.f32.mrf.mxu0
        %v3591 = vadd.f32 0.0, %v3590
        %v3592 = vpop.f32.mrf.mxu0
        %v3593 = vadd.f32 0.0, %v3592
        %3594 = vmatmul.bf16.gmra.mxu0 %v3506
        %v3595 = vpop.f32.mrf.mxu0
        %v3596 = vadd.f32 0.0, %v3595
        %v3597 = vpop.f32.mrf.mxu0
        %v3598 = vadd.f32 0.0, %v3597
        %3599 = vdwg.mxu0
        %v3600 = vadd.f32 %v3378, %v3521
        %v3601 = vadd.f32 %v3379, %v3523
        %v3602 = vadd.f32 %v3380, %v3526
        %v3603 = vadd.f32 %v3381, %v3528
        %v3604 = vadd.f32 %v3382, %v3531
        %v3605 = vadd.f32 %v3383, %v3533
        %v3606 = vadd.f32 %v3384, %v3536
        %v3607 = vadd.f32 %v3385, %v3538
        %v3608 = vadd.f32 %v3386, %v3541
        %v3609 = vadd.f32 %v3387, %v3543
        %v3610 = vadd.f32 %v3388, %v3546
        %v3611 = vadd.f32 %v3389, %v3548
        %v3612 = vadd.f32 %v3390, %v3551
        %v3613 = vadd.f32 %v3391, %v3553
        %v3614 = vadd.f32 %v3392, %v3556
        %v3615 = vadd.f32 %v3393, %v3558
        %v3616 = vadd.f32 %v3394, %v3561
        %v3617 = vadd.f32 %v3395, %v3563
        %v3618 = vadd.f32 %v3396, %v3566
        %v3619 = vadd.f32 %v3397, %v3568
        %v3620 = vadd.f32 %v3398, %v3571
        %v3621 = vadd.f32 %v3399, %v3573
        %v3622 = vadd.f32 %v3400, %v3576
        %v3623 = vadd.f32 %v3401, %v3578
        %v3624 = vadd.f32 %v3402, %v3581
        %v3625 = vadd.f32 %v3403, %v3583
        %v3626 = vadd.f32 %v3404, %v3586
        %v3627 = vadd.f32 %v3405, %v3588
        %v3628 = vadd.f32 %v3406, %v3591
        %v3629 = vadd.f32 %v3407, %v3593
        %v3630 = vadd.f32 %v3408, %v3596
        %v3631 = vadd.f32 %v3409, %v3598
        %v3632 = vld [vmem:[%s2554 + $0x2] sm:$0xff]
        %v3633 = vld [vmem:[%s2554 + $0xa] sm:$0xff]
        %v3634 = vld [vmem:[%s2554 + $0x1a] sm:$0xff]
        %v3635 = vld [vmem:[%s2554 + $0x22] sm:$0xff]
        %v3636 = vld [vmem:[%s2554 + $0x32] sm:$0xff]
        %v3637 = vld [vmem:[%s2554 + $0x3a] sm:$0xff]
        %v3638 = vld [vmem:[%s2554 + $0x4a] sm:$0xff]
        %v3639 = vld [vmem:[%s2554 + $0x52] sm:$0xff]
        %v3640 = vld [vmem:[%s2554 + $0x62] sm:$0xff]
        %v3641 = vld [vmem:[%s2554 + $0x6a] sm:$0xff]
        %v3642 = vld [vmem:[%s2554 + $0x7a] sm:$0xff]
        %v3643 = vld [vmem:[%s2554 + $0x82] sm:$0xff]
        %v3644 = vld [vmem:[%s2554 + $0x92] sm:$0xff]
        %v3645 = vld [vmem:[%s2554 + $0x9a] sm:$0xff]
        %v3646 = vld [vmem:[%s2554 + $0xaa] sm:$0xff]
        %v3647 = vld [vmem:[%s2554 + $0xb2] sm:$0xff]
        %v3648 = vld [vmem:[%s2554 + $0xc2] sm:$0xff]
        %v3649 = vld [vmem:[%s2554 + $0xca] sm:$0xff]
        %v3650 = vld [vmem:[%s2554 + $0xda] sm:$0xff]
        %v3651 = vld [vmem:[%s2554 + $0xe2] sm:$0xff]
        %v3652 = vld [vmem:[%s2554 + $0xf2] sm:$0xff]
        %v3653 = vld [vmem:[%s2554 + $0xfa] sm:$0xff]
        %v3654 = vld [vmem:[%s2554 + $0x10a] sm:$0xff]
        %v3655 = vld [vmem:[%s2554 + $0x112] sm:$0xff]
        %v3656 = vld [vmem:[%s2554 + $0x122] sm:$0xff]
        %v3657 = vld [vmem:[%s2554 + $0x12a] sm:$0xff]
        %v3658 = vld [vmem:[%s2554 + $0x13a] sm:$0xff]
        %v3659 = vld [vmem:[%s2554 + $0x142] sm:$0xff]
        %v3660 = vld [vmem:[%s2554 + $0x152] sm:$0xff]
        %v3661 = vld [vmem:[%s2554 + $0x15a] sm:$0xff]
        %v3662 = vld [vmem:[%s2554 + $0x16a] sm:$0xff]
        %v3663 = vld [vmem:[%s2554 + $0x172] sm:$0xff]
        %v3664 = vpack.c.bf16 %v3633, %v3632
        %v3665 = vpack.c.bf16 %v3635, %v3634
        %v3666 = vpack.c.bf16 %v3637, %v3636
        %v3667 = vpack.c.bf16 %v3639, %v3638
        %v3668 = vpack.c.bf16 %v3641, %v3640
        %v3669 = vpack.c.bf16 %v3643, %v3642
        %v3670 = vpack.c.bf16 %v3645, %v3644
        %v3671 = vpack.c.bf16 %v3647, %v3646
        %v3672 = vpack.c.bf16 %v3649, %v3648
        %v3673 = vpack.c.bf16 %v3651, %v3650
        %v3674 = vpack.c.bf16 %v3653, %v3652
        %v3675 = vpack.c.bf16 %v3655, %v3654
        %v3676 = vpack.c.bf16 %v3657, %v3656
        %v3677 = vpack.c.bf16 %v3659, %v3658
        %v3678 = vpack.c.bf16 %v3661, %v3660
        %v3679 = vpack.c.bf16 %v3663, %v3662
        %s3680 = scalar_lea.vmem %s3, 10
        %v3681 = vld [vmem:[%s3680] sm:$0x3]
        %v3683 = vsel %vm440, %v3664, 0
        %v3686 = vsel %vm440, %v3665, 0
        %v3689 = vsel %vm440, %v3666, 0
        %v3692 = vsel %vm440, %v3667, 0
        %v3695 = vsel %vm440, %v3668, 0
        %v3698 = vsel %vm440, %v3669, 0
        %v3701 = vsel %vm440, %v3670, 0
        %v3704 = vsel %vm440, %v3671, 0
        %v3707 = vsel %vm440, %v3672, 0
        %v3710 = vsel %vm440, %v3673, 0
        %v3713 = vsel %vm440, %v3674, 0
        %v3716 = vsel %vm440, %v3675, 0
        %v3719 = vsel %vm440, %v3676, 0
        %v3722 = vsel %vm440, %v3677, 0
        %v3725 = vsel %vm440, %v3678, 0
        %v3728 = vsel %vm440, %v3679, 0
        %v3731 = vsel %vm697, %v3681, 0
        %3733 = vmatpush.bf16.msra.mxu0 0
        %3734 = vmatpush.bf16.msra.mxu0 0
        %3735 = vmatpush.bf16.msra.mxu0 0
        %3736 = vmatpush.bf16.msra.mxu0 0
        %3737 = vmatpush.bf16.msra.mxu0 0
        %3738 = vmatpush.bf16.msra.mxu0 0
        %3739 = vmatpush.bf16.msra.mxu0 0
        %3740 = vmatpush.bf16.msra.mxu0 %v3731
        %3741 = vmatmul.bf16.gmra.mxu0 %v3683
        %v3742 = vpop.f32.mrf.mxu0
        %v3743 = vadd.f32 0.0, %v3742
        %v3744 = vpop.f32.mrf.mxu0
        %v3745 = vadd.f32 0.0, %v3744
        %3746 = vmatmul.bf16.gmra.mxu0 %v3686
        %v3747 = vpop.f32.mrf.mxu0
        %v3748 = vadd.f32 0.0, %v3747
        %v3749 = vpop.f32.mrf.mxu0
        %v3750 = vadd.f32 0.0, %v3749
        %3751 = vmatmul.bf16.gmra.mxu0 %v3689
        %v3752 = vpop.f32.mrf.mxu0
        %v3753 = vadd.f32 0.0, %v3752
        %v3754 = vpop.f32.mrf.mxu0
        %v3755 = vadd.f32 0.0, %v3754
        %3756 = vmatmul.bf16.gmra.mxu0 %v3692
        %v3757 = vpop.f32.mrf.mxu0
        %v3758 = vadd.f32 0.0, %v3757
        %v3759 = vpop.f32.mrf.mxu0
        %v3760 = vadd.f32 0.0, %v3759
        %3761 = vmatmul.bf16.gmra.mxu0 %v3695
        %v3762 = vpop.f32.mrf.mxu0
        %v3763 = vadd.f32 0.0, %v3762
        %v3764 = vpop.f32.mrf.mxu0
        %v3765 = vadd.f32 0.0, %v3764
        %3766 = vmatmul.bf16.gmra.mxu0 %v3698
        %v3767 = vpop.f32.mrf.mxu0
        %v3768 = vadd.f32 0.0, %v3767
        %v3769 = vpop.f32.mrf.mxu0
        %v3770 = vadd.f32 0.0, %v3769
        %3771 = vmatmul.bf16.gmra.mxu0 %v3701
        %v3772 = vpop.f32.mrf.mxu0
        %v3773 = vadd.f32 0.0, %v3772
        %v3774 = vpop.f32.mrf.mxu0
        %v3775 = vadd.f32 0.0, %v3774
        %3776 = vmatmul.bf16.gmra.mxu0 %v3704
        %v3777 = vpop.f32.mrf.mxu0
        %v3778 = vadd.f32 0.0, %v3777
        %v3779 = vpop.f32.mrf.mxu0
        %v3780 = vadd.f32 0.0, %v3779
        %3781 = vmatmul.bf16.gmra.mxu0 %v3707
        %v3782 = vpop.f32.mrf.mxu0
        %v3783 = vadd.f32 0.0, %v3782
        %v3784 = vpop.f32.mrf.mxu0
        %v3785 = vadd.f32 0.0, %v3784
        %3786 = vmatmul.bf16.gmra.mxu0 %v3710
        %v3787 = vpop.f32.mrf.mxu0
        %v3788 = vadd.f32 0.0, %v3787
        %v3789 = vpop.f32.mrf.mxu0
        %v3790 = vadd.f32 0.0, %v3789
        %3791 = vmatmul.bf16.gmra.mxu0 %v3713
        %v3792 = vpop.f32.mrf.mxu0
        %v3793 = vadd.f32 0.0, %v3792
        %v3794 = vpop.f32.mrf.mxu0
        %v3795 = vadd.f32 0.0, %v3794
        %3796 = vmatmul.bf16.gmra.mxu0 %v3716
        %v3797 = vpop.f32.mrf.mxu0
        %v3798 = vadd.f32 0.0, %v3797
        %v3799 = vpop.f32.mrf.mxu0
        %v3800 = vadd.f32 0.0, %v3799
        %3801 = vmatmul.bf16.gmra.mxu0 %v3719
        %v3802 = vpop.f32.mrf.mxu0
        %v3803 = vadd.f32 0.0, %v3802
        %v3804 = vpop.f32.mrf.mxu0
        %v3805 = vadd.f32 0.0, %v3804
        %3806 = vmatmul.bf16.gmra.mxu0 %v3722
        %v3807 = vpop.f32.mrf.mxu0
        %v3808 = vadd.f32 0.0, %v3807
        %v3809 = vpop.f32.mrf.mxu0
        %v3810 = vadd.f32 0.0, %v3809
        %3811 = vmatmul.bf16.gmra.mxu0 %v3725
        %v3812 = vpop.f32.mrf.mxu0
        %v3813 = vadd.f32 0.0, %v3812
        %v3814 = vpop.f32.mrf.mxu0
        %v3815 = vadd.f32 0.0, %v3814
        %3816 = vmatmul.bf16.gmra.mxu0 %v3728
        %v3817 = vpop.f32.mrf.mxu0
        %v3818 = vadd.f32 0.0, %v3817
        %v3819 = vpop.f32.mrf.mxu0
        %v3820 = vadd.f32 0.0, %v3819
        %3821 = vdwg.mxu0
        %v3822 = vadd.f32 %v3600, %v3743
        %v3823 = vadd.f32 %v3601, %v3745
        %v3824 = vadd.f32 %v3602, %v3748
        %v3825 = vadd.f32 %v3603, %v3750
        %v3826 = vadd.f32 %v3604, %v3753
        %v3827 = vadd.f32 %v3605, %v3755
        %v3828 = vadd.f32 %v3606, %v3758
        %v3829 = vadd.f32 %v3607, %v3760
        %v3830 = vadd.f32 %v3608, %v3763
        %v3831 = vadd.f32 %v3609, %v3765
        %v3832 = vadd.f32 %v3610, %v3768
        %v3833 = vadd.f32 %v3611, %v3770
        %v3834 = vadd.f32 %v3612, %v3773
        %v3835 = vadd.f32 %v3613, %v3775
        %v3836 = vadd.f32 %v3614, %v3778
        %v3837 = vadd.f32 %v3615, %v3780
        %v3838 = vadd.f32 %v3616, %v3783
        %v3839 = vadd.f32 %v3617, %v3785
        %v3840 = vadd.f32 %v3618, %v3788
        %v3841 = vadd.f32 %v3619, %v3790
        %v3842 = vadd.f32 %v3620, %v3793
        %v3843 = vadd.f32 %v3621, %v3795
        %v3844 = vadd.f32 %v3622, %v3798
        %v3845 = vadd.f32 %v3623, %v3800
        %v3846 = vadd.f32 %v3624, %v3803
        %v3847 = vadd.f32 %v3625, %v3805
        %v3848 = vadd.f32 %v3626, %v3808
        %v3849 = vadd.f32 %v3627, %v3810
        %v3850 = vadd.f32 %v3628, %v3813
        %v3851 = vadd.f32 %v3629, %v3815
        %v3852 = vadd.f32 %v3630, %v3818
        %v3853 = vadd.f32 %v3631, %v3820
        %s3854 = scalar_lea.vmem [#allocation3], 48
        %v3855 = vld [vmem:[%s3854] sm:$0xff]
        %v3856 = vld [vmem:[%s3854 + $0x8] sm:$0xff]
        %v3857 = vld [vmem:[%s3854 + $0x18] sm:$0xff]
        %v3858 = vld [vmem:[%s3854 + $0x20] sm:$0xff]
        %v3859 = vld [vmem:[%s3854 + $0x30] sm:$0xff]
        %v3860 = vld [vmem:[%s3854 + $0x38] sm:$0xff]
        %v3861 = vld [vmem:[%s3854 + $0x48] sm:$0xff]
        %v3862 = vld [vmem:[%s3854 + $0x50] sm:$0xff]
        %v3863 = vld [vmem:[%s3854 + $0x60] sm:$0xff]
        %v3864 = vld [vmem:[%s3854 + $0x68] sm:$0xff]
        %v3865 = vld [vmem:[%s3854 + $0x78] sm:$0xff]
        %v3866 = vld [vmem:[%s3854 + $0x80] sm:$0xff]
        %v3867 = vld [vmem:[%s3854 + $0x90] sm:$0xff]
        %v3868 = vld [vmem:[%s3854 + $0x98] sm:$0xff]
        %v3869 = vld [vmem:[%s3854 + $0xa8] sm:$0xff]
        %v3870 = vld [vmem:[%s3854 + $0xb0] sm:$0xff]
        %v3871 = vld [vmem:[%s3854 + $0xc0] sm:$0xff]
        %v3872 = vld [vmem:[%s3854 + $0xc8] sm:$0xff]
        %v3873 = vld [vmem:[%s3854 + $0xd8] sm:$0xff]
        %v3874 = vld [vmem:[%s3854 + $0xe0] sm:$0xff]
        %v3875 = vld [vmem:[%s3854 + $0xf0] sm:$0xff]
        %v3876 = vld [vmem:[%s3854 + $0xf8] sm:$0xff]
        %v3877 = vld [vmem:[%s3854 + $0x108] sm:$0xff]
        %v3878 = vld [vmem:[%s3854 + $0x110] sm:$0xff]
        %v3879 = vld [vmem:[%s3854 + $0x120] sm:$0xff]
        %v3880 = vld [vmem:[%s3854 + $0x128] sm:$0xff]
        %v3881 = vld [vmem:[%s3854 + $0x138] sm:$0xff]
        %v3882 = vld [vmem:[%s3854 + $0x140] sm:$0xff]
        %v3883 = vld [vmem:[%s3854 + $0x150] sm:$0xff]
        %v3884 = vld [vmem:[%s3854 + $0x158] sm:$0xff]
        %v3885 = vld [vmem:[%s3854 + $0x168] sm:$0xff]
        %v3886 = vld [vmem:[%s3854 + $0x170] sm:$0xff]
        %v3887 = vpack.c.bf16 %v3856, %v3855
        %v3888 = vpack.c.bf16 %v3858, %v3857
        %v3889 = vpack.c.bf16 %v3860, %v3859
        %v3890 = vpack.c.bf16 %v3862, %v3861
        %v3891 = vpack.c.bf16 %v3864, %v3863
        %v3892 = vpack.c.bf16 %v3866, %v3865
        %v3893 = vpack.c.bf16 %v3868, %v3867
        %v3894 = vpack.c.bf16 %v3870, %v3869
        %v3895 = vpack.c.bf16 %v3872, %v3871
        %v3896 = vpack.c.bf16 %v3874, %v3873
        %v3897 = vpack.c.bf16 %v3876, %v3875
        %v3898 = vpack.c.bf16 %v3878, %v3877
        %v3899 = vpack.c.bf16 %v3880, %v3879
        %v3900 = vpack.c.bf16 %v3882, %v3881
        %v3901 = vpack.c.bf16 %v3884, %v3883
        %v3902 = vpack.c.bf16 %v3886, %v3885
        %s3903 = scalar_lea.vmem %s3, 12
        %v3904 = vld [vmem:[%s3903] sm:$0x3]
        %v3906 = vsel %vm440, %v3887, 0
        %v3909 = vsel %vm440, %v3888, 0
        %v3912 = vsel %vm440, %v3889, 0
        %v3915 = vsel %vm440, %v3890, 0
        %v3918 = vsel %vm440, %v3891, 0
        %v3921 = vsel %vm440, %v3892, 0
        %v3924 = vsel %vm440, %v3893, 0
        %v3927 = vsel %vm440, %v3894, 0
        %v3930 = vsel %vm440, %v3895, 0
        %v3933 = vsel %vm440, %v3896, 0
        %v3936 = vsel %vm440, %v3897, 0
        %v3939 = vsel %vm440, %v3898, 0
        %v3942 = vsel %vm440, %v3899, 0
        %v3945 = vsel %vm440, %v3900, 0
        %v3948 = vsel %vm440, %v3901, 0
        %v3951 = vsel %vm440, %v3902, 0
        %v3954 = vsel %vm697, %v3904, 0
        %3956 = vmatpush.bf16.msra.mxu0 0
        %3957 = vmatpush.bf16.msra.mxu0 0
        %3958 = vmatpush.bf16.msra.mxu0 0
        %3959 = vmatpush.bf16.msra.mxu0 0
        %3960 = vmatpush.bf16.msra.mxu0 0
        %3961 = vmatpush.bf16.msra.mxu0 0
        %3962 = vmatpush.bf16.msra.mxu0 0
        %3963 = vmatpush.bf16.msra.mxu0 %v3954
        %3964 = vmatmul.bf16.gmra.mxu0 %v3906
        %v3965 = vpop.f32.mrf.mxu0
        %v3966 = vadd.f32 0.0, %v3965
        %v3967 = vpop.f32.mrf.mxu0
        %v3968 = vadd.f32 0.0, %v3967
        %3969 = vmatmul.bf16.gmra.mxu0 %v3909
        %v3970 = vpop.f32.mrf.mxu0
        %v3971 = vadd.f32 0.0, %v3970
        %v3972 = vpop.f32.mrf.mxu0
        %v3973 = vadd.f32 0.0, %v3972
        %3974 = vmatmul.bf16.gmra.mxu0 %v3912
        %v3975 = vpop.f32.mrf.mxu0
        %v3976 = vadd.f32 0.0, %v3975
        %v3977 = vpop.f32.mrf.mxu0
        %v3978 = vadd.f32 0.0, %v3977
        %3979 = vmatmul.bf16.gmra.mxu0 %v3915
        %v3980 = vpop.f32.mrf.mxu0
        %v3981 = vadd.f32 0.0, %v3980
        %v3982 = vpop.f32.mrf.mxu0
        %v3983 = vadd.f32 0.0, %v3982
        %3984 = vmatmul.bf16.gmra.mxu0 %v3918
        %v3985 = vpop.f32.mrf.mxu0
        %v3986 = vadd.f32 0.0, %v3985
        %v3987 = vpop.f32.mrf.mxu0
        %v3988 = vadd.f32 0.0, %v3987
        %3989 = vmatmul.bf16.gmra.mxu0 %v3921
        %v3990 = vpop.f32.mrf.mxu0
        %v3991 = vadd.f32 0.0, %v3990
        %v3992 = vpop.f32.mrf.mxu0
        %v3993 = vadd.f32 0.0, %v3992
        %3994 = vmatmul.bf16.gmra.mxu0 %v3924
        %v3995 = vpop.f32.mrf.mxu0
        %v3996 = vadd.f32 0.0, %v3995
        %v3997 = vpop.f32.mrf.mxu0
        %v3998 = vadd.f32 0.0, %v3997
        %3999 = vmatmul.bf16.gmra.mxu0 %v3927
        %v4000 = vpop.f32.mrf.mxu0
        %v4001 = vadd.f32 0.0, %v4000
        %v4002 = vpop.f32.mrf.mxu0
        %v4003 = vadd.f32 0.0, %v4002
        %4004 = vmatmul.bf16.gmra.mxu0 %v3930
        %v4005 = vpop.f32.mrf.mxu0
        %v4006 = vadd.f32 0.0, %v4005
        %v4007 = vpop.f32.mrf.mxu0
        %v4008 = vadd.f32 0.0, %v4007
        %4009 = vmatmul.bf16.gmra.mxu0 %v3933
        %v4010 = vpop.f32.mrf.mxu0
        %v4011 = vadd.f32 0.0, %v4010
        %v4012 = vpop.f32.mrf.mxu0
        %v4013 = vadd.f32 0.0, %v4012
        %4014 = vmatmul.bf16.gmra.mxu0 %v3936
        %v4015 = vpop.f32.mrf.mxu0
        %v4016 = vadd.f32 0.0, %v4015
        %v4017 = vpop.f32.mrf.mxu0
        %v4018 = vadd.f32 0.0, %v4017
        %4019 = vmatmul.bf16.gmra.mxu0 %v3939
        %v4020 = vpop.f32.mrf.mxu0
        %v4021 = vadd.f32 0.0, %v4020
        %v4022 = vpop.f32.mrf.mxu0
        %v4023 = vadd.f32 0.0, %v4022
        %4024 = vmatmul.bf16.gmra.mxu0 %v3942
        %v4025 = vpop.f32.mrf.mxu0
        %v4026 = vadd.f32 0.0, %v4025
        %v4027 = vpop.f32.mrf.mxu0
        %v4028 = vadd.f32 0.0, %v4027
        %4029 = vmatmul.bf16.gmra.mxu0 %v3945
        %v4030 = vpop.f32.mrf.mxu0
        %v4031 = vadd.f32 0.0, %v4030
        %v4032 = vpop.f32.mrf.mxu0
        %v4033 = vadd.f32 0.0, %v4032
        %4034 = vmatmul.bf16.gmra.mxu0 %v3948
        %v4035 = vpop.f32.mrf.mxu0
        %v4036 = vadd.f32 0.0, %v4035
        %v4037 = vpop.f32.mrf.mxu0
        %v4038 = vadd.f32 0.0, %v4037
        %4039 = vmatmul.bf16.gmra.mxu0 %v3951
        %v4040 = vpop.f32.mrf.mxu0
        %v4041 = vadd.f32 0.0, %v4040
        %v4042 = vpop.f32.mrf.mxu0
        %v4043 = vadd.f32 0.0, %v4042
        %4044 = vdwg.mxu0
        %v4045 = vadd.f32 %v3822, %v3966
        %v4046 = vadd.f32 %v3823, %v3968
        %v4047 = vadd.f32 %v3824, %v3971
        %v4048 = vadd.f32 %v3825, %v3973
        %v4049 = vadd.f32 %v3826, %v3976
        %v4050 = vadd.f32 %v3827, %v3978
        %v4051 = vadd.f32 %v3828, %v3981
        %v4052 = vadd.f32 %v3829, %v3983
        %v4053 = vadd.f32 %v3830, %v3986
        %v4054 = vadd.f32 %v3831, %v3988
        %v4055 = vadd.f32 %v3832, %v3991
        %v4056 = vadd.f32 %v3833, %v3993
        %v4057 = vadd.f32 %v3834, %v3996
        %v4058 = vadd.f32 %v3835, %v3998
        %v4059 = vadd.f32 %v3836, %v4001
        %v4060 = vadd.f32 %v3837, %v4003
        %v4061 = vadd.f32 %v3838, %v4006
        %v4062 = vadd.f32 %v3839, %v4008
        %v4063 = vadd.f32 %v3840, %v4011
        %v4064 = vadd.f32 %v3841, %v4013
        %v4065 = vadd.f32 %v3842, %v4016
        %v4066 = vadd.f32 %v3843, %v4018
        %v4067 = vadd.f32 %v3844, %v4021
        %v4068 = vadd.f32 %v3845, %v4023
        %v4069 = vadd.f32 %v3846, %v4026
        %v4070 = vadd.f32 %v3847, %v4028
        %v4071 = vadd.f32 %v3848, %v4031
        %v4072 = vadd.f32 %v3849, %v4033
        %v4073 = vadd.f32 %v3850, %v4036
        %v4074 = vadd.f32 %v3851, %v4038
        %v4075 = vadd.f32 %v3852, %v4041
        %v4076 = vadd.f32 %v3853, %v4043
        %v4077 = vld [vmem:[%s3854 + $0x1] sm:$0xff]
        %v4078 = vld [vmem:[%s3854 + $0x9] sm:$0xff]
        %v4079 = vld [vmem:[%s3854 + $0x19] sm:$0xff]
        %v4080 = vld [vmem:[%s3854 + $0x21] sm:$0xff]
        %v4081 = vld [vmem:[%s3854 + $0x31] sm:$0xff]
        %v4082 = vld [vmem:[%s3854 + $0x39] sm:$0xff]
        %v4083 = vld [vmem:[%s3854 + $0x49] sm:$0xff]
        %v4084 = vld [vmem:[%s3854 + $0x51] sm:$0xff]
        %v4085 = vld [vmem:[%s3854 + $0x61] sm:$0xff]
        %v4086 = vld [vmem:[%s3854 + $0x69] sm:$0xff]
        %v4087 = vld [vmem:[%s3854 + $0x79] sm:$0xff]
        %v4088 = vld [vmem:[%s3854 + $0x81] sm:$0xff]
        %v4089 = vld [vmem:[%s3854 + $0x91] sm:$0xff]
        %v4090 = vld [vmem:[%s3854 + $0x99] sm:$0xff]
        %v4091 = vld [vmem:[%s3854 + $0xa9] sm:$0xff]
        %v4092 = vld [vmem:[%s3854 + $0xb1] sm:$0xff]
        %v4093 = vld [vmem:[%s3854 + $0xc1] sm:$0xff]
        %v4094 = vld [vmem:[%s3854 + $0xc9] sm:$0xff]
        %v4095 = vld [vmem:[%s3854 + $0xd9] sm:$0xff]
        %v4096 = vld [vmem:[%s3854 + $0xe1] sm:$0xff]
        %v4097 = vld [vmem:[%s3854 + $0xf1] sm:$0xff]
        %v4098 = vld [vmem:[%s3854 + $0xf9] sm:$0xff]
        %v4099 = vld [vmem:[%s3854 + $0x109] sm:$0xff]
        %v4100 = vld [vmem:[%s3854 + $0x111] sm:$0xff]
        %v4101 = vld [vmem:[%s3854 + $0x121] sm:$0xff]
        %v4102 = vld [vmem:[%s3854 + $0x129] sm:$0xff]
        %v4103 = vld [vmem:[%s3854 + $0x139] sm:$0xff]
        %v4104 = vld [vmem:[%s3854 + $0x141] sm:$0xff]
        %v4105 = vld [vmem:[%s3854 + $0x151] sm:$0xff]
        %v4106 = vld [vmem:[%s3854 + $0x159] sm:$0xff]
        %v4107 = vld [vmem:[%s3854 + $0x169] sm:$0xff]
        %v4108 = vld [vmem:[%s3854 + $0x171] sm:$0xff]
        %v4109 = vpack.c.bf16 %v4078, %v4077
        %v4110 = vpack.c.bf16 %v4080, %v4079
        %v4111 = vpack.c.bf16 %v4082, %v4081
        %v4112 = vpack.c.bf16 %v4084, %v4083
        %v4113 = vpack.c.bf16 %v4086, %v4085
        %v4114 = vpack.c.bf16 %v4088, %v4087
        %v4115 = vpack.c.bf16 %v4090, %v4089
        %v4116 = vpack.c.bf16 %v4092, %v4091
        %v4117 = vpack.c.bf16 %v4094, %v4093
        %v4118 = vpack.c.bf16 %v4096, %v4095
        %v4119 = vpack.c.bf16 %v4098, %v4097
        %v4120 = vpack.c.bf16 %v4100, %v4099
        %v4121 = vpack.c.bf16 %v4102, %v4101
        %v4122 = vpack.c.bf16 %v4104, %v4103
        %v4123 = vpack.c.bf16 %v4106, %v4105
        %v4124 = vpack.c.bf16 %v4108, %v4107
        %s4125 = scalar_lea.vmem %s3, 14
        %v4126 = vld [vmem:[%s4125] sm:$0x3]
        %v4128 = vsel %vm440, %v4109, 0
        %v4131 = vsel %vm440, %v4110, 0
        %v4134 = vsel %vm440, %v4111, 0
        %v4137 = vsel %vm440, %v4112, 0
        %v4140 = vsel %vm440, %v4113, 0
        %v4143 = vsel %vm440, %v4114, 0
        %v4146 = vsel %vm440, %v4115, 0
        %v4149 = vsel %vm440, %v4116, 0
        %v4152 = vsel %vm440, %v4117, 0
        %v4155 = vsel %vm440, %v4118, 0
        %v4158 = vsel %vm440, %v4119, 0
        %v4161 = vsel %vm440, %v4120, 0
        %v4164 = vsel %vm440, %v4121, 0
        %v4167 = vsel %vm440, %v4122, 0
        %v4170 = vsel %vm440, %v4123, 0
        %v4173 = vsel %vm440, %v4124, 0
        %v4176 = vsel %vm697, %v4126, 0
        %4178 = vmatpush.bf16.msra.mxu0 0
        %4179 = vmatpush.bf16.msra.mxu0 0
        %4180 = vmatpush.bf16.msra.mxu0 0
        %4181 = vmatpush.bf16.msra.mxu0 0
        %4182 = vmatpush.bf16.msra.mxu0 0
        %4183 = vmatpush.bf16.msra.mxu0 0
        %4184 = vmatpush.bf16.msra.mxu0 0
        %4185 = vmatpush.bf16.msra.mxu0 %v4176
        %4186 = vmatmul.bf16.gmra.mxu0 %v4128
        %v4187 = vpop.f32.mrf.mxu0
        %v4188 = vadd.f32 0.0, %v4187
        %v4189 = vpop.f32.mrf.mxu0
        %v4190 = vadd.f32 0.0, %v4189
        %4191 = vmatmul.bf16.gmra.mxu0 %v4131
        %v4192 = vpop.f32.mrf.mxu0
        %v4193 = vadd.f32 0.0, %v4192
        %v4194 = vpop.f32.mrf.mxu0
        %v4195 = vadd.f32 0.0, %v4194
        %4196 = vmatmul.bf16.gmra.mxu0 %v4134
        %v4197 = vpop.f32.mrf.mxu0
        %v4198 = vadd.f32 0.0, %v4197
        %v4199 = vpop.f32.mrf.mxu0
        %v4200 = vadd.f32 0.0, %v4199
        %4201 = vmatmul.bf16.gmra.mxu0 %v4137
        %v4202 = vpop.f32.mrf.mxu0
        %v4203 = vadd.f32 0.0, %v4202
        %v4204 = vpop.f32.mrf.mxu0
        %v4205 = vadd.f32 0.0, %v4204
        %4206 = vmatmul.bf16.gmra.mxu0 %v4140
        %v4207 = vpop.f32.mrf.mxu0
        %v4208 = vadd.f32 0.0, %v4207
        %v4209 = vpop.f32.mrf.mxu0
        %v4210 = vadd.f32 0.0, %v4209
        %4211 = vmatmul.bf16.gmra.mxu0 %v4143
        %v4212 = vpop.f32.mrf.mxu0
        %v4213 = vadd.f32 0.0, %v4212
        %v4214 = vpop.f32.mrf.mxu0
        %v4215 = vadd.f32 0.0, %v4214
        %4216 = vmatmul.bf16.gmra.mxu0 %v4146
        %v4217 = vpop.f32.mrf.mxu0
        %v4218 = vadd.f32 0.0, %v4217
        %v4219 = vpop.f32.mrf.mxu0
        %v4220 = vadd.f32 0.0, %v4219
        %4221 = vmatmul.bf16.gmra.mxu0 %v4149
        %v4222 = vpop.f32.mrf.mxu0
        %v4223 = vadd.f32 0.0, %v4222
        %v4224 = vpop.f32.mrf.mxu0
        %v4225 = vadd.f32 0.0, %v4224
        %4226 = vmatmul.bf16.gmra.mxu0 %v4152
        %v4227 = vpop.f32.mrf.mxu0
        %v4228 = vadd.f32 0.0, %v4227
        %v4229 = vpop.f32.mrf.mxu0
        %v4230 = vadd.f32 0.0, %v4229
        %4231 = vmatmul.bf16.gmra.mxu0 %v4155
        %v4232 = vpop.f32.mrf.mxu0
        %v4233 = vadd.f32 0.0, %v4232
        %v4234 = vpop.f32.mrf.mxu0
        %v4235 = vadd.f32 0.0, %v4234
        %4236 = vmatmul.bf16.gmra.mxu0 %v4158
        %v4237 = vpop.f32.mrf.mxu0
        %v4238 = vadd.f32 0.0, %v4237
        %v4239 = vpop.f32.mrf.mxu0
        %v4240 = vadd.f32 0.0, %v4239
        %4241 = vmatmul.bf16.gmra.mxu0 %v4161
        %v4242 = vpop.f32.mrf.mxu0
        %v4243 = vadd.f32 0.0, %v4242
        %v4244 = vpop.f32.mrf.mxu0
        %v4245 = vadd.f32 0.0, %v4244
        %4246 = vmatmul.bf16.gmra.mxu0 %v4164
        %v4247 = vpop.f32.mrf.mxu0
        %v4248 = vadd.f32 0.0, %v4247
        %v4249 = vpop.f32.mrf.mxu0
        %v4250 = vadd.f32 0.0, %v4249
        %4251 = vmatmul.bf16.gmra.mxu0 %v4167
        %v4252 = vpop.f32.mrf.mxu0
        %v4253 = vadd.f32 0.0, %v4252
        %v4254 = vpop.f32.mrf.mxu0
        %v4255 = vadd.f32 0.0, %v4254
        %4256 = vmatmul.bf16.gmra.mxu0 %v4170
        %v4257 = vpop.f32.mrf.mxu0
        %v4258 = vadd.f32 0.0, %v4257
        %v4259 = vpop.f32.mrf.mxu0
        %v4260 = vadd.f32 0.0, %v4259
        %4261 = vmatmul.bf16.gmra.mxu0 %v4173
        %v4262 = vpop.f32.mrf.mxu0
        %v4263 = vadd.f32 0.0, %v4262
        %v4264 = vpop.f32.mrf.mxu0
        %v4265 = vadd.f32 0.0, %v4264
        %4266 = vdwg.mxu0
        %v4267 = vadd.f32 %v4045, %v4188
        %v4268 = vadd.f32 %v4046, %v4190
        %v4269 = vadd.f32 %v4047, %v4193
        %v4270 = vadd.f32 %v4048, %v4195
        %v4271 = vadd.f32 %v4049, %v4198
        %v4272 = vadd.f32 %v4050, %v4200
        %v4273 = vadd.f32 %v4051, %v4203
        %v4274 = vadd.f32 %v4052, %v4205
        %v4275 = vadd.f32 %v4053, %v4208
        %v4276 = vadd.f32 %v4054, %v4210
        %v4277 = vadd.f32 %v4055, %v4213
        %v4278 = vadd.f32 %v4056, %v4215
        %v4279 = vadd.f32 %v4057, %v4218
        %v4280 = vadd.f32 %v4058, %v4220
        %v4281 = vadd.f32 %v4059, %v4223
        %v4282 = vadd.f32 %v4060, %v4225
        %v4283 = vadd.f32 %v4061, %v4228
        %v4284 = vadd.f32 %v4062, %v4230
        %v4285 = vadd.f32 %v4063, %v4233
        %v4286 = vadd.f32 %v4064, %v4235
        %v4287 = vadd.f32 %v4065, %v4238
        %v4288 = vadd.f32 %v4066, %v4240
        %v4289 = vadd.f32 %v4067, %v4243
        %v4290 = vadd.f32 %v4068, %v4245
        %v4291 = vadd.f32 %v4069, %v4248
        %v4292 = vadd.f32 %v4070, %v4250
        %v4293 = vadd.f32 %v4071, %v4253
        %v4294 = vadd.f32 %v4072, %v4255
        %v4295 = vadd.f32 %v4073, %v4258
        %v4296 = vadd.f32 %v4074, %v4260
        %v4297 = vadd.f32 %v4075, %v4263
        %v4298 = vadd.f32 %v4076, %v4265
        %v4299 = vld [vmem:[%s3854 + $0x2] sm:$0xff]
        %v4300 = vld [vmem:[%s3854 + $0xa] sm:$0xff]
        %v4301 = vld [vmem:[%s3854 + $0x1a] sm:$0xff]
        %v4302 = vld [vmem:[%s3854 + $0x22] sm:$0xff]
        %v4303 = vld [vmem:[%s3854 + $0x32] sm:$0xff]
        %v4304 = vld [vmem:[%s3854 + $0x3a] sm:$0xff]
        %v4305 = vld [vmem:[%s3854 + $0x4a] sm:$0xff]
        %v4306 = vld [vmem:[%s3854 + $0x52] sm:$0xff]
        %v4307 = vld [vmem:[%s3854 + $0x62] sm:$0xff]
        %v4308 = vld [vmem:[%s3854 + $0x6a] sm:$0xff]
        %v4309 = vld [vmem:[%s3854 + $0x7a] sm:$0xff]
        %v4310 = vld [vmem:[%s3854 + $0x82] sm:$0xff]
        %v4311 = vld [vmem:[%s3854 + $0x92] sm:$0xff]
        %v4312 = vld [vmem:[%s3854 + $0x9a] sm:$0xff]
        %v4313 = vld [vmem:[%s3854 + $0xaa] sm:$0xff]
        %v4314 = vld [vmem:[%s3854 + $0xb2] sm:$0xff]
        %v4315 = vld [vmem:[%s3854 + $0xc2] sm:$0xff]
        %v4316 = vld [vmem:[%s3854 + $0xca] sm:$0xff]
        %v4317 = vld [vmem:[%s3854 + $0xda] sm:$0xff]
        %v4318 = vld [vmem:[%s3854 + $0xe2] sm:$0xff]
        %v4319 = vld [vmem:[%s3854 + $0xf2] sm:$0xff]
        %v4320 = vld [vmem:[%s3854 + $0xfa] sm:$0xff]
        %v4321 = vld [vmem:[%s3854 + $0x10a] sm:$0xff]
        %v4322 = vld [vmem:[%s3854 + $0x112] sm:$0xff]
        %v4323 = vld [vmem:[%s3854 + $0x122] sm:$0xff]
        %v4324 = vld [vmem:[%s3854 + $0x12a] sm:$0xff]
        %v4325 = vld [vmem:[%s3854 + $0x13a] sm:$0xff]
        %v4326 = vld [vmem:[%s3854 + $0x142] sm:$0xff]
        %v4327 = vld [vmem:[%s3854 + $0x152] sm:$0xff]
        %v4328 = vld [vmem:[%s3854 + $0x15a] sm:$0xff]
        %v4329 = vld [vmem:[%s3854 + $0x16a] sm:$0xff]
        %v4330 = vld [vmem:[%s3854 + $0x172] sm:$0xff]
        %v4331 = vpack.c.bf16 %v4300, %v4299
        %v4332 = vpack.c.bf16 %v4302, %v4301
        %v4333 = vpack.c.bf16 %v4304, %v4303
        %v4334 = vpack.c.bf16 %v4306, %v4305
        %v4335 = vpack.c.bf16 %v4308, %v4307
        %v4336 = vpack.c.bf16 %v4310, %v4309
        %v4337 = vpack.c.bf16 %v4312, %v4311
        %v4338 = vpack.c.bf16 %v4314, %v4313
        %v4339 = vpack.c.bf16 %v4316, %v4315
        %v4340 = vpack.c.bf16 %v4318, %v4317
        %v4341 = vpack.c.bf16 %v4320, %v4319
        %v4342 = vpack.c.bf16 %v4322, %v4321
        %v4343 = vpack.c.bf16 %v4324, %v4323
        %v4344 = vpack.c.bf16 %v4326, %v4325
        %v4345 = vpack.c.bf16 %v4328, %v4327
        %v4346 = vpack.c.bf16 %v4330, %v4329
        %s4347 = scalar_lea.vmem %s3, 16
        %v4348 = vld [vmem:[%s4347] sm:$0x3]
        %v4350 = vsel %vm440, %v4331, 0
        %v4353 = vsel %vm440, %v4332, 0
        %v4356 = vsel %vm440, %v4333, 0
        %v4359 = vsel %vm440, %v4334, 0
        %v4362 = vsel %vm440, %v4335, 0
        %v4365 = vsel %vm440, %v4336, 0
        %v4368 = vsel %vm440, %v4337, 0
        %v4371 = vsel %vm440, %v4338, 0
        %v4374 = vsel %vm440, %v4339, 0
        %v4377 = vsel %vm440, %v4340, 0
        %v4380 = vsel %vm440, %v4341, 0
        %v4383 = vsel %vm440, %v4342, 0
        %v4386 = vsel %vm440, %v4343, 0
        %v4389 = vsel %vm440, %v4344, 0
        %v4392 = vsel %vm440, %v4345, 0
        %v4395 = vsel %vm440, %v4346, 0
        %v4398 = vsel %vm697, %v4348, 0
        %4400 = vmatpush.bf16.msra.mxu0 0
        %4401 = vmatpush.bf16.msra.mxu0 0
        %4402 = vmatpush.bf16.msra.mxu0 0
        %4403 = vmatpush.bf16.msra.mxu0 0
        %4404 = vmatpush.bf16.msra.mxu0 0
        %4405 = vmatpush.bf16.msra.mxu0 0
        %4406 = vmatpush.bf16.msra.mxu0 0
        %4407 = vmatpush.bf16.msra.mxu0 %v4398
        %4408 = vmatmul.bf16.gmra.mxu0 %v4350
        %v4409 = vpop.f32.mrf.mxu0
        %v4410 = vadd.f32 0.0, %v4409
        %v4411 = vpop.f32.mrf.mxu0
        %v4412 = vadd.f32 0.0, %v4411
        %4413 = vmatmul.bf16.gmra.mxu0 %v4353
        %v4414 = vpop.f32.mrf.mxu0
        %v4415 = vadd.f32 0.0, %v4414
        %v4416 = vpop.f32.mrf.mxu0
        %v4417 = vadd.f32 0.0, %v4416
        %4418 = vmatmul.bf16.gmra.mxu0 %v4356
        %v4419 = vpop.f32.mrf.mxu0
        %v4420 = vadd.f32 0.0, %v4419
        %v4421 = vpop.f32.mrf.mxu0
        %v4422 = vadd.f32 0.0, %v4421
        %4423 = vmatmul.bf16.gmra.mxu0 %v4359
        %v4424 = vpop.f32.mrf.mxu0
        %v4425 = vadd.f32 0.0, %v4424
        %v4426 = vpop.f32.mrf.mxu0
        %v4427 = vadd.f32 0.0, %v4426
        %4428 = vmatmul.bf16.gmra.mxu0 %v4362
        %v4429 = vpop.f32.mrf.mxu0
        %v4430 = vadd.f32 0.0, %v4429
        %v4431 = vpop.f32.mrf.mxu0
        %v4432 = vadd.f32 0.0, %v4431
        %4433 = vmatmul.bf16.gmra.mxu0 %v4365
        %v4434 = vpop.f32.mrf.mxu0
        %v4435 = vadd.f32 0.0, %v4434
        %v4436 = vpop.f32.mrf.mxu0
        %v4437 = vadd.f32 0.0, %v4436
        %4438 = vmatmul.bf16.gmra.mxu0 %v4368
        %v4439 = vpop.f32.mrf.mxu0
        %v4440 = vadd.f32 0.0, %v4439
        %v4441 = vpop.f32.mrf.mxu0
        %v4442 = vadd.f32 0.0, %v4441
        %4443 = vmatmul.bf16.gmra.mxu0 %v4371
        %v4444 = vpop.f32.mrf.mxu0
        %v4445 = vadd.f32 0.0, %v4444
        %v4446 = vpop.f32.mrf.mxu0
        %v4447 = vadd.f32 0.0, %v4446
        %4448 = vmatmul.bf16.gmra.mxu0 %v4374
        %v4449 = vpop.f32.mrf.mxu0
        %v4450 = vadd.f32 0.0, %v4449
        %v4451 = vpop.f32.mrf.mxu0
        %v4452 = vadd.f32 0.0, %v4451
        %4453 = vmatmul.bf16.gmra.mxu0 %v4377
        %v4454 = vpop.f32.mrf.mxu0
        %v4455 = vadd.f32 0.0, %v4454
        %v4456 = vpop.f32.mrf.mxu0
        %v4457 = vadd.f32 0.0, %v4456
        %4458 = vmatmul.bf16.gmra.mxu0 %v4380
        %v4459 = vpop.f32.mrf.mxu0
        %v4460 = vadd.f32 0.0, %v4459
        %v4461 = vpop.f32.mrf.mxu0
        %v4462 = vadd.f32 0.0, %v4461
        %4463 = vmatmul.bf16.gmra.mxu0 %v4383
        %v4464 = vpop.f32.mrf.mxu0
        %v4465 = vadd.f32 0.0, %v4464
        %v4466 = vpop.f32.mrf.mxu0
        %v4467 = vadd.f32 0.0, %v4466
        %4468 = vmatmul.bf16.gmra.mxu0 %v4386
        %v4469 = vpop.f32.mrf.mxu0
        %v4470 = vadd.f32 0.0, %v4469
        %v4471 = vpop.f32.mrf.mxu0
        %v4472 = vadd.f32 0.0, %v4471
        %4473 = vmatmul.bf16.gmra.mxu0 %v4389
        %v4474 = vpop.f32.mrf.mxu0
        %v4475 = vadd.f32 0.0, %v4474
        %v4476 = vpop.f32.mrf.mxu0
        %v4477 = vadd.f32 0.0, %v4476
        %4478 = vmatmul.bf16.gmra.mxu0 %v4392
        %v4479 = vpop.f32.mrf.mxu0
        %v4480 = vadd.f32 0.0, %v4479
        %v4481 = vpop.f32.mrf.mxu0
        %v4482 = vadd.f32 0.0, %v4481
        %4483 = vmatmul.bf16.gmra.mxu0 %v4395
        %v4484 = vpop.f32.mrf.mxu0
        %v4485 = vadd.f32 0.0, %v4484
        %v4486 = vpop.f32.mrf.mxu0
        %v4487 = vadd.f32 0.0, %v4486
        %4488 = vdwg.mxu0
        %v4489 = vadd.f32 %v4267, %v4410
        %v4490 = vadd.f32 %v4268, %v4412
        %v4491 = vadd.f32 %v4269, %v4415
        %v4492 = vadd.f32 %v4270, %v4417
        %v4493 = vadd.f32 %v4271, %v4420
        %v4494 = vadd.f32 %v4272, %v4422
        %v4495 = vadd.f32 %v4273, %v4425
        %v4496 = vadd.f32 %v4274, %v4427
        %v4497 = vadd.f32 %v4275, %v4430
        %v4498 = vadd.f32 %v4276, %v4432
        %v4499 = vadd.f32 %v4277, %v4435
        %v4500 = vadd.f32 %v4278, %v4437
        %v4501 = vadd.f32 %v4279, %v4440
        %v4502 = vadd.f32 %v4280, %v4442
        %v4503 = vadd.f32 %v4281, %v4445
        %v4504 = vadd.f32 %v4282, %v4447
        %v4505 = vadd.f32 %v4283, %v4450
        %v4506 = vadd.f32 %v4284, %v4452
        %v4507 = vadd.f32 %v4285, %v4455
        %v4508 = vadd.f32 %v4286, %v4457
        %v4509 = vadd.f32 %v4287, %v4460
        %v4510 = vadd.f32 %v4288, %v4462
        %v4511 = vadd.f32 %v4289, %v4465
        %v4512 = vadd.f32 %v4290, %v4467
        %v4513 = vadd.f32 %v4291, %v4470
        %v4514 = vadd.f32 %v4292, %v4472
        %v4515 = vadd.f32 %v4293, %v4475
        %v4516 = vadd.f32 %v4294, %v4477
        %v4517 = vadd.f32 %v4295, %v4480
        %v4518 = vadd.f32 %v4296, %v4482
        %v4519 = vadd.f32 %v4297, %v4485
        %v4520 = vadd.f32 %v4298, %v4487
        %v4521 = vld [vmem:[%s4] sm:$0x1]
        %v4523 = vperm.slane %v4521, 0
        %v4525 = vadd.f32 %v4489, %v4523
        %v4526 = vadd.f32 %v4490, %v4523
        %v4527 = vadd.f32 %v4491, %v4523
        %v4528 = vadd.f32 %v4492, %v4523
        %v4529 = vadd.f32 %v4493, %v4523
        %v4530 = vadd.f32 %v4494, %v4523
        %v4531 = vadd.f32 %v4495, %v4523
        %v4532 = vadd.f32 %v4496, %v4523
        %v4533 = vadd.f32 %v4497, %v4523
        %v4534 = vadd.f32 %v4498, %v4523
        %v4535 = vadd.f32 %v4499, %v4523
        %v4536 = vadd.f32 %v4500, %v4523
        %v4537 = vadd.f32 %v4501, %v4523
        %v4538 = vadd.f32 %v4502, %v4523
        %v4539 = vadd.f32 %v4503, %v4523
        %v4540 = vadd.f32 %v4504, %v4523
        %v4541 = vadd.f32 %v4505, %v4523
        %v4542 = vadd.f32 %v4506, %v4523
        %v4543 = vadd.f32 %v4507, %v4523
        %v4544 = vadd.f32 %v4508, %v4523
        %v4545 = vadd.f32 %v4509, %v4523
        %v4546 = vadd.f32 %v4510, %v4523
        %v4547 = vadd.f32 %v4511, %v4523
        %v4548 = vadd.f32 %v4512, %v4523
        %v4549 = vadd.f32 %v4513, %v4523
        %v4550 = vadd.f32 %v4514, %v4523
        %v4551 = vadd.f32 %v4515, %v4523
        %v4552 = vadd.f32 %v4516, %v4523
        %v4553 = vadd.f32 %v4517, %v4523
        %v4554 = vadd.f32 %v4518, %v4523
        %v4555 = vadd.f32 %v4519, %v4523
        %v4556 = vadd.f32 %v4520, %v4523
        %vm4605 = vcmask 1046528
        %v4606 = vrot.slane %v335, 1
        %v4607 = vrot.slane %v336, 1
        %v4608 = vsel %vm4605, %v4606, %v4607
        %v4609 = vrot.slane %v337, 1
        %v4610 = vsel %vm4605, %v4607, %v4609
        %v4611 = vrot.slane %v338, 1
        %v4612 = vrot.slane %v339, 1
        %v4613 = vsel %vm4605, %v4611, %v4612
        %v4614 = vrot.slane %v340, 1
        %v4615 = vsel %vm4605, %v4612, %v4614
        %v4616 = vrot.slane %v341, 1
        %v4617 = vrot.slane %v342, 1
        %v4618 = vsel %vm4605, %v4616, %v4617
        %v4619 = vrot.slane %v343, 1
        %v4620 = vsel %vm4605, %v4617, %v4619
        %v4621 = vrot.slane %v344, 1
        %v4622 = vrot.slane %v345, 1
        %v4623 = vsel %vm4605, %v4621, %v4622
        %v4624 = vrot.slane %v346, 1
        %v4625 = vsel %vm4605, %v4622, %v4624
        %v4626 = vrot.slane %v347, 1
        %v4627 = vrot.slane %v348, 1
        %v4628 = vsel %vm4605, %v4626, %v4627
        %v4629 = vrot.slane %v349, 1
        %v4630 = vsel %vm4605, %v4627, %v4629
        %v4631 = vrot.slane %v350, 1
        %v4632 = vrot.slane %v351, 1
        %v4633 = vsel %vm4605, %v4631, %v4632
        %v4634 = vrot.slane %v352, 1
        %v4635 = vsel %vm4605, %v4632, %v4634
        %v4636 = vrot.slane %v353, 1
        %v4637 = vrot.slane %v354, 1
        %v4638 = vsel %vm4605, %v4636, %v4637
        %v4639 = vrot.slane %v355, 1
        %v4640 = vsel %vm4605, %v4637, %v4639
        %v4641 = vrot.slane %v356, 1
        %v4642 = vrot.slane %v357, 1
        %v4643 = vsel %vm4605, %v4641, %v4642
        %v4644 = vrot.slane %v358, 1
        %v4645 = vsel %vm4605, %v4642, %v4644
        %v4646 = vrot.slane %v359, 1
        %v4647 = vrot.slane %v360, 1
        %v4648 = vsel %vm4605, %v4646, %v4647
        %v4649 = vrot.slane %v361, 1
        %v4650 = vsel %vm4605, %v4647, %v4649
        %v4651 = vrot.slane %v362, 1
        %v4652 = vrot.slane %v363, 1
        %v4653 = vsel %vm4605, %v4651, %v4652
        %v4654 = vrot.slane %v364, 1
        %v4655 = vsel %vm4605, %v4652, %v4654
        %v4656 = vrot.slane %v365, 1
        %v4657 = vrot.slane %v366, 1
        %v4658 = vsel %vm4605, %v4656, %v4657
        %v4659 = vrot.slane %v367, 1
        %v4660 = vsel %vm4605, %v4657, %v4659
        %v4661 = vrot.slane %v368, 1
        %v4662 = vrot.slane %v369, 1
        %v4663 = vsel %vm4605, %v4661, %v4662
        %v4664 = vrot.slane %v370, 1
        %v4665 = vsel %vm4605, %v4662, %v4664
        %v4666 = vrot.slane %v371, 1
        %v4667 = vrot.slane %v372, 1
        %v4668 = vsel %vm4605, %v4666, %v4667
        %v4669 = vrot.slane %v373, 1
        %v4670 = vsel %vm4605, %v4667, %v4669
        %v4671 = vrot.slane %v374, 1
        %v4672 = vrot.slane %v375, 1
        %v4673 = vsel %vm4605, %v4671, %v4672
        %v4674 = vrot.slane %v376, 1
        %v4675 = vsel %vm4605, %v4672, %v4674
        %v4676 = vrot.slane %v377, 1
        %v4677 = vrot.slane %v378, 1
        %v4678 = vsel %vm4605, %v4676, %v4677
        %v4679 = vrot.slane %v379, 1
        %v4680 = vsel %vm4605, %v4677, %v4679
        %v4681 = vrot.slane %v380, 1
        %v4682 = vrot.slane %v381, 1
        %v4683 = vsel %vm4605, %v4681, %v4682
        %v4684 = vrot.slane %v382, 1
        %v4685 = vsel %vm4605, %v4682, %v4684
        %v4718 = vpack.c.bf16 %v4610, %v4608
        %v4719 = vpack.c.bf16 %v4615, %v4613
        %v4720 = vpack.c.bf16 %v4620, %v4618
        %v4721 = vpack.c.bf16 %v4625, %v4623
        %v4722 = vpack.c.bf16 %v4630, %v4628
        %v4723 = vpack.c.bf16 %v4635, %v4633
        %v4724 = vpack.c.bf16 %v4640, %v4638
        %v4725 = vpack.c.bf16 %v4645, %v4643
        %v4726 = vpack.c.bf16 %v4650, %v4648
        %v4727 = vpack.c.bf16 %v4655, %v4653
        %v4728 = vpack.c.bf16 %v4660, %v4658
        %v4729 = vpack.c.bf16 %v4665, %v4663
        %v4730 = vpack.c.bf16 %v4670, %v4668
        %v4731 = vpack.c.bf16 %v4675, %v4673
        %v4732 = vpack.c.bf16 %v4680, %v4678
        %v4733 = vpack.c.bf16 %v4685, %v4683
        %v4734 = vld [vmem:[%s5] sm:$0x3]
        %v4735 = vld [vmem:[%s6] sm:$0x1]
        %v4737 = vperm.slane %v4735, 0
        %v4740 = vsel %vm440, %v4718, 0
        %v4743 = vsel %vm440, %v4719, 0
        %v4746 = vsel %vm440, %v4720, 0
        %v4749 = vsel %vm440, %v4721, 0
        %v4752 = vsel %vm440, %v4722, 0
        %v4755 = vsel %vm440, %v4723, 0
        %v4758 = vsel %vm440, %v4724, 0
        %v4761 = vsel %vm440, %v4725, 0
        %v4764 = vsel %vm440, %v4726, 0
        %v4767 = vsel %vm440, %v4727, 0
        %v4770 = vsel %vm440, %v4728, 0
        %v4773 = vsel %vm440, %v4729, 0
        %v4776 = vsel %vm440, %v4730, 0
        %v4779 = vsel %vm440, %v4731, 0
        %v4782 = vsel %vm440, %v4732, 0
        %v4785 = vsel %vm440, %v4733, 0
        %v4788 = vsel %vm697, %v4734, 0
        %4790 = vmatpush.bf16.msra.mxu0 0
        %4791 = vmatpush.bf16.msra.mxu0 0
        %4792 = vmatpush.bf16.msra.mxu0 0
        %4793 = vmatpush.bf16.msra.mxu0 0
        %4794 = vmatpush.bf16.msra.mxu0 0
        %4795 = vmatpush.bf16.msra.mxu0 0
        %4796 = vmatpush.bf16.msra.mxu0 0
        %4797 = vmatpush.bf16.msra.mxu0 %v4788
        %4798 = vmatmul.bf16.gmra.mxu0 %v4740
        %v4799 = vpop.f32.mrf.mxu0
        %v4800 = vadd.f32 %v4737, %v4799
        %v4801 = vpop.f32.mrf.mxu0
        %v4802 = vadd.f32 %v4737, %v4801
        %4803 = vmatmul.bf16.gmra.mxu0 %v4743
        %v4804 = vpop.f32.mrf.mxu0
        %v4805 = vadd.f32 %v4737, %v4804
        %v4806 = vpop.f32.mrf.mxu0
        %v4807 = vadd.f32 %v4737, %v4806
        %4808 = vmatmul.bf16.gmra.mxu0 %v4746
        %v4809 = vpop.f32.mrf.mxu0
        %v4810 = vadd.f32 %v4737, %v4809
        %v4811 = vpop.f32.mrf.mxu0
        %v4812 = vadd.f32 %v4737, %v4811
        %4813 = vmatmul.bf16.gmra.mxu0 %v4749
        %v4814 = vpop.f32.mrf.mxu0
        %v4815 = vadd.f32 %v4737, %v4814
        %v4816 = vpop.f32.mrf.mxu0
        %v4817 = vadd.f32 %v4737, %v4816
        %4818 = vmatmul.bf16.gmra.mxu0 %v4752
        %v4819 = vpop.f32.mrf.mxu0
        %v4820 = vadd.f32 %v4737, %v4819
        %v4821 = vpop.f32.mrf.mxu0
        %v4822 = vadd.f32 %v4737, %v4821
        %4823 = vmatmul.bf16.gmra.mxu0 %v4755
        %v4824 = vpop.f32.mrf.mxu0
        %v4825 = vadd.f32 %v4737, %v4824
        %v4826 = vpop.f32.mrf.mxu0
        %v4827 = vadd.f32 %v4737, %v4826
        %4828 = vmatmul.bf16.gmra.mxu0 %v4758
        %v4829 = vpop.f32.mrf.mxu0
        %v4830 = vadd.f32 %v4737, %v4829
        %v4831 = vpop.f32.mrf.mxu0
        %v4832 = vadd.f32 %v4737, %v4831
        %4833 = vmatmul.bf16.gmra.mxu0 %v4761
        %v4834 = vpop.f32.mrf.mxu0
        %v4835 = vadd.f32 %v4737, %v4834
        %v4836 = vpop.f32.mrf.mxu0
        %v4837 = vadd.f32 %v4737, %v4836
        %4838 = vmatmul.bf16.gmra.mxu0 %v4764
        %v4839 = vpop.f32.mrf.mxu0
        %v4840 = vadd.f32 %v4737, %v4839
        %v4841 = vpop.f32.mrf.mxu0
        %v4842 = vadd.f32 %v4737, %v4841
        %4843 = vmatmul.bf16.gmra.mxu0 %v4767
        %v4844 = vpop.f32.mrf.mxu0
        %v4845 = vadd.f32 %v4737, %v4844
        %v4846 = vpop.f32.mrf.mxu0
        %v4847 = vadd.f32 %v4737, %v4846
        %4848 = vmatmul.bf16.gmra.mxu0 %v4770
        %v4849 = vpop.f32.mrf.mxu0
        %v4850 = vadd.f32 %v4737, %v4849
        %v4851 = vpop.f32.mrf.mxu0
        %v4852 = vadd.f32 %v4737, %v4851
        %4853 = vmatmul.bf16.gmra.mxu0 %v4773
        %v4854 = vpop.f32.mrf.mxu0
        %v4855 = vadd.f32 %v4737, %v4854
        %v4856 = vpop.f32.mrf.mxu0
        %v4857 = vadd.f32 %v4737, %v4856
        %4858 = vmatmul.bf16.gmra.mxu0 %v4776
        %v4859 = vpop.f32.mrf.mxu0
        %v4860 = vadd.f32 %v4737, %v4859
        %v4861 = vpop.f32.mrf.mxu0
        %v4862 = vadd.f32 %v4737, %v4861
        %4863 = vmatmul.bf16.gmra.mxu0 %v4779
        %v4864 = vpop.f32.mrf.mxu0
        %v4865 = vadd.f32 %v4737, %v4864
        %v4866 = vpop.f32.mrf.mxu0
        %v4867 = vadd.f32 %v4737, %v4866
        %4868 = vmatmul.bf16.gmra.mxu0 %v4782
        %v4869 = vpop.f32.mrf.mxu0
        %v4870 = vadd.f32 %v4737, %v4869
        %v4871 = vpop.f32.mrf.mxu0
        %v4872 = vadd.f32 %v4737, %v4871
        %4873 = vmatmul.bf16.gmra.mxu0 %v4785
        %v4874 = vpop.f32.mrf.mxu0
        %v4875 = vadd.f32 %v4737, %v4874
        %v4876 = vpop.f32.mrf.mxu0
        %v4877 = vadd.f32 %v4737, %v4876
        %4878 = vdwg.mxu0
        %v4879 = vadd.f32 %v4525, %v4800
        %v4880 = vadd.f32 %v4526, %v4802
        %v4881 = vadd.f32 %v4527, %v4805
        %v4882 = vadd.f32 %v4528, %v4807
        %v4883 = vadd.f32 %v4529, %v4810
        %v4884 = vadd.f32 %v4530, %v4812
        %v4885 = vadd.f32 %v4531, %v4815
        %v4886 = vadd.f32 %v4532, %v4817
        %v4887 = vadd.f32 %v4533, %v4820
        %v4888 = vadd.f32 %v4534, %v4822
        %v4889 = vadd.f32 %v4535, %v4825
        %v4890 = vadd.f32 %v4536, %v4827
        %v4891 = vadd.f32 %v4537, %v4830
        %v4892 = vadd.f32 %v4538, %v4832
        %v4893 = vadd.f32 %v4539, %v4835
        %v4894 = vadd.f32 %v4540, %v4837
        %v4895 = vadd.f32 %v4541, %v4840
        %v4896 = vadd.f32 %v4542, %v4842
        %v4897 = vadd.f32 %v4543, %v4845
        %v4898 = vadd.f32 %v4544, %v4847
        %v4899 = vadd.f32 %v4545, %v4850
        %v4900 = vadd.f32 %v4546, %v4852
        %v4901 = vadd.f32 %v4547, %v4855
        %v4902 = vadd.f32 %v4548, %v4857
        %v4903 = vadd.f32 %v4549, %v4860
        %v4904 = vadd.f32 %v4550, %v4862
        %v4905 = vadd.f32 %v4551, %v4865
        %v4906 = vadd.f32 %v4552, %v4867
        %v4907 = vadd.f32 %v4553, %v4870
        %v4908 = vadd.f32 %v4554, %v4872
        %v4909 = vadd.f32 %v4555, %v4875
        %v4910 = vadd.f32 %v4556, %v4877
        %v4911 = vadd.f32 %v4879, %v4881
        %v4912 = vadd.f32 %v4880, %v4882
        %v4913 = vadd.f32 %v4883, %v4885
        %v4914 = vadd.f32 %v4884, %v4886
        %v4915 = vadd.f32 %v4887, %v4889
        %v4916 = vadd.f32 %v4888, %v4890
        %v4917 = vadd.f32 %v4891, %v4893
        %v4918 = vadd.f32 %v4892, %v4894
        %v4919 = vadd.f32 %v4895, %v4897
        %v4920 = vadd.f32 %v4896, %v4898
        %v4921 = vadd.f32 %v4899, %v4901
        %v4922 = vadd.f32 %v4900, %v4902
        %v4923 = vadd.f32 %v4903, %v4905
        %v4924 = vadd.f32 %v4904, %v4906
        %v4925 = vadd.f32 %v4907, %v4909
        %v4926 = vadd.f32 %v4908, %v4910
        %v4943 = vrot.slane %v4911, 2
        %v4944 = vrot.slane %v4911, 4
        %v4945 = vrot.slane %v4911, 6
        %v4946 = vrot.slane %v4912, 2
        %v4947 = vrot.slane %v4912, 4
        %v4948 = vrot.slane %v4912, 6
        %v4949 = vrot.slane %v4913, 2
        %v4950 = vrot.slane %v4913, 4
        %v4951 = vrot.slane %v4913, 6
        %v4952 = vrot.slane %v4914, 2
        %v4953 = vrot.slane %v4914, 4
        %v4954 = vrot.slane %v4914, 6
        %v4955 = vrot.slane %v4915, 2
        %v4956 = vrot.slane %v4915, 4
        %v4957 = vrot.slane %v4915, 6
        %v4958 = vrot.slane %v4916, 2
        %v4959 = vrot.slane %v4916, 4
        %v4960 = vrot.slane %v4916, 6
        %v4961 = vrot.slane %v4917, 2
        %v4962 = vrot.slane %v4917, 4
        %v4963 = vrot.slane %v4917, 6
        %v4964 = vrot.slane %v4918, 2
        %v4965 = vrot.slane %v4918, 4
        %v4966 = vrot.slane %v4918, 6
        %v4967 = vrot.slane %v4919, 2
        %v4968 = vrot.slane %v4919, 4
        %v4969 = vrot.slane %v4919, 6
        %v4970 = vrot.slane %v4920, 2
        %v4971 = vrot.slane %v4920, 4
        %v4972 = vrot.slane %v4920, 6
        %v4973 = vrot.slane %v4921, 2
        %v4974 = vrot.slane %v4921, 4
        %v4975 = vrot.slane %v4921, 6
        %v4976 = vrot.slane %v4922, 2
        %v4977 = vrot.slane %v4922, 4
        %v4978 = vrot.slane %v4922, 6
        %v4979 = vrot.slane %v4923, 2
        %v4980 = vrot.slane %v4923, 4
        %v4981 = vrot.slane %v4923, 6
        %v4982 = vrot.slane %v4924, 2
        %v4983 = vrot.slane %v4924, 4
        %v4984 = vrot.slane %v4924, 6
        %v4985 = vrot.slane %v4925, 2
        %v4986 = vrot.slane %v4925, 4
        %v4987 = vrot.slane %v4925, 6
        %v4988 = vrot.slane %v4926, 2
        %v4989 = vrot.slane %v4926, 4
        %v4990 = vrot.slane %v4926, 6
        %v5039 = vrot.slane %v4911, 7
        %v5040 = vrot.slane %v5039, 2
        %v5041 = vrot.slane %v4943, 7
        %v5042 = vrot.slane %v5041, 2
        %v5043 = vrot.slane %v4944, 7
        %v5044 = vrot.slane %v5043, 2
        %v5045 = vrot.slane %v4945, 7
        %v5046 = vrot.slane %v5045, 2
        %v5047 = vrot.slane %v4912, 7
        %v5048 = vrot.slane %v5047, 2
        %v5049 = vrot.slane %v4946, 7
        %v5050 = vrot.slane %v5049, 2
        %v5051 = vrot.slane %v4947, 7
        %v5052 = vrot.slane %v5051, 2
        %v5053 = vrot.slane %v4948, 7
        %v5054 = vrot.slane %v5053, 2
        %v5055 = vrot.slane %v4913, 7
        %v5056 = vrot.slane %v5055, 2
        %v5057 = vrot.slane %v4949, 7
        %v5058 = vrot.slane %v5057, 2
        %v5059 = vrot.slane %v4950, 7
        %v5060 = vrot.slane %v5059, 2
        %v5061 = vrot.slane %v4951, 7
        %v5062 = vrot.slane %v5061, 2
        %v5063 = vrot.slane %v4914, 7
        %v5064 = vrot.slane %v5063, 2
        %v5065 = vrot.slane %v4952, 7
        %v5066 = vrot.slane %v5065, 2
        %v5067 = vrot.slane %v4953, 7
        %v5068 = vrot.slane %v5067, 2
        %v5069 = vrot.slane %v4954, 7
        %v5070 = vrot.slane %v5069, 2
        %v5071 = vrot.slane %v4915, 7
        %v5072 = vrot.slane %v5071, 2
        %v5073 = vrot.slane %v4955, 7
        %v5074 = vrot.slane %v5073, 2
        %v5075 = vrot.slane %v4956, 7
        %v5076 = vrot.slane %v5075, 2
        %v5077 = vrot.slane %v4957, 7
        %v5078 = vrot.slane %v5077, 2
        %v5079 = vrot.slane %v4916, 7
        %v5080 = vrot.slane %v5079, 2
        %v5081 = vrot.slane %v4958, 7
        %v5082 = vrot.slane %v5081, 2
        %v5083 = vrot.slane %v4959, 7
        %v5084 = vrot.slane %v5083, 2
        %v5085 = vrot.slane %v4960, 7
        %v5086 = vrot.slane %v5085, 2
        %v5087 = vrot.slane %v4917, 7
        %v5088 = vrot.slane %v5087, 2
        %v5089 = vrot.slane %v4961, 7
        %v5090 = vrot.slane %v5089, 2
        %v5091 = vrot.slane %v4962, 7
        %v5092 = vrot.slane %v5091, 2
        %v5093 = vrot.slane %v4963, 7
        %v5094 = vrot.slane %v5093, 2
        %v5095 = vrot.slane %v4918, 7
        %v5096 = vrot.slane %v5095, 2
        %v5097 = vrot.slane %v4964, 7
        %v5098 = vrot.slane %v5097, 2
        %v5099 = vrot.slane %v4965, 7
        %v5100 = vrot.slane %v5099, 2
        %v5101 = vrot.slane %v4966, 7
        %v5102 = vrot.slane %v5101, 2
        %v5103 = vrot.slane %v4919, 7
        %v5104 = vrot.slane %v5103, 2
        %v5105 = vrot.slane %v4967, 7
        %v5106 = vrot.slane %v5105, 2
        %v5107 = vrot.slane %v4968, 7
        %v5108 = vrot.slane %v5107, 2
        %v5109 = vrot.slane %v4969, 7
        %v5110 = vrot.slane %v5109, 2
        %v5111 = vrot.slane %v4920, 7
        %v5112 = vrot.slane %v5111, 2
        %v5113 = vrot.slane %v4970, 7
        %v5114 = vrot.slane %v5113, 2
        %v5115 = vrot.slane %v4971, 7
        %v5116 = vrot.slane %v5115, 2
        %v5117 = vrot.slane %v4972, 7
        %v5118 = vrot.slane %v5117, 2
        %v5119 = vrot.slane %v4921, 7
        %v5120 = vrot.slane %v5119, 2
        %v5121 = vrot.slane %v4973, 7
        %v5122 = vrot.slane %v5121, 2
        %v5123 = vrot.slane %v4974, 7
        %v5124 = vrot.slane %v5123, 2
        %v5125 = vrot.slane %v4975, 7
        %v5126 = vrot.slane %v5125, 2
        %v5127 = vrot.slane %v4922, 7
        %v5128 = vrot.slane %v5127, 2
        %v5129 = vrot.slane %v4976, 7
        %v5130 = vrot.slane %v5129, 2
        %v5131 = vrot.slane %v4977, 7
        %v5132 = vrot.slane %v5131, 2
        %v5133 = vrot.slane %v4978, 7
        %v5134 = vrot.slane %v5133, 2
        %v5135 = vrot.slane %v4923, 7
        %v5136 = vrot.slane %v5135, 2
        %v5137 = vrot.slane %v4979, 7
        %v5138 = vrot.slane %v5137, 2
        %v5139 = vrot.slane %v4980, 7
        %v5140 = vrot.slane %v5139, 2
        %v5141 = vrot.slane %v4981, 7
        %v5142 = vrot.slane %v5141, 2
        %v5143 = vrot.slane %v4924, 7
        %v5144 = vrot.slane %v5143, 2
        %v5145 = vrot.slane %v4982, 7
        %v5146 = vrot.slane %v5145, 2
        %v5147 = vrot.slane %v4983, 7
        %v5148 = vrot.slane %v5147, 2
        %v5149 = vrot.slane %v4984, 7
        %v5150 = vrot.slane %v5149, 2
        %v5151 = vrot.slane %v4925, 7
        %v5152 = vrot.slane %v5151, 2
        %v5153 = vrot.slane %v4985, 7
        %v5154 = vrot.slane %v5153, 2
        %v5155 = vrot.slane %v4986, 7
        %v5156 = vrot.slane %v5155, 2
        %v5157 = vrot.slane %v4987, 7
        %v5158 = vrot.slane %v5157, 2
        %v5159 = vrot.slane %v4926, 7
        %v5160 = vrot.slane %v5159, 2
        %v5161 = vrot.slane %v4988, 7
        %v5162 = vrot.slane %v5161, 2
        %v5163 = vrot.slane %v4989, 7
        %v5164 = vrot.slane %v5163, 2
        %v5165 = vrot.slane %v4990, 7
        %v5166 = vrot.slane %v5165, 2
        %v5231 = vadd.f32 %v4911, %v5040
        %v5232 = vadd.f32 %v4943, %v5042
        %v5233 = vadd.f32 %v4944, %v5044
        %v5234 = vadd.f32 %v4945, %v5046
        %v5235 = vadd.f32 %v4912, %v5048
        %v5236 = vadd.f32 %v4946, %v5050
        %v5237 = vadd.f32 %v4947, %v5052
        %v5238 = vadd.f32 %v4948, %v5054
        %v5239 = vadd.f32 %v4913, %v5056
        %v5240 = vadd.f32 %v4949, %v5058
        %v5241 = vadd.f32 %v4950, %v5060
        %v5242 = vadd.f32 %v4951, %v5062
        %v5243 = vadd.f32 %v4914, %v5064
        %v5244 = vadd.f32 %v4952, %v5066
        %v5245 = vadd.f32 %v4953, %v5068
        %v5246 = vadd.f32 %v4954, %v5070
        %v5247 = vadd.f32 %v4915, %v5072
        %v5248 = vadd.f32 %v4955, %v5074
        %v5249 = vadd.f32 %v4956, %v5076
        %v5250 = vadd.f32 %v4957, %v5078
        %v5251 = vadd.f32 %v4916, %v5080
        %v5252 = vadd.f32 %v4958, %v5082
        %v5253 = vadd.f32 %v4959, %v5084
        %v5254 = vadd.f32 %v4960, %v5086
        %v5255 = vadd.f32 %v4917, %v5088
        %v5256 = vadd.f32 %v4961, %v5090
        %v5257 = vadd.f32 %v4962, %v5092
        %v5258 = vadd.f32 %v4963, %v5094
        %v5259 = vadd.f32 %v4918, %v5096
        %v5260 = vadd.f32 %v4964, %v5098
        %v5261 = vadd.f32 %v4965, %v5100
        %v5262 = vadd.f32 %v4966, %v5102
        %v5263 = vadd.f32 %v4919, %v5104
        %v5264 = vadd.f32 %v4967, %v5106
        %v5265 = vadd.f32 %v4968, %v5108
        %v5266 = vadd.f32 %v4969, %v5110
        %v5267 = vadd.f32 %v4920, %v5112
        %v5268 = vadd.f32 %v4970, %v5114
        %v5269 = vadd.f32 %v4971, %v5116
        %v5270 = vadd.f32 %v4972, %v5118
        %v5271 = vadd.f32 %v4921, %v5120
        %v5272 = vadd.f32 %v4973, %v5122
        %v5273 = vadd.f32 %v4974, %v5124
        %v5274 = vadd.f32 %v4975, %v5126
        %v5275 = vadd.f32 %v4922, %v5128
        %v5276 = vadd.f32 %v4976, %v5130
        %v5277 = vadd.f32 %v4977, %v5132
        %v5278 = vadd.f32 %v4978, %v5134
        %v5279 = vadd.f32 %v4923, %v5136
        %v5280 = vadd.f32 %v4979, %v5138
        %v5281 = vadd.f32 %v4980, %v5140
        %v5282 = vadd.f32 %v4981, %v5142
        %v5283 = vadd.f32 %v4924, %v5144
        %v5284 = vadd.f32 %v4982, %v5146
        %v5285 = vadd.f32 %v4983, %v5148
        %v5286 = vadd.f32 %v4984, %v5150
        %v5287 = vadd.f32 %v4925, %v5152
        %v5288 = vadd.f32 %v4985, %v5154
        %v5289 = vadd.f32 %v4986, %v5156
        %v5290 = vadd.f32 %v4987, %v5158
        %v5291 = vadd.f32 %v4926, %v5160
        %v5292 = vadd.f32 %v4988, %v5162
        %v5293 = vadd.f32 %v4989, %v5164
        %v5294 = vadd.f32 %v4990, %v5166
        %v5295 = vmul.f32 %v5231, 0.25
        %v5296 = vmul.f32 %v5232, 0.25
        %v5297 = vmul.f32 %v5233, 0.25
        %v5298 = vmul.f32 %v5234, 0.25
        %v5299 = vmul.f32 %v5235, 0.25
        %v5300 = vmul.f32 %v5236, 0.25
        %v5301 = vmul.f32 %v5237, 0.25
        %v5302 = vmul.f32 %v5238, 0.25
        %v5303 = vmul.f32 %v5239, 0.25
        %v5304 = vmul.f32 %v5240, 0.25
        %v5305 = vmul.f32 %v5241, 0.25
        %v5306 = vmul.f32 %v5242, 0.25
        %v5307 = vmul.f32 %v5243, 0.25
        %v5308 = vmul.f32 %v5244, 0.25
        %v5309 = vmul.f32 %v5245, 0.25
        %v5310 = vmul.f32 %v5246, 0.25
        %v5311 = vmul.f32 %v5247, 0.25
        %v5312 = vmul.f32 %v5248, 0.25
        %v5313 = vmul.f32 %v5249, 0.25
        %v5314 = vmul.f32 %v5250, 0.25
        %v5315 = vmul.f32 %v5251, 0.25
        %v5316 = vmul.f32 %v5252, 0.25
        %v5317 = vmul.f32 %v5253, 0.25
        %v5318 = vmul.f32 %v5254, 0.25
        %v5319 = vmul.f32 %v5255, 0.25
        %v5320 = vmul.f32 %v5256, 0.25
        %v5321 = vmul.f32 %v5257, 0.25
        %v5322 = vmul.f32 %v5258, 0.25
        %v5323 = vmul.f32 %v5259, 0.25
        %v5324 = vmul.f32 %v5260, 0.25
        %v5325 = vmul.f32 %v5261, 0.25
        %v5326 = vmul.f32 %v5262, 0.25
        %v5327 = vmul.f32 %v5263, 0.25
        %v5328 = vmul.f32 %v5264, 0.25
        %v5329 = vmul.f32 %v5265, 0.25
        %v5330 = vmul.f32 %v5266, 0.25
        %v5331 = vmul.f32 %v5267, 0.25
        %v5332 = vmul.f32 %v5268, 0.25
        %v5333 = vmul.f32 %v5269, 0.25
        %v5334 = vmul.f32 %v5270, 0.25
        %v5335 = vmul.f32 %v5271, 0.25
        %v5336 = vmul.f32 %v5272, 0.25
        %v5337 = vmul.f32 %v5273, 0.25
        %v5338 = vmul.f32 %v5274, 0.25
        %v5339 = vmul.f32 %v5275, 0.25
        %v5340 = vmul.f32 %v5276, 0.25
        %v5341 = vmul.f32 %v5277, 0.25
        %v5342 = vmul.f32 %v5278, 0.25
        %v5343 = vmul.f32 %v5279, 0.25
        %v5344 = vmul.f32 %v5280, 0.25
        %v5345 = vmul.f32 %v5281, 0.25
        %v5346 = vmul.f32 %v5282, 0.25
        %v5347 = vmul.f32 %v5283, 0.25
        %v5348 = vmul.f32 %v5284, 0.25
        %v5349 = vmul.f32 %v5285, 0.25
        %v5350 = vmul.f32 %v5286, 0.25
        %v5351 = vmul.f32 %v5287, 0.25
        %v5352 = vmul.f32 %v5288, 0.25
        %v5353 = vmul.f32 %v5289, 0.25
        %v5354 = vmul.f32 %v5290, 0.25
        %v5355 = vmul.f32 %v5291, 0.25
        %v5356 = vmul.f32 %v5292, 0.25
        %v5357 = vmul.f32 %v5293, 0.25
        %v5358 = vmul.f32 %v5294, 0.25
        %v5423 = vperm.slane %v5295, 0
        %v5424 = vperm.slane %v5296, 0
        %v5425 = vperm.slane %v5297, 0
        %v5426 = vperm.slane %v5298, 0
        %v5427 = vperm.slane %v5299, 0
        %v5428 = vperm.slane %v5300, 0
        %v5429 = vperm.slane %v5301, 0
        %v5430 = vperm.slane %v5302, 0
        %v5431 = vperm.slane %v5303, 0
        %v5432 = vperm.slane %v5304, 0
        %v5433 = vperm.slane %v5305, 0
        %v5434 = vperm.slane %v5306, 0
        %v5435 = vperm.slane %v5307, 0
        %v5436 = vperm.slane %v5308, 0
        %v5437 = vperm.slane %v5309, 0
        %v5438 = vperm.slane %v5310, 0
        %v5439 = vperm.slane %v5311, 0
        %v5440 = vperm.slane %v5312, 0
        %v5441 = vperm.slane %v5313, 0
        %v5442 = vperm.slane %v5314, 0
        %v5443 = vperm.slane %v5315, 0
        %v5444 = vperm.slane %v5316, 0
        %v5445 = vperm.slane %v5317, 0
        %v5446 = vperm.slane %v5318, 0
        %v5447 = vperm.slane %v5319, 0
        %v5448 = vperm.slane %v5320, 0
        %v5449 = vperm.slane %v5321, 0
        %v5450 = vperm.slane %v5322, 0
        %v5451 = vperm.slane %v5323, 0
        %v5452 = vperm.slane %v5324, 0
        %v5453 = vperm.slane %v5325, 0
        %v5454 = vperm.slane %v5326, 0
        %v5455 = vperm.slane %v5327, 0
        %v5456 = vperm.slane %v5328, 0
        %v5457 = vperm.slane %v5329, 0
        %v5458 = vperm.slane %v5330, 0
        %v5459 = vperm.slane %v5331, 0
        %v5460 = vperm.slane %v5332, 0
        %v5461 = vperm.slane %v5333, 0
        %v5462 = vperm.slane %v5334, 0
        %v5463 = vperm.slane %v5335, 0
        %v5464 = vperm.slane %v5336, 0
        %v5465 = vperm.slane %v5337, 0
        %v5466 = vperm.slane %v5338, 0
        %v5467 = vperm.slane %v5339, 0
        %v5468 = vperm.slane %v5340, 0
        %v5469 = vperm.slane %v5341, 0
        %v5470 = vperm.slane %v5342, 0
        %v5471 = vperm.slane %v5343, 0
        %v5472 = vperm.slane %v5344, 0
        %v5473 = vperm.slane %v5345, 0
        %v5474 = vperm.slane %v5346, 0
        %v5475 = vperm.slane %v5347, 0
        %v5476 = vperm.slane %v5348, 0
        %v5477 = vperm.slane %v5349, 0
        %v5478 = vperm.slane %v5350, 0
        %v5479 = vperm.slane %v5351, 0
        %v5480 = vperm.slane %v5352, 0
        %v5481 = vperm.slane %v5353, 0
        %v5482 = vperm.slane %v5354, 0
        %v5483 = vperm.slane %v5355, 0
        %v5484 = vperm.slane %v5356, 0
        %v5485 = vperm.slane %v5357, 0
        %v5486 = vperm.slane %v5358, 0
        %vm5487 = vcmask 1041409
        %v5488 = vsel %vm5487, %v5424, %v5423
        %vm5489 = vcmask 1042434
        %v5490 = vsel %vm5489, %v5425, %v5488
        %vm5491 = vcmask 1043459
        %v5492 = vsel %vm5491, %v5426, %v5490
        %vm5493 = vcmask 1044484
        %v5494 = vsel %vm5493, %v5427, %v5492
        %vm5495 = vcmask 1045509
        %v5496 = vsel %vm5495, %v5428, %v5494
        %vm5497 = vcmask 1046534
        %v5498 = vsel %vm5497, %v5429, %v5496
        %vm5499 = vcmask 1047559
        %v5500 = vsel %vm5499, %v5430, %v5498
        %v5501 = vsel %vm5487, %v5432, %v5431
        %v5502 = vsel %vm5489, %v5433, %v5501
        %v5503 = vsel %vm5491, %v5434, %v5502
        %v5504 = vsel %vm5493, %v5435, %v5503
        %v5505 = vsel %vm5495, %v5436, %v5504
        %v5506 = vsel %vm5497, %v5437, %v5505
        %v5507 = vsel %vm5499, %v5438, %v5506
        %v5508 = vsel %vm5487, %v5440, %v5439
        %v5509 = vsel %vm5489, %v5441, %v5508
        %v5510 = vsel %vm5491, %v5442, %v5509
        %v5511 = vsel %vm5493, %v5443, %v5510
        %v5512 = vsel %vm5495, %v5444, %v5511
        %v5513 = vsel %vm5497, %v5445, %v5512
        %v5514 = vsel %vm5499, %v5446, %v5513
        %v5515 = vsel %vm5487, %v5448, %v5447
        %v5516 = vsel %vm5489, %v5449, %v5515
        %v5517 = vsel %vm5491, %v5450, %v5516
        %v5518 = vsel %vm5493, %v5451, %v5517
        %v5519 = vsel %vm5495, %v5452, %v5518
        %v5520 = vsel %vm5497, %v5453, %v5519
        %v5521 = vsel %vm5499, %v5454, %v5520
        %v5522 = vsel %vm5487, %v5456, %v5455
        %v5523 = vsel %vm5489, %v5457, %v5522
        %v5524 = vsel %vm5491, %v5458, %v5523
        %v5525 = vsel %vm5493, %v5459, %v5524
        %v5526 = vsel %vm5495, %v5460, %v5525
        %v5527 = vsel %vm5497, %v5461, %v5526
        %v5528 = vsel %vm5499, %v5462, %v5527
        %v5529 = vsel %vm5487, %v5464, %v5463
        %v5530 = vsel %vm5489, %v5465, %v5529
        %v5531 = vsel %vm5491, %v5466, %v5530
        %v5532 = vsel %vm5493, %v5467, %v5531
        %v5533 = vsel %vm5495, %v5468, %v5532
        %v5534 = vsel %vm5497, %v5469, %v5533
        %v5535 = vsel %vm5499, %v5470, %v5534
        %v5536 = vsel %vm5487, %v5472, %v5471
        %v5537 = vsel %vm5489, %v5473, %v5536
        %v5538 = vsel %vm5491, %v5474, %v5537
        %v5539 = vsel %vm5493, %v5475, %v5538
        %v5540 = vsel %vm5495, %v5476, %v5539
        %v5541 = vsel %vm5497, %v5477, %v5540
        %v5542 = vsel %vm5499, %v5478, %v5541
        %v5543 = vsel %vm5487, %v5480, %v5479
        %v5544 = vsel %vm5489, %v5481, %v5543
        %v5545 = vsel %vm5491, %v5482, %v5544
        %v5546 = vsel %vm5493, %v5483, %v5545
        %v5547 = vsel %vm5495, %v5484, %v5546
        %v5548 = vsel %vm5497, %v5485, %v5547
        %v5549 = vsel %vm5499, %v5486, %v5548
        %5558 = vxpose.xlu0.b32.start [1/16] %v5500, 128
        %5559 = vxpose.xlu0.b32.cont [2/16] %v5507, 128
        %5560 = vxpose.xlu0.b32.cont [3/16] %v5514, 128
        %5561 = vxpose.xlu0.b32.cont [4/16] %v5521, 128
        %5562 = vxpose.xlu0.b32.cont [5/16] %v5528, 128
        %5563 = vxpose.xlu0.b32.cont [6/16] %v5535, 128
        %5564 = vxpose.xlu0.b32.cont [7/16] %v5542, 128
        %5565 = vxpose.xlu0.b32.cont [8/16] %v5549, 128
        %5566 = vxpose.xlu0.b32.cont [9/16] 0.0, 128
        %5567 = vxpose.xlu0.b32.cont [10/16] 0.0, 128
        %5568 = vxpose.xlu0.b32.cont [11/16] 0.0, 128
        %5569 = vxpose.xlu0.b32.cont [12/16] 0.0, 128
        %5570 = vxpose.xlu0.b32.cont [13/16] 0.0, 128
        %5571 = vxpose.xlu0.b32.cont [14/16] 0.0, 128
        %5572 = vxpose.xlu0.b32.cont [15/16] 0.0, 128
        %5573 = vxpose.xlu0.b32.end [16/16] 0.0, 128
        %v5574 = vpop.trf.xlu0
        %v5575 = vpop.trf.xlu0
        %v5576 = vpop.trf.xlu0
        %v5577 = vpop.trf.xlu0
        %v5578 = vpop.trf.xlu0
        %v5579 = vpop.trf.xlu0
        %v5580 = vpop.trf.xlu0
        %v5581 = vpop.trf.xlu0
        %v5582 = vpop.trf.xlu0
        %v5583 = vpop.trf.xlu0
        %v5584 = vpop.trf.xlu0
        %v5585 = vpop.trf.xlu0
        %v5586 = vpop.trf.xlu0
        %v5587 = vpop.trf.xlu0
        %v5588 = vpop.trf.xlu0
        %v5589 = vpop.trf.xlu0
        %vm5590 = vcmask 523264
        %5591 = vst.msk [vmem:[%s271] sm:$0xff] %vm5590, %v5574
        %s5592 = sand.u32 %s181, 1
        %s5593 = scalar_lea.sflag [#allocation5], %s5592
        %s5594 = sand.u32 %s181, 1
        %s5595 = smul.addr %s5594, 8
        %s5596 = scalar_lea.vmem [#allocation4], %s5595
        // Predicated region
        $region49: #{tpu_custom_call.1} parent=47 // pred_check
          %p5597 = pneg %p191
        $region50: #{tpu_custom_call.1} parent=47 // pred_check_branch
          %5599 = sbr.rel (%p5597) target = $region52
        $region51: #{tpu_custom_call.1} parent=47 // pred_region
          %5601 = vsyncadd %s5593, 0
          %s5602 = smul.addr %s21, 8
          %s5603 = scalar_lea.hbm %s7, %s5602
          %s5605 = sshll.u32 %s5596, 4
          %s5606 = int_to_ptr.vmem [resolvable:$true] %s5605
          %s5607 = sshll.u32 %s5603, 4
          %s5608 = int_to_ptr.hbm [resolvable:$true] %s5607
          %5610 = dma.vmem_to_hbm [thread:$0]  %s5606, 128, %s5608, %s5593
        $region52: #{tpu_custom_call.1} parent=47 // pred_fallthru
          _
      $region48: #{tpu_custom_call.1} parent=5 // pred_fallthru
        _
      %p5611 = scmp.le.s32.totalorder 2, %s16
      // Predicated region
      $region53: #{tpu_custom_call.1} parent=5 // pred_check
        %p5612 = pneg %p5611
      $region54: #{tpu_custom_call.1} parent=5 // pred_check_branch
        %5614 = sbr.rel (%p5612) target = $region56
      $region55: #{tpu_custom_call.1} parent=5 // pred_region
        %s5615 = ssub.s32 %s16, 2
        // Predicated region
        $region57: #{tpu_custom_call.1} parent=55 // pred_check
          %p5616 = pneg %p197
        $region58: #{tpu_custom_call.1} parent=55 // pred_check_branch
          %5618 = sbr.rel (%p5616) target = $region60
        $region59: #{tpu_custom_call.1} parent=55 // pred_region
          %s5619 = sand.u32 %s182, 1
          %s5620 = scalar_lea.sflag [#allocation5], %s5619
          %s5621 = sand.u32 %s182, 1
          %s5622 = smul.addr %s5621, 8
          %s5623 = scalar_lea.vmem [#allocation4], %s5622
          %5625 = dma.done %s5620, 128
        $region60: #{tpu_custom_call.1} parent=55 // pred_fallthru
          _
      $region56: #{tpu_custom_call.1} parent=5 // pred_fallthru
        _
    $region6: #{tpu_custom_call.1} parent=1 // loop_footer
      %s20 = sadd.s32 1, %s16
    $region7: #{tpu_custom_call.1} parent=1 // loop_footer_branch
      %15 = sbr.rel target = $region3
    $region8: #{tpu_custom_call.1} parent=1 // loop_exit
      _
    %5626 = vsyncpa [#allocation5], 1
    %s5627 = scalar_lea.sflag [#allocation5], 1
    %5628 = vsyncpa %s5627, 1

</llo_original>
